<compile_context>
chip_gen: v6e
topology: v6e:2x2x1
jax: 0.10.0
libtpu: 0.0.40
codegen_flags: <defaults>
</compile_context>

<pallas_src>
import jax
import jax.numpy as jnp
from jax import lax
from jax.experimental import pallas as pl
from jax.experimental.pallas import tpu as pltpu

LAYER_DIMS = [(800, 128), (128, 64), (64, 32), (32, 16), (16, 1)]
LANE = 128


def _round_up(n, m):
    return ((n + m - 1) // m) * m


def _pad2(a, rows, cols):
    r, c = a.shape
    return jnp.pad(a, ((0, rows - r), (0, cols - c)))


def _make_kernel(tm, n_valid_rows):
    """Build the fused-MLP kernel for a fixed batch-tile size."""
    groups = tm // LANE

    def mlp_kernel(x_ref,
                   w1_ref, b1_ref, w2_ref, b2_ref, w3_ref, b3_ref,
                   w4_ref, b4_ref, w5_ref, b5_ref, o_ref):
        # ---- fused 5-layer MLP on one (tm, 896) bf16 x-tile (weights resident) ----
        h = jnp.dot(x_ref[...], w1_ref[...], preferred_element_type=jnp.float32)
        h = jnp.maximum(h + b1_ref[...], 0.0)
        h = jnp.dot(h.astype(jnp.bfloat16), w2_ref[...], preferred_element_type=jnp.float32)
        h = jnp.maximum(h + b2_ref[...], 0.0)
        h = jnp.dot(h.astype(jnp.bfloat16), w3_ref[...], preferred_element_type=jnp.float32)
        h = jnp.maximum(h + b3_ref[...], 0.0)
        h = jnp.dot(h.astype(jnp.bfloat16), w4_ref[...], preferred_element_type=jnp.float32)
        h = jnp.maximum(h + b4_ref[...], 0.0)
        # Final layer: w5 is replicated into all 128 columns, so every lane of
        # y_full holds that row's (pre-bias) scalar output.
        y_full = jnp.dot(h.astype(jnp.bfloat16), w5_ref[...],
                         preferred_element_type=jnp.float32)           # (tm, 128)

        # ---- pack the per-row scalar into a lane-dense (tm//128, 128) block ----
        r = lax.broadcasted_iota(jnp.int32, (tm, LANE), 0)
        c = lax.broadcasted_iota(jnp.int32, (tm, LANE), 1)
        diag = (r & (LANE - 1)) == c
        # Zero out rows beyond the valid batch (garbage rows of an uneven last
        # tile) so NaN/Inf garbage cannot leak through the packing matmul.
        row_ok = (pl.program_id(0) * tm + r) < n_valid_rows
        y_diag = jnp.where(jnp.logical_and(diag, row_ok), y_full, 0.0)  # (tm, 128)

        # Block-diagonal selector: sums each group of 128 rows, keeping lanes.
        g = lax.broadcasted_iota(jnp.int32, (groups, tm), 0)
        rr = lax.broadcasted_iota(jnp.int32, (groups, tm), 1)
        sel = jnp.logical_and(rr >= g * LANE, rr < (g + 1) * LANE).astype(jnp.float32)
        packed = jnp.dot(sel, y_diag, preferred_element_type=jnp.float32)  # (groups, 128)

        o_ref[...] = (packed + b5_ref[...])[None].astype(o_ref.dtype)      # (1, groups, 128)

    return mlp_kernel


def neural_network_og_forward(x, params, tile_m=1024):
    """x: (B, 800) float32. params: list of (W (in,out), b (1,out)). Returns (B, 1) float32."""
    B, K = x.shape
    assert K == LAYER_DIMS[0][0], (B, K)

    # --- Lane-friendly padding (layout plumbing only). ---
    K_pad = _round_up(K, LANE)          # 800 -> 896
    B_pad = _round_up(B, LANE)          # batch padded only to a multiple of 128

    # Batch tile: multiple of 128, capped by tile_m; for batches big enough,
    # keep at least 2 grid steps so both v7x TensorCores get work.
    tm = min(_round_up(max(tile_m, LANE), LANE), B_pad)
    if B_pad >= 2 * LANE:
        tm = min(tm, _round_up((B_pad + 1) // 2, LANE))
    n_tiles = (B_pad + tm - 1) // tm    # cdiv: last tile may be partial
    groups = tm // LANE

    # --- bf16 inputs/weights (f32 accumulation in-kernel). ---
    x_p = jnp.pad(x, ((0, B_pad - B), (0, K_pad - K))).astype(jnp.bfloat16)

    (w1, b1), (w2, b2), (w3, b3), (w4, b4), (w5, b5) = params
    w1p = _pad2(w1, K_pad, LANE).astype(jnp.bfloat16)
    w2p = _pad2(w2, LANE, LANE).astype(jnp.bfloat16)
    w3p = _pad2(w3, LANE, LANE).astype(jnp.bfloat16)
    w4p = _pad2(w4, LANE, LANE).astype(jnp.bfloat16)
    w5p = jnp.tile(_pad2(w5, LANE, 1), (1, LANE)).astype(jnp.bfloat16)   # replicate out column
    b1p = _pad2(b1, 1, LANE).astype(jnp.float32)
    b2p = _pad2(b2, 1, LANE).astype(jnp.float32)
    b3p = _pad2(b3, 1, LANE).astype(jnp.float32)
    b4p = _pad2(b4, 1, LANE).astype(jnp.float32)
    b5p = jnp.full((1, LANE), b5[0, 0], jnp.float32)

    flat_params = [w1p, b1p, w2p, b2p, w3p, b3p, w4p, b4p, w5p, b5p]

    # --- BlockSpecs: x tiled over batch; weights/biases resident (constant index_map). ---
    in_specs = [pl.BlockSpec((tm, K_pad), lambda i: (i, 0))]
    for a in flat_params:
        in_specs.append(pl.BlockSpec(a.shape, lambda i: (0, 0)))
    out_spec = pl.BlockSpec((1, groups, LANE), lambda i: (i, 0, 0))

    vmem_limit = 48 * 2**20 if tm >= 2048 else None   # only needed for very large tiles (v5e default scoped is 16 MiB)
    compiler_params = pltpu.CompilerParams(
        dimension_semantics=("parallel",),
        vmem_limit_bytes=vmem_limit,
    )

    out_packed = pl.pallas_call(
        _make_kernel(tm, B_pad),
        out_shape=jax.ShapeDtypeStruct((n_tiles, groups, LANE), jnp.float32),
        grid_spec=pltpu.PrefetchScalarGridSpec(
            num_scalar_prefetch=0,
            grid=(n_tiles,),
            in_specs=in_specs,
            out_specs=out_spec,
        ),
        compiler_params=compiler_params,
    )(x_p, *flat_params)

    # Packed lane-dense blocks -> true (B, 1) output.
    return out_packed.reshape(-1)[:B].reshape(B, 1)


def init_params(key):
    """Deterministic init mimicking PyTorch nn.Linear default: U(-1/sqrt(fan_in), +1/sqrt(fan_in))."""
    params = []
    for (fan_in, fan_out) in LAYER_DIMS:
        key, kw, kb = jax.random.split(key, 3)
        bound = 1.0 / jnp.sqrt(jnp.float32(fan_in))
        w = jax.random.uniform(kw, (fan_in, fan_out), jnp.float32, -bound, bound)
        b = jax.random.uniform(kb, (1, fan_out), jnp.float32, -bound, bound)
        params.append((w, b))
    return params


def reference_forward(x, params):
    h = x
    for i, (w, b) in enumerate(params):
        h = h @ w + b
        if i < len(params) - 1:
            h = jnp.maximum(h, 0.0)
    return h


if __name__ == "__main__":
    key = jax.random.PRNGKey(0)
    key, kx = jax.random.split(key)
    B = 300                      # not tile-aligned: exercises batch padding + partial last tile
    x = jax.random.normal(kx, (B, 800), jnp.float32)
    params = init_params(key)

    # tile_m=256 -> 2 grid steps (one full tile + one partial tile) at this small batch.
    out = neural_network_og_forward(x, params, tile_m=256)
    out = jax.block_until_ready(out)

    ref = reference_forward(x, params)
    assert out.shape == (B, 1), out.shape
    max_err = float(jnp.max(jnp.abs(out - ref)))
    # bf16 inputs/weights (f32 accumulation) -> loosened tolerance vs the f32 reference.
    assert jnp.allclose(out, ref, atol=5e-2, rtol=5e-2), f"mismatch vs reference, max abs err={max_err}"
    print("KERNEL_OK")
</pallas_src>

<mosaic_0001>
module attributes {stable_mosaic.version = 11 : i64} {
  func.func @mlp_kernel(%arg0: i32, %arg1: memref<256x896xbf16, #tpu.memory_space<vmem>>, %arg2: memref<896x128xbf16, #tpu.memory_space<vmem>>, %arg3: memref<1x128xf32, #tpu.memory_space<vmem>>, %arg4: memref<128x128xbf16, #tpu.memory_space<vmem>>, %arg5: memref<1x128xf32, #tpu.memory_space<vmem>>, %arg6: memref<128x128xbf16, #tpu.memory_space<vmem>>, %arg7: memref<1x128xf32, #tpu.memory_space<vmem>>, %arg8: memref<128x128xbf16, #tpu.memory_space<vmem>>, %arg9: memref<1x128xf32, #tpu.memory_space<vmem>>, %arg10: memref<128x128xbf16, #tpu.memory_space<vmem>>, %arg11: memref<1x128xf32, #tpu.memory_space<vmem>>, %arg12: memref<1x2x128xf32, #tpu.memory_space<vmem>>) attributes {dimension_semantics = [#tpu.dimension_semantics<parallel>], iteration_bounds = array<i64: 2>, scalar_prefetch = 0 : i64, scratch_operands = 0 : i64, tpu.core_type = #tpu.core_type<tc>, window_params = [{transform_indices = @transform_0, window_bounds = array<i64: 256, 896>}, {pipeline_mode = #tpu.pipeline_mode<synchronous>, transform_indices = @transform_1, window_bounds = array<i64: 896, 128>}, {pipeline_mode = #tpu.pipeline_mode<synchronous>, transform_indices = @transform_2, window_bounds = array<i64: 1, 128>}, {pipeline_mode = #tpu.pipeline_mode<synchronous>, transform_indices = @transform_3, window_bounds = array<i64: 128, 128>}, {pipeline_mode = #tpu.pipeline_mode<synchronous>, transform_indices = @transform_4, window_bounds = array<i64: 1, 128>}, {pipeline_mode = #tpu.pipeline_mode<synchronous>, transform_indices = @transform_5, window_bounds = array<i64: 128, 128>}, {pipeline_mode = #tpu.pipeline_mode<synchronous>, transform_indices = @transform_6, window_bounds = array<i64: 1, 128>}, {pipeline_mode = #tpu.pipeline_mode<synchronous>, transform_indices = @transform_7, window_bounds = array<i64: 128, 128>}, {pipeline_mode = #tpu.pipeline_mode<synchronous>, transform_indices = @transform_8, window_bounds = array<i64: 1, 128>}, {pipeline_mode = #tpu.pipeline_mode<synchronous>, transform_indices = @transform_9, window_bounds = array<i64: 128, 128>}, {pipeline_mode = #tpu.pipeline_mode<synchronous>, transform_indices = @transform_10, window_bounds = array<i64: 1, 128>}, {transform_indices = @transform_11, window_bounds = array<i64: 1, 2, 128>}]} {
    %c0 = arith.constant 0 : index
    %c0_0 = arith.constant 0 : index
    %0 = vector.load %arg1[%c0, %c0_0] : memref<256x896xbf16, #tpu.memory_space<vmem>>, vector<256x896xbf16>
    %c0_1 = arith.constant 0 : index
    %c0_2 = arith.constant 0 : index
    %1 = vector.load %arg2[%c0_1, %c0_2] : memref<896x128xbf16, #tpu.memory_space<vmem>>, vector<896x128xbf16>
    %cst = arith.constant dense<0.000000e+00> : vector<256x128xf32>
    %2 = tpu.matmul %0, %1, %cst {dimension_numbers = #tpu.dot_dimension_numbers<[1], [0], [0], [1], [0, 0, 1, 1], [], []>} : vector<256x896xbf16>, vector<896x128xbf16>, vector<256x128xf32> -> vector<256x128xf32>
    %c0_3 = arith.constant 0 : index
    %c0_4 = arith.constant 0 : index
    %3 = vector.load %arg3[%c0_3, %c0_4] : memref<1x128xf32, #tpu.memory_space<vmem>>, vector<1x128xf32>
    %4 = vector.broadcast %3 : vector<1x128xf32> to vector<256x128xf32>
    %5 = arith.addf %2, %4 : vector<256x128xf32>
    %cst_5 = arith.constant 0.000000e+00 : f32
    %6 = vector.broadcast %cst_5 : f32 to vector<256x128xf32>
    %7 = arith.maximumf %5, %6 : vector<256x128xf32>
    %8 = arith.truncf %7 : vector<256x128xf32> to vector<256x128xbf16>
    %c0_6 = arith.constant 0 : index
    %c0_7 = arith.constant 0 : index
    %9 = vector.load %arg4[%c0_6, %c0_7] : memref<128x128xbf16, #tpu.memory_space<vmem>>, vector<128x128xbf16>
    %cst_8 = arith.constant dense<0.000000e+00> : vector<256x128xf32>
    %10 = tpu.matmul %8, %9, %cst_8 {dimension_numbers = #tpu.dot_dimension_numbers<[1], [0], [0], [1], [0, 0, 1, 1], [], []>} : vector<256x128xbf16>, vector<128x128xbf16>, vector<256x128xf32> -> vector<256x128xf32>
    %c0_9 = arith.constant 0 : index
    %c0_10 = arith.constant 0 : index
    %11 = vector.load %arg5[%c0_9, %c0_10] : memref<1x128xf32, #tpu.memory_space<vmem>>, vector<1x128xf32>
    %12 = vector.broadcast %11 : vector<1x128xf32> to vector<256x128xf32>
    %13 = arith.addf %10, %12 : vector<256x128xf32>
    %cst_11 = arith.constant 0.000000e+00 : f32
    %14 = vector.broadcast %cst_11 : f32 to vector<256x128xf32>
    %15 = arith.maximumf %13, %14 : vector<256x128xf32>
    %16 = arith.truncf %15 : vector<256x128xf32> to vector<256x128xbf16>
    %c0_12 = arith.constant 0 : index
    %c0_13 = arith.constant 0 : index
    %17 = vector.load %arg6[%c0_12, %c0_13] : memref<128x128xbf16, #tpu.memory_space<vmem>>, vector<128x128xbf16>
    %cst_14 = arith.constant dense<0.000000e+00> : vector<256x128xf32>
    %18 = tpu.matmul %16, %17, %cst_14 {dimension_numbers = #tpu.dot_dimension_numbers<[1], [0], [0], [1], [0, 0, 1, 1], [], []>} : vector<256x128xbf16>, vector<128x128xbf16>, vector<256x128xf32> -> vector<256x128xf32>
    %c0_15 = arith.constant 0 : index
    %c0_16 = arith.constant 0 : index
    %19 = vector.load %arg7[%c0_15, %c0_16] : memref<1x128xf32, #tpu.memory_space<vmem>>, vector<1x128xf32>
    %20 = vector.broadcast %19 : vector<1x128xf32> to vector<256x128xf32>
    %21 = arith.addf %18, %20 : vector<256x128xf32>
    %cst_17 = arith.constant 0.000000e+00 : f32
    %22 = vector.broadcast %cst_17 : f32 to vector<256x128xf32>
    %23 = arith.maximumf %21, %22 : vector<256x128xf32>
    %24 = arith.truncf %23 : vector<256x128xf32> to vector<256x128xbf16>
    %c0_18 = arith.constant 0 : index
    %c0_19 = arith.constant 0 : index
    %25 = vector.load %arg8[%c0_18, %c0_19] : memref<128x128xbf16, #tpu.memory_space<vmem>>, vector<128x128xbf16>
    %cst_20 = arith.constant dense<0.000000e+00> : vector<256x128xf32>
    %26 = tpu.matmul %24, %25, %cst_20 {dimension_numbers = #tpu.dot_dimension_numbers<[1], [0], [0], [1], [0, 0, 1, 1], [], []>} : vector<256x128xbf16>, vector<128x128xbf16>, vector<256x128xf32> -> vector<256x128xf32>
    %c0_21 = arith.constant 0 : index
    %c0_22 = arith.constant 0 : index
    %27 = vector.load %arg9[%c0_21, %c0_22] : memref<1x128xf32, #tpu.memory_space<vmem>>, vector<1x128xf32>
    %28 = vector.broadcast %27 : vector<1x128xf32> to vector<256x128xf32>
    %29 = arith.addf %26, %28 : vector<256x128xf32>
    %cst_23 = arith.constant 0.000000e+00 : f32
    %30 = vector.broadcast %cst_23 : f32 to vector<256x128xf32>
    %31 = arith.maximumf %29, %30 : vector<256x128xf32>
    %32 = arith.truncf %31 : vector<256x128xf32> to vector<256x128xbf16>
    %c0_24 = arith.constant 0 : index
    %c0_25 = arith.constant 0 : index
    %33 = vector.load %arg10[%c0_24, %c0_25] : memref<128x128xbf16, #tpu.memory_space<vmem>>, vector<128x128xbf16>
    %cst_26 = arith.constant dense<0.000000e+00> : vector<256x128xf32>
    %34 = tpu.matmul %32, %33, %cst_26 {dimension_numbers = #tpu.dot_dimension_numbers<[1], [0], [0], [1], [0, 0, 1, 1], [], []>} : vector<256x128xbf16>, vector<128x128xbf16>, vector<256x128xf32> -> vector<256x128xf32>
    %35 = tpu.iota {dimensions = array<i32: 0>} : vector<256x128xi32>
    %36 = tpu.iota {dimensions = array<i32: 1>} : vector<256x128xi32>
    %c127_i32 = arith.constant 127 : i32
    %37 = vector.broadcast %c127_i32 : i32 to vector<256x128xi32>
    %38 = arith.andi %35, %37 : vector<256x128xi32>
    %39 = arith.cmpi eq, %38, %36 : vector<256x128xi32>
    %c256_i32 = arith.constant 256 : i32
    %40 = arith.muli %arg0, %c256_i32 : i32
    %41 = vector.broadcast %40 : i32 to vector<256x128xi32>
    %42 = arith.addi %41, %35 : vector<256x128xi32>
    %c384_i32 = arith.constant 384 : i32
    %43 = vector.broadcast %c384_i32 : i32 to vector<256x128xi32>
    %44 = arith.cmpi slt, %42, %43 : vector<256x128xi32>
    %45 = arith.andi %39, %44 : vector<256x128xi1>
    %cst_27 = arith.constant 0.000000e+00 : f32
    %46 = vector.broadcast %cst_27 : f32 to vector<256x128xf32>
    %47 = arith.select %45, %34, %46 : vector<256x128xi1>, vector<256x128xf32>
    %48 = tpu.iota {dimensions = array<i32: 0>} : vector<2x256xi32>
    %49 = tpu.iota {dimensions = array<i32: 1>} : vector<2x256xi32>
    %c128_i32 = arith.constant 128 : i32
    %50 = vector.broadcast %c128_i32 : i32 to vector<2x256xi32>
    %51 = arith.muli %48, %50 : vector<2x256xi32>
    %52 = arith.cmpi sge, %49, %51 : vector<2x256xi32>
    %c1_i32 = arith.constant 1 : i32
    %53 = vector.broadcast %c1_i32 : i32 to vector<2x256xi32>
    %54 = arith.addi %48, %53 : vector<2x256xi32>
    %c128_i32_28 = arith.constant 128 : i32
    %55 = vector.broadcast %c128_i32_28 : i32 to vector<2x256xi32>
    %56 = arith.muli %54, %55 : vector<2x256xi32>
    %57 = arith.cmpi slt, %49, %56 : vector<2x256xi32>
    %58 = arith.andi %52, %57 : vector<2x256xi1>
    %59 = arith.extui %58 : vector<2x256xi1> to vector<2x256xi32>
    %60 = arith.sitofp %59 : vector<2x256xi32> to vector<2x256xf32>
    %cst_29 = arith.constant dense<0.000000e+00> : vector<2x128xf32>
    %61 = tpu.matmul %60, %47, %cst_29 {dimension_numbers = #tpu.dot_dimension_numbers<[1], [0], [0], [1], [0, 0, 1, 1], [], []>} : vector<2x256xf32>, vector<256x128xf32>, vector<2x128xf32> -> vector<2x128xf32>
    %c0_30 = arith.constant 0 : index
    %c0_31 = arith.constant 0 : index
    %62 = vector.load %arg11[%c0_30, %c0_31] : memref<1x128xf32, #tpu.memory_space<vmem>>, vector<1x128xf32>
    %63 = vector.broadcast %62 : vector<1x128xf32> to vector<2x128xf32>
    %64 = arith.addf %61, %63 : vector<2x128xf32>
    %65 = vector.shape_cast %64 : vector<2x128xf32> to vector<1x2x128xf32>
    %c0_32 = arith.constant 0 : index
    %c0_33 = arith.constant 0 : index
    %c0_34 = arith.constant 0 : index
    %66 = vector.load %arg12[%c0_32, %c0_33, %c0_34] : memref<1x2x128xf32, #tpu.memory_space<vmem>>, vector<1x2x128xf32>
    tpu.vector_store %arg12[%c0_32, %c0_33, %c0_34], %65 {strides = array<i32>} : memref<1x2x128xf32, #tpu.memory_space<vmem>>, vector<1x2x128xf32>,
    return
  }
  func.func @transform_0(%arg0: i32) -> (i32, i32) {
    %c0_i32 = arith.constant 0 : i32
    %c0_i32_0 = arith.constant 0 : i32
    return %arg0, %c0_i32 : i32, i32
  }
  func.func @transform_1(%arg0: i32) -> (i32, i32) {
    %c0_i32 = arith.constant 0 : i32
    %c0_i32_0 = arith.constant 0 : i32
    %c0_i32_1 = arith.constant 0 : i32
    return %c0_i32, %c0_i32_0 : i32, i32
  }
  func.func @transform_2(%arg0: i32) -> (i32, i32) {
    %c0_i32 = arith.constant 0 : i32
    %c0_i32_0 = arith.constant 0 : i32
    %c0_i32_1 = arith.constant 0 : i32
    return %c0_i32, %c0_i32_0 : i32, i32
  }
  func.func @transform_3(%arg0: i32) -> (i32, i32) {
    %c0_i32 = arith.constant 0 : i32
    %c0_i32_0 = arith.constant 0 : i32
    %c0_i32_1 = arith.constant 0 : i32
    return %c0_i32, %c0_i32_0 : i32, i32
  }
  func.func @transform_4(%arg0: i32) -> (i32, i32) {
    %c0_i32 = arith.constant 0 : i32
    %c0_i32_0 = arith.constant 0 : i32
    %c0_i32_1 = arith.constant 0 : i32
    return %c0_i32, %c0_i32_0 : i32, i32
  }
  func.func @transform_5(%arg0: i32) -> (i32, i32) {
    %c0_i32 = arith.constant 0 : i32
    %c0_i32_0 = arith.constant 0 : i32
    %c0_i32_1 = arith.constant 0 : i32
    return %c0_i32, %c0_i32_0 : i32, i32
  }
  func.func @transform_6(%arg0: i32) -> (i32, i32) {
    %c0_i32 = arith.constant 0 : i32
    %c0_i32_0 = arith.constant 0 : i32
    %c0_i32_1 = arith.constant 0 : i32
    return %c0_i32, %c0_i32_0 : i32, i32
  }
  func.func @transform_7(%arg0: i32) -> (i32, i32) {
    %c0_i32 = arith.constant 0 : i32
    %c0_i32_0 = arith.constant 0 : i32
    %c0_i32_1 = arith.constant 0 : i32
    return %c0_i32, %c0_i32_0 : i32, i32
  }
  func.func @transform_8(%arg0: i32) -> (i32, i32) {
    %c0_i32 = arith.constant 0 : i32
    %c0_i32_0 = arith.constant 0 : i32
    %c0_i32_1 = arith.constant 0 : i32
    return %c0_i32, %c0_i32_0 : i32, i32
  }
  func.func @transform_9(%arg0: i32) -> (i32, i32) {
    %c0_i32 = arith.constant 0 : i32
    %c0_i32_0 = arith.constant 0 : i32
    %c0_i32_1 = arith.constant 0 : i32
    return %c0_i32, %c0_i32_0 : i32, i32
  }
  func.func @transform_10(%arg0: i32) -> (i32, i32) {
    %c0_i32 = arith.constant 0 : i32
    %c0_i32_0 = arith.constant 0 : i32
    %c0_i32_1 = arith.constant 0 : i32
    return %c0_i32, %c0_i32_0 : i32, i32
  }
  func.func @transform_11(%arg0: i32) -> (i32, i32, i32) {
    %c0_i32 = arith.constant 0 : i32
    %c0_i32_0 = arith.constant 0 : i32
    %c0_i32_1 = arith.constant 0 : i32
    return %arg0, %c0_i32, %c0_i32_0 : i32, i32, i32
  }
}

</mosaic_0001>

<llo_original>
// kernel: tpu_custom_call.1
$region0: #{tpu_custom_call.1}
  #allocation0 [shape = 'u32[]', space=smem, size = 0x4, offset = 0x4, fixed_abs, tag = 'smem constant byte address 0x4 - core index']
  #allocation1 [shape = 'u32[144,128]{1,0:T(1,128)}', space=vmem, size = 0x12000, scoped, tag = 'internal scratch']
  %s0 = inlined_call_operand.hbm [shape: bf16[384,896], index: 0, kind: input, shape index: {}]
  %s1 = inlined_call_operand.hbm [shape: bf16[896,128], index: 1, kind: input, shape index: {}]
  %s2 = inlined_call_operand.vmem [shape: f32[1,128], index: 2, kind: input, shape index: {}]
  %s3 = inlined_call_operand.hbm [shape: bf16[128,128], index: 3, kind: input, shape index: {}]
  %s4 = inlined_call_operand.vmem [shape: f32[1,128], index: 4, kind: input, shape index: {}]
  %s5 = inlined_call_operand.hbm [shape: bf16[128,128], index: 5, kind: input, shape index: {}]
  %s6 = inlined_call_operand.vmem [shape: f32[1,128], index: 6, kind: input, shape index: {}]
  %s7 = inlined_call_operand.hbm [shape: bf16[128,128], index: 7, kind: input, shape index: {}]
  %s8 = inlined_call_operand.vmem [shape: f32[1,128], index: 8, kind: input, shape index: {}]
  %s9 = inlined_call_operand.hbm [shape: bf16[128,128], index: 9, kind: input, shape index: {}]
  %s10 = inlined_call_operand.vmem [shape: f32[1,128], index: 10, kind: input, shape index: {}]
  %s11 = inlined_call_operand.hbm [shape: f32[2,2,128], index: 11, kind: output, shape index: {}]
  %s12 = sld [smem:[#allocation0]]
  $region101: #{tpu_custom_call.1} parent=0
    _
  %s14 = ssub.s32 1, %s12
  %s15 = scalar_select 0, %s14, %s12
  $region1: #{tpu_custom_call.1} parent=0
    #allocation2 [shape = 'u8[917504]{0}', space=vmem, size = 0xe0000, scoped, tag = 'input window, operand 0']
    #allocation3 [shape = 's32[2]{0}', space=sflag, size = 0x8, scoped, tag = 'scoped memory for tpu_custom_call.1']
    #allocation4 [shape = 's32[2]{0}', space=sflag, size = 0x8, scoped, tag = 'scoped memory for tpu_custom_call.1']
    #allocation5 [shape = 'u8[229376]{0}', space=vmem, size = 0x38000, scoped, tag = 'input window, operand 1, single buffered']
    #allocation6 [shape = 's32[1]{0}', space=sflag, size = 0x4, scoped, tag = 'scoped memory for tpu_custom_call.1']
    #allocation7 [shape = 'u8[32768]{0}', space=vmem, size = 0x8000, scoped, tag = 'input window, operand 3, single buffered']
    #allocation8 [shape = 'u8[32768]{0}', space=vmem, size = 0x8000, scoped, tag = 'input window, operand 5, single buffered']
    #allocation9 [shape = 's32[1]{0}', space=sflag, size = 0x4, scoped, tag = 'scoped memory for tpu_custom_call.1']
    #allocation10 [shape = 'u8[32768]{0}', space=vmem, size = 0x8000, scoped, tag = 'input window, operand 7, single buffered']
    #allocation11 [shape = 'u8[32768]{0}', space=vmem, size = 0x8000, scoped, tag = 'input window, operand 9, single buffered']
    #allocation12 [shape = 's32[1]{0}', space=sflag, size = 0x4, scoped, tag = 'scoped memory for tpu_custom_call.1']
    #allocation13 [shape = 'u8[2048]{0}', space=vmem, size = 0x800, scoped, tag = 'output window, operand 0']
    %16 = vsyncpa [#allocation3], 0
    %s17 = scalar_lea.sflag [#allocation3], 1
    %18 = vsyncpa %s17, 0
    %19 = vsyncpa [#allocation6], 0
    %20 = vsyncpa [#allocation9], 0
    %21 = vsyncpa [#allocation12], 0
    %22 = vsyncpa [#allocation4], 0
    %s23 = scalar_lea.sflag [#allocation4], 1
    %24 = vsyncpa %s23, 0
    loop: start=0, step=1, limit=4
    $region2: #{tpu_custom_call.1} parent=1 // loop_pre_header
      _
    $region3: #{tpu_custom_call.1} parent=1 // loop_header
      %s26 = sphi 0, %s30
      %p27 = scmp.ge.s32.totalorder %s26, 4
      %s36 = sphi 0, %s38
      %s39 = sphi 0, %s36
      %s40 = sphi 0, %s39
      %s56 = sphi 0, %s40
      %s60 = sphi 0, %s60
      %s62 = sphi 0, %s60
      %s63 = sphi 0, %s62
      %s77 = sphi 0, %s63
      %s81 = sphi 0, %s81
      %s83 = sphi 0, %s81
      %s84 = sphi 0, %s83
      %s98 = sphi 0, %s84
      %s102 = sphi 0, %s102
      %s104 = sphi 0, %s102
      %s105 = sphi 0, %s104
      %s119 = sphi 0, %s105
      %s123 = sphi 0, %s123
      %s125 = sphi 0, %s123
      %s126 = sphi 0, %s125
      %s140 = sphi 0, %s126
      %s144 = sphi 0, %s144
      %s146 = sphi 0, %s144
      %s147 = sphi 0, %s146
      %s161 = sphi 0, %s147
      %s165 = sphi 0, %s165
      %s167 = sphi 0, %s165
      %s168 = sphi 0, %s167
      %s182 = sphi 0, %s168
      %s186 = sphi 0, %s186
      %s188 = sphi 0, %s186
      %s189 = sphi 0, %s188
      %s203 = sphi 0, %s189
      %s207 = sphi 0, %s207
      %s209 = sphi 0, %s207
      %s210 = sphi 0, %s209
      %s224 = sphi 0, %s210
      %s228 = sphi 0, %s228
      %s230 = sphi 0, %s228
      %s231 = sphi 0, %s230
      %s245 = sphi 0, %s231
      %s249 = sphi 0, %s249
      %s251 = sphi 0, %s249
      %s252 = sphi 0, %s251
      %s266 = sphi 0, %s252
      %s272 = sphi 0, %s274
      %s275 = sphi 0, %s272
      %s276 = sphi 0, %s275
      %s292 = sphi 0, %s276
    $region4: #{tpu_custom_call.1} parent=1 // loop_header_branch
      %29 = sbr.rel (%p27) target = $region8
    $region5: #{tpu_custom_call.1} parent=1 // loop_body
      %s31 = ssub.s32 %s26, 1
      %s32 = ssub.s32 %s26, 2
      %s33 = sadd.s32 %s26, 1
      %s34 = ssub.s32 %s26, %s33
      %p35 = scmp.eq.s32.totalorder %s34, 0
      %s37 = sadd.s32 %s36, 1
      %s38 = scalar_select %p35, %s36, %s37
      %p41 = pneg %p35
      %p42 = scmp.eq.s32.totalorder %s26, 1
      %p43 = por %p41, %p42
      %p44 = scmp.ne.s32.totalorder %s36, %s39
      %p45 = scmp.eq.s32.totalorder %s26, 0
      %p46 = por %p44, %p45
      %p47 = scmp.ne.s32.totalorder %s36, %s39
      %p48 = scmp.eq.s32.totalorder %s31, 1
      %p49 = por %p47, %p48
      %p50 = scmp.ne.s32.totalorder %s39, %s40
      %p51 = scmp.eq.s32.totalorder %s31, 0
      %p52 = por %p50, %p51
      %p53 = scmp.ne.s32.totalorder %s39, %s40
      %p54 = scmp.eq.s32.totalorder %s32, 1
      %p55 = por %p53, %p54
      %p57 = scmp.ne.s32.totalorder %s40, %s56
      %p58 = scmp.eq.s32.totalorder %s32, 0
      %p59 = por %p57, %p58
      %s61 = sadd.s32 %s60, 1
      %p64 = scmp.eq.s32.totalorder %s26, 1
      %p65 = scmp.ne.s32.totalorder %s60, %s62
      %p66 = scmp.eq.s32.totalorder %s26, 0
      %p67 = por %p65, %p66
      %p68 = scmp.ne.s32.totalorder %s60, %s62
      %p69 = scmp.eq.s32.totalorder %s31, 1
      %p70 = por %p68, %p69
      %p71 = scmp.ne.s32.totalorder %s62, %s63
      %p72 = scmp.eq.s32.totalorder %s31, 0
      %p73 = por %p71, %p72
      %p74 = scmp.ne.s32.totalorder %s62, %s63
      %p75 = scmp.eq.s32.totalorder %s32, 1
      %p76 = por %p74, %p75
      %p78 = scmp.ne.s32.totalorder %s63, %s77
      %p79 = scmp.eq.s32.totalorder %s32, 0
      %p80 = por %p78, %p79
      %s82 = sadd.s32 %s81, 1
      %p85 = scmp.eq.s32.totalorder %s26, 1
      %p86 = scmp.ne.s32.totalorder %s81, %s83
      %p87 = scmp.eq.s32.totalorder %s26, 0
      %p88 = por %p86, %p87
      %p89 = scmp.ne.s32.totalorder %s81, %s83
      %p90 = scmp.eq.s32.totalorder %s31, 1
      %p91 = por %p89, %p90
      %p92 = scmp.ne.s32.totalorder %s83, %s84
      %p93 = scmp.eq.s32.totalorder %s31, 0
      %p94 = por %p92, %p93
      %p95 = scmp.ne.s32.totalorder %s83, %s84
      %p96 = scmp.eq.s32.totalorder %s32, 1
      %p97 = por %p95, %p96
      %p99 = scmp.ne.s32.totalorder %s84, %s98
      %p100 = scmp.eq.s32.totalorder %s32, 0
      %p101 = por %p99, %p100
      %s103 = sadd.s32 %s102, 1
      %p106 = scmp.eq.s32.totalorder %s26, 1
      %p107 = scmp.ne.s32.totalorder %s102, %s104
      %p108 = scmp.eq.s32.totalorder %s26, 0
      %p109 = por %p107, %p108
      %p110 = scmp.ne.s32.totalorder %s102, %s104
      %p111 = scmp.eq.s32.totalorder %s31, 1
      %p112 = por %p110, %p111
      %p113 = scmp.ne.s32.totalorder %s104, %s105
      %p114 = scmp.eq.s32.totalorder %s31, 0
      %p115 = por %p113, %p114
      %p116 = scmp.ne.s32.totalorder %s104, %s105
      %p117 = scmp.eq.s32.totalorder %s32, 1
      %p118 = por %p116, %p117
      %p120 = scmp.ne.s32.totalorder %s105, %s119
      %p121 = scmp.eq.s32.totalorder %s32, 0
      %p122 = por %p120, %p121
      %s124 = sadd.s32 %s123, 1
      %p127 = scmp.eq.s32.totalorder %s26, 1
      %p128 = scmp.ne.s32.totalorder %s123, %s125
      %p129 = scmp.eq.s32.totalorder %s26, 0
      %p130 = por %p128, %p129
      %p131 = scmp.ne.s32.totalorder %s123, %s125
      %p132 = scmp.eq.s32.totalorder %s31, 1
      %p133 = por %p131, %p132
      %p134 = scmp.ne.s32.totalorder %s125, %s126
      %p135 = scmp.eq.s32.totalorder %s31, 0
      %p136 = por %p134, %p135
      %p137 = scmp.ne.s32.totalorder %s125, %s126
      %p138 = scmp.eq.s32.totalorder %s32, 1
      %p139 = por %p137, %p138
      %p141 = scmp.ne.s32.totalorder %s126, %s140
      %p142 = scmp.eq.s32.totalorder %s32, 0
      %p143 = por %p141, %p142
      %s145 = sadd.s32 %s144, 1
      %p148 = scmp.eq.s32.totalorder %s26, 1
      %p149 = scmp.ne.s32.totalorder %s144, %s146
      %p150 = scmp.eq.s32.totalorder %s26, 0
      %p151 = por %p149, %p150
      %p152 = scmp.ne.s32.totalorder %s144, %s146
      %p153 = scmp.eq.s32.totalorder %s31, 1
      %p154 = por %p152, %p153
      %p155 = scmp.ne.s32.totalorder %s146, %s147
      %p156 = scmp.eq.s32.totalorder %s31, 0
      %p157 = por %p155, %p156
      %p158 = scmp.ne.s32.totalorder %s146, %s147
      %p159 = scmp.eq.s32.totalorder %s32, 1
      %p160 = por %p158, %p159
      %p162 = scmp.ne.s32.totalorder %s147, %s161
      %p163 = scmp.eq.s32.totalorder %s32, 0
      %p164 = por %p162, %p163
      %s166 = sadd.s32 %s165, 1
      %p169 = scmp.eq.s32.totalorder %s26, 1
      %p170 = scmp.ne.s32.totalorder %s165, %s167
      %p171 = scmp.eq.s32.totalorder %s26, 0
      %p172 = por %p170, %p171
      %p173 = scmp.ne.s32.totalorder %s165, %s167
      %p174 = scmp.eq.s32.totalorder %s31, 1
      %p175 = por %p173, %p174
      %p176 = scmp.ne.s32.totalorder %s167, %s168
      %p177 = scmp.eq.s32.totalorder %s31, 0
      %p178 = por %p176, %p177
      %p179 = scmp.ne.s32.totalorder %s167, %s168
      %p180 = scmp.eq.s32.totalorder %s32, 1
      %p181 = por %p179, %p180
      %p183 = scmp.ne.s32.totalorder %s168, %s182
      %p184 = scmp.eq.s32.totalorder %s32, 0
      %p185 = por %p183, %p184
      %s187 = sadd.s32 %s186, 1
      %p190 = scmp.eq.s32.totalorder %s26, 1
      %p191 = scmp.ne.s32.totalorder %s186, %s188
      %p192 = scmp.eq.s32.totalorder %s26, 0
      %p193 = por %p191, %p192
      %p194 = scmp.ne.s32.totalorder %s186, %s188
      %p195 = scmp.eq.s32.totalorder %s31, 1
      %p196 = por %p194, %p195
      %p197 = scmp.ne.s32.totalorder %s188, %s189
      %p198 = scmp.eq.s32.totalorder %s31, 0
      %p199 = por %p197, %p198
      %p200 = scmp.ne.s32.totalorder %s188, %s189
      %p201 = scmp.eq.s32.totalorder %s32, 1
      %p202 = por %p200, %p201
      %p204 = scmp.ne.s32.totalorder %s189, %s203
      %p205 = scmp.eq.s32.totalorder %s32, 0
      %p206 = por %p204, %p205
      %s208 = sadd.s32 %s207, 1
      %p211 = scmp.eq.s32.totalorder %s26, 1
      %p212 = scmp.ne.s32.totalorder %s207, %s209
      %p213 = scmp.eq.s32.totalorder %s26, 0
      %p214 = por %p212, %p213
      %p215 = scmp.ne.s32.totalorder %s207, %s209
      %p216 = scmp.eq.s32.totalorder %s31, 1
      %p217 = por %p215, %p216
      %p218 = scmp.ne.s32.totalorder %s209, %s210
      %p219 = scmp.eq.s32.totalorder %s31, 0
      %p220 = por %p218, %p219
      %p221 = scmp.ne.s32.totalorder %s209, %s210
      %p222 = scmp.eq.s32.totalorder %s32, 1
      %p223 = por %p221, %p222
      %p225 = scmp.ne.s32.totalorder %s210, %s224
      %p226 = scmp.eq.s32.totalorder %s32, 0
      %p227 = por %p225, %p226
      %s229 = sadd.s32 %s228, 1
      %p232 = scmp.eq.s32.totalorder %s26, 1
      %p233 = scmp.ne.s32.totalorder %s228, %s230
      %p234 = scmp.eq.s32.totalorder %s26, 0
      %p235 = por %p233, %p234
      %p236 = scmp.ne.s32.totalorder %s228, %s230
      %p237 = scmp.eq.s32.totalorder %s31, 1
      %p238 = por %p236, %p237
      %p239 = scmp.ne.s32.totalorder %s230, %s231
      %p240 = scmp.eq.s32.totalorder %s31, 0
      %p241 = por %p239, %p240
      %p242 = scmp.ne.s32.totalorder %s230, %s231
      %p243 = scmp.eq.s32.totalorder %s32, 1
      %p244 = por %p242, %p243
      %p246 = scmp.ne.s32.totalorder %s231, %s245
      %p247 = scmp.eq.s32.totalorder %s32, 0
      %p248 = por %p246, %p247
      %s250 = sadd.s32 %s249, 1
      %p253 = scmp.eq.s32.totalorder %s26, 1
      %p254 = scmp.ne.s32.totalorder %s249, %s251
      %p255 = scmp.eq.s32.totalorder %s26, 0
      %p256 = por %p254, %p255
      %p257 = scmp.ne.s32.totalorder %s249, %s251
      %p258 = scmp.eq.s32.totalorder %s31, 1
      %p259 = por %p257, %p258
      %p260 = scmp.ne.s32.totalorder %s251, %s252
      %p261 = scmp.eq.s32.totalorder %s31, 0
      %p262 = por %p260, %p261
      %p263 = scmp.ne.s32.totalorder %s251, %s252
      %p264 = scmp.eq.s32.totalorder %s32, 1
      %p265 = por %p263, %p264
      %p267 = scmp.ne.s32.totalorder %s252, %s266
      %p268 = scmp.eq.s32.totalorder %s32, 0
      %p269 = por %p267, %p268
      %s270 = ssub.s32 %s26, %s33
      %p271 = scmp.eq.s32.totalorder %s270, 0
      %s273 = sadd.s32 %s272, 1
      %s274 = scalar_select %p271, %s272, %s273
      %p277 = pneg %p271
      %p278 = scmp.eq.s32.totalorder %s26, 1
      %p279 = por %p277, %p278
      %p280 = scmp.ne.s32.totalorder %s272, %s275
      %p281 = scmp.eq.s32.totalorder %s26, 0
      %p282 = por %p280, %p281
      %p283 = scmp.ne.s32.totalorder %s272, %s275
      %p284 = scmp.eq.s32.totalorder %s31, 1
      %p285 = por %p283, %p284
      %p286 = scmp.ne.s32.totalorder %s275, %s276
      %p287 = scmp.eq.s32.totalorder %s31, 0
      %p288 = por %p286, %p287
      %p289 = scmp.ne.s32.totalorder %s275, %s276
      %p290 = scmp.eq.s32.totalorder %s32, 1
      %p291 = por %p289, %p290
      %p293 = scmp.ne.s32.totalorder %s276, %s292
      %p294 = scmp.eq.s32.totalorder %s32, 0
      %p295 = por %p293, %p294
      %p296 = scmp.le.s32.totalorder 1, %s26
      %p297 = scmp.lt.s32.totalorder %s26, 3
      %p298 = pnand %p296, %p297
      %p299 = pneg %p298
      // Predicated region
      $region9: #{tpu_custom_call.1} parent=5 // pred_check
        _
      $region10: #{tpu_custom_call.1} parent=5 // pred_check_branch
        %301 = sbr.rel (%p298) target = $region12
      $region11: #{tpu_custom_call.1} parent=5 // pred_region
        %s302 = ssub.s32 %s26, 1
        // Predicated region
        $region13: #{tpu_custom_call.1} parent=11 // pred_check
          %p303 = pneg %p73
        $region14: #{tpu_custom_call.1} parent=11 // pred_check_branch
          %305 = sbr.rel (%p303) target = $region16
        $region15: #{tpu_custom_call.1} parent=11 // pred_region
          %s307 = ssub.s32 7168, 7168
          %308 = vsyncadd [#allocation6], %s307
          %s309 = sshll.u32 [#allocation5], 4
          %s310 = int_to_ptr.vmem [resolvable:$true] %s309
          %315 = dma.hbm_to_vmem [thread:$0]  %s1, 7168, %s310, [#allocation6], 64, 64, 4
        $region16: #{tpu_custom_call.1} parent=11 // pred_fallthru
          _
        // Predicated region
        $region17: #{tpu_custom_call.1} parent=11 // pred_check
          %p316 = pneg %p94
        $region18: #{tpu_custom_call.1} parent=11 // pred_check_branch
          %318 = sbr.rel (%p316) target = $region20
        $region19: #{tpu_custom_call.1} parent=11 // pred_region
          _
        $region20: #{tpu_custom_call.1} parent=11 // pred_fallthru
          _
        // Predicated region
        $region21: #{tpu_custom_call.1} parent=11 // pred_check
          %p319 = pneg %p115
        $region22: #{tpu_custom_call.1} parent=11 // pred_check_branch
          %321 = sbr.rel (%p319) target = $region24
        $region23: #{tpu_custom_call.1} parent=11 // pred_region
          %s323 = ssub.s32 1024, 1024
          %324 = vsyncadd [#allocation6], %s323
          %s325 = sshll.u32 [#allocation7], 4
          %s326 = int_to_ptr.vmem [resolvable:$true] %s325
          %331 = dma.hbm_to_vmem [thread:$0]  %s3, 1024, %s326, [#allocation6], 64, 64, 4
        $region24: #{tpu_custom_call.1} parent=11 // pred_fallthru
          _
        // Predicated region
        $region25: #{tpu_custom_call.1} parent=11 // pred_check
          %p332 = pneg %p136
        $region26: #{tpu_custom_call.1} parent=11 // pred_check_branch
          %334 = sbr.rel (%p332) target = $region28
        $region27: #{tpu_custom_call.1} parent=11 // pred_region
          _
        $region28: #{tpu_custom_call.1} parent=11 // pred_fallthru
          _
        // Predicated region
        $region29: #{tpu_custom_call.1} parent=11 // pred_check
          %p335 = pneg %p157
        $region30: #{tpu_custom_call.1} parent=11 // pred_check_branch
          %337 = sbr.rel (%p335) target = $region32
        $region31: #{tpu_custom_call.1} parent=11 // pred_region
          %s339 = ssub.s32 1024, 1024
          %340 = vsyncadd [#allocation9], %s339
          %s341 = sshll.u32 [#allocation8], 4
          %s342 = int_to_ptr.vmem [resolvable:$true] %s341
          %347 = dma.hbm_to_vmem [thread:$0]  %s5, 1024, %s342, [#allocation9], 64, 64, 4
        $region32: #{tpu_custom_call.1} parent=11 // pred_fallthru
          _
        // Predicated region
        $region33: #{tpu_custom_call.1} parent=11 // pred_check
          %p348 = pneg %p178
        $region34: #{tpu_custom_call.1} parent=11 // pred_check_branch
          %350 = sbr.rel (%p348) target = $region36
        $region35: #{tpu_custom_call.1} parent=11 // pred_region
          _
        $region36: #{tpu_custom_call.1} parent=11 // pred_fallthru
          _
        // Predicated region
        $region37: #{tpu_custom_call.1} parent=11 // pred_check
          %p351 = pneg %p199
        $region38: #{tpu_custom_call.1} parent=11 // pred_check_branch
          %353 = sbr.rel (%p351) target = $region40
        $region39: #{tpu_custom_call.1} parent=11 // pred_region
          %s355 = ssub.s32 1024, 1024
          %356 = vsyncadd [#allocation9], %s355
          %s357 = sshll.u32 [#allocation10], 4
          %s358 = int_to_ptr.vmem [resolvable:$true] %s357
          %363 = dma.hbm_to_vmem [thread:$0]  %s7, 1024, %s358, [#allocation9], 64, 64, 4
        $region40: #{tpu_custom_call.1} parent=11 // pred_fallthru
          _
        // Predicated region
        $region41: #{tpu_custom_call.1} parent=11 // pred_check
          %p364 = pneg %p220
        $region42: #{tpu_custom_call.1} parent=11 // pred_check_branch
          %366 = sbr.rel (%p364) target = $region44
        $region43: #{tpu_custom_call.1} parent=11 // pred_region
          _
        $region44: #{tpu_custom_call.1} parent=11 // pred_fallthru
          _
        // Predicated region
        $region45: #{tpu_custom_call.1} parent=11 // pred_check
          %p367 = pneg %p241
        $region46: #{tpu_custom_call.1} parent=11 // pred_check_branch
          %369 = sbr.rel (%p367) target = $region48
        $region47: #{tpu_custom_call.1} parent=11 // pred_region
          %s371 = ssub.s32 1024, 1024
          %372 = vsyncadd [#allocation12], %s371
          %s373 = sshll.u32 [#allocation11], 4
          %s374 = int_to_ptr.vmem [resolvable:$true] %s373
          %379 = dma.hbm_to_vmem [thread:$0]  %s9, 1024, %s374, [#allocation12], 64, 64, 4
        $region48: #{tpu_custom_call.1} parent=11 // pred_fallthru
          _
        // Predicated region
        $region49: #{tpu_custom_call.1} parent=11 // pred_check
          %p380 = pneg %p262
        $region50: #{tpu_custom_call.1} parent=11 // pred_check_branch
          %382 = sbr.rel (%p380) target = $region52
        $region51: #{tpu_custom_call.1} parent=11 // pred_region
          _
        $region52: #{tpu_custom_call.1} parent=11 // pred_fallthru
          _
      $region12: #{tpu_custom_call.1} parent=5 // pred_fallthru
        _
      %p383 = scmp.lt.s32.totalorder %s26, 2
      // Predicated region
      $region53: #{tpu_custom_call.1} parent=5 // pred_check
        %p384 = pneg %p383
      $region54: #{tpu_custom_call.1} parent=5 // pred_check_branch
        %386 = sbr.rel (%p384) target = $region56
      $region55: #{tpu_custom_call.1} parent=5 // pred_region
        // Predicated region
        $region57: #{tpu_custom_call.1} parent=55 // pred_check
          %p387 = pneg %p46
        $region58: #{tpu_custom_call.1} parent=55 // pred_check_branch
          %389 = sbr.rel (%p387) target = $region60
        $region59: #{tpu_custom_call.1} parent=55 // pred_region
          %s390 = sand.u32 %s36, 1
          %s391 = scalar_lea.sflag [#allocation3], %s390
          %s392 = sand.u32 %s36, 1
          %s393 = smul.addr %s392, 896
          %s394 = scalar_lea.vmem [#allocation2], %s393
          %s395 = smul.u32 32, %s26
          %s396 = ssub.s32 48, %s395
          %p397 = scmp.lt.s32.totalorder %s396, 32
          %s398 = scalar_select %p397, %s396, 32
          %s399 = smul.u32 64, %s398
          %s400 = smul.u32 %s399, 7
          %s402 = ssub.s32 14336, %s400
          %403 = vsyncadd %s391, %s402
          %p404 = scmp.ne.s32.totalorder 0, %s400
          %s405 = smul.addr %s395, 7
          %s406 = smul.addr %s405, 64
          %s407 = scalar_lea.hbm %s0, %s406
          %s408 = smul.u32 28, %s398
          %s409 = sshll.u32 %s394, 4
          %s410 = int_to_ptr.vmem [resolvable:$true] %s409
          %s411 = sshll.u32 %s408, 4
          %415 = dma.hbm_to_vmem [thread:$0]  (%p404), %s407, %s411, %s410, %s391, 448, 448, 28
        $region60: #{tpu_custom_call.1} parent=55 // pred_fallthru
          _
      $region56: #{tpu_custom_call.1} parent=5 // pred_fallthru
        _
      %p416 = scmp.le.s32.totalorder 1, %s26
      %p417 = scmp.lt.s32.totalorder %s26, 3
      %p418 = pnand %p416, %p417
      %p419 = pneg %p418
      // Predicated region
      $region61: #{tpu_custom_call.1} parent=5 // pred_check
        _
      $region62: #{tpu_custom_call.1} parent=5 // pred_check_branch
        %421 = sbr.rel (%p418) target = $region64
      $region63: #{tpu_custom_call.1} parent=5 // pred_region
        %s422 = ssub.s32 %s26, 1
        %s423 = sand.u32 %s39, 1
        %s424 = scalar_lea.sflag [#allocation3], %s423
        %s425 = sand.u32 %s39, 1
        %s426 = smul.addr %s425, 896
        %s427 = scalar_lea.vmem [#allocation2], %s426
        // Predicated region
        $region65: #{tpu_custom_call.1} parent=63 // pred_check
          %p428 = pneg %p52
        $region66: #{tpu_custom_call.1} parent=63 // pred_check_branch
          %430 = sbr.rel (%p428) target = $region68
        $region67: #{tpu_custom_call.1} parent=63 // pred_region
          %431 = dma.done %s424, 14336
        $region68: #{tpu_custom_call.1} parent=63 // pred_fallthru
          _
        // Predicated region
        $region69: #{tpu_custom_call.1} parent=63 // pred_check
          %p432 = pneg %p73
        $region70: #{tpu_custom_call.1} parent=63 // pred_check_branch
          %434 = sbr.rel (%p432) target = $region72
        $region71: #{tpu_custom_call.1} parent=63 // pred_region
          %435 = dma.done [#allocation6], 7168
        $region72: #{tpu_custom_call.1} parent=63 // pred_fallthru
          _
        // Predicated region
        $region73: #{tpu_custom_call.1} parent=63 // pred_check
          %p436 = pneg %p115
        $region74: #{tpu_custom_call.1} parent=63 // pred_check_branch
          %438 = sbr.rel (%p436) target = $region76
        $region75: #{tpu_custom_call.1} parent=63 // pred_region
          %439 = dma.done [#allocation6], 1024
        $region76: #{tpu_custom_call.1} parent=63 // pred_fallthru
          _
        // Predicated region
        $region77: #{tpu_custom_call.1} parent=63 // pred_check
          %p440 = pneg %p157
        $region78: #{tpu_custom_call.1} parent=63 // pred_check_branch
          %442 = sbr.rel (%p440) target = $region80
        $region79: #{tpu_custom_call.1} parent=63 // pred_region
          %443 = dma.done [#allocation9], 1024
        $region80: #{tpu_custom_call.1} parent=63 // pred_fallthru
          _
        // Predicated region
        $region81: #{tpu_custom_call.1} parent=63 // pred_check
          %p444 = pneg %p199
        $region82: #{tpu_custom_call.1} parent=63 // pred_check_branch
          %446 = sbr.rel (%p444) target = $region84
        $region83: #{tpu_custom_call.1} parent=63 // pred_region
          %447 = dma.done [#allocation9], 1024
        $region84: #{tpu_custom_call.1} parent=63 // pred_fallthru
          _
        // Predicated region
        $region85: #{tpu_custom_call.1} parent=63 // pred_check
          %p448 = pneg %p241
        $region86: #{tpu_custom_call.1} parent=63 // pred_check_branch
          %450 = sbr.rel (%p448) target = $region88
        $region87: #{tpu_custom_call.1} parent=63 // pred_region
          %451 = dma.done [#allocation12], 1024
        $region88: #{tpu_custom_call.1} parent=63 // pred_fallthru
          _
        %s452 = sand.u32 %s39, 1
        %s453 = scalar_lea.sflag [#allocation3], %s452
        %s454 = sand.u32 %s39, 1
        %s455 = smul.addr %s454, 896
        %s456 = scalar_lea.vmem [#allocation2], %s455
        %p457 = pneg %p52
        %p458 = pneg %p49
        %p459 = pneg %p73
        %p460 = pneg %p70
        %p461 = pneg %p94
        %p462 = pneg %p91
        %p463 = pneg %p115
        %p464 = pneg %p112
        %p465 = pneg %p136
        %p466 = pneg %p133
        %p467 = pneg %p157
        %p468 = pneg %p154
        %p469 = pneg %p178
        %p470 = pneg %p175
        %p471 = pneg %p199
        %p472 = pneg %p196
        %p473 = pneg %p220
        %p474 = pneg %p217
        %p475 = pneg %p241
        %p476 = pneg %p238
        %p477 = pneg %p262
        %p478 = pneg %p259
        %p479 = pneg %p288
        %p480 = pneg %p285
        %s481 = sand.u32 %s275, 1
        %s482 = scalar_lea.sflag [#allocation4], %s481
        %s483 = sand.u32 %s275, 1
        %s484 = smul.addr %s483, 2
        %s485 = scalar_lea.vmem [#allocation13], %s484
        %s486 = smul.u32 32, %s31
        %s487 = ssub.s32 48, %s486
        %p488 = scmp.lt.s32.totalorder %s487, 32
        %s489 = scalar_select %p488, %s487, 32
        %s490 = smul.u32 64, %s489
        %s491 = smul.u32 %s490, 7
        %v493 = vld [vmem:[%s427] sm:$0xff]
        %v494 = vld [vmem:[%s427 + $0x8] sm:$0xff]
        %v495 = vld [vmem:[%s427 + $0x10] sm:$0xff]
        %v496 = vld [vmem:[%s427 + $0x18] sm:$0xf]
        %v497 = vld [vmem:[%s427 + $0x1c] sm:$0xff]
        %v498 = vld [vmem:[%s427 + $0x24] sm:$0xff]
        %v499 = vld [vmem:[%s427 + $0x2c] sm:$0xff]
        %v500 = vld [vmem:[%s427 + $0x34] sm:$0xf]
        %v501 = vld [vmem:[%s427 + $0x38] sm:$0xff]
        %v502 = vld [vmem:[%s427 + $0x40] sm:$0xff]
        %v503 = vld [vmem:[%s427 + $0x48] sm:$0xff]
        %v504 = vld [vmem:[%s427 + $0x50] sm:$0xf]
        %v505 = vld [vmem:[%s427 + $0x54] sm:$0xff]
        %v506 = vld [vmem:[%s427 + $0x5c] sm:$0xff]
        %v507 = vld [vmem:[%s427 + $0x64] sm:$0xff]
        %v508 = vld [vmem:[%s427 + $0x6c] sm:$0xf]
        %v509 = vld [vmem:[%s427 + $0x70] sm:$0xff]
        %v510 = vld [vmem:[%s427 + $0x78] sm:$0xff]
        %v511 = vld [vmem:[%s427 + $0x80] sm:$0xff]
        %v512 = vld [vmem:[%s427 + $0x88] sm:$0xf]
        %v513 = vld [vmem:[%s427 + $0x8c] sm:$0xff]
        %v514 = vld [vmem:[%s427 + $0x94] sm:$0xff]
        %v515 = vld [vmem:[%s427 + $0x9c] sm:$0xff]
        %v516 = vld [vmem:[%s427 + $0xa4] sm:$0xf]
        %v517 = vld [vmem:[%s427 + $0xa8] sm:$0xff]
        %v518 = vld [vmem:[%s427 + $0xb0] sm:$0xff]
        %v519 = vld [vmem:[%s427 + $0xb8] sm:$0xff]
        %v520 = vld [vmem:[%s427 + $0xc0] sm:$0xf]
        %v521 = vld [vmem:[%s427 + $0xc4] sm:$0xff]
        %v522 = vld [vmem:[%s427 + $0xcc] sm:$0xff]
        %v523 = vld [vmem:[%s427 + $0xd4] sm:$0xff]
        %v524 = vld [vmem:[%s427 + $0xdc] sm:$0xf]
        %v525 = vld [vmem:[%s427 + $0xe0] sm:$0xff]
        %v526 = vld [vmem:[%s427 + $0xe8] sm:$0xff]
        %v527 = vld [vmem:[%s427 + $0xf0] sm:$0xff]
        %v528 = vld [vmem:[%s427 + $0xf8] sm:$0xf]
        %v529 = vld [vmem:[%s427 + $0xfc] sm:$0xff]
        %v530 = vld [vmem:[%s427 + $0x104] sm:$0xff]
        %v531 = vld [vmem:[%s427 + $0x10c] sm:$0xff]
        %v532 = vld [vmem:[%s427 + $0x114] sm:$0xf]
        %v533 = vld [vmem:[%s427 + $0x118] sm:$0xff]
        %v534 = vld [vmem:[%s427 + $0x120] sm:$0xff]
        %v535 = vld [vmem:[%s427 + $0x128] sm:$0xff]
        %v536 = vld [vmem:[%s427 + $0x130] sm:$0xf]
        %v537 = vld [vmem:[%s427 + $0x134] sm:$0xff]
        %v538 = vld [vmem:[%s427 + $0x13c] sm:$0xff]
        %v539 = vld [vmem:[%s427 + $0x144] sm:$0xff]
        %v540 = vld [vmem:[%s427 + $0x14c] sm:$0xf]
        %v541 = vld [vmem:[%s427 + $0x150] sm:$0xff]
        %v542 = vld [vmem:[%s427 + $0x158] sm:$0xff]
        %v543 = vld [vmem:[%s427 + $0x160] sm:$0xff]
        %v544 = vld [vmem:[%s427 + $0x168] sm:$0xf]
        %v545 = vld [vmem:[%s427 + $0x16c] sm:$0xff]
        %v546 = vld [vmem:[%s427 + $0x174] sm:$0xff]
        %v547 = vld [vmem:[%s427 + $0x17c] sm:$0xff]
        %v548 = vld [vmem:[%s427 + $0x184] sm:$0xf]
        %v549 = vld [vmem:[%s427 + $0x188] sm:$0xff]
        %v550 = vld [vmem:[%s427 + $0x190] sm:$0xff]
        %v551 = vld [vmem:[%s427 + $0x198] sm:$0xff]
        %v552 = vld [vmem:[%s427 + $0x1a0] sm:$0xf]
        %v553 = vld [vmem:[%s427 + $0x1a4] sm:$0xff]
        %v554 = vld [vmem:[%s427 + $0x1ac] sm:$0xff]
        %v555 = vld [vmem:[%s427 + $0x1b4] sm:$0xff]
        %v556 = vld [vmem:[%s427 + $0x1bc] sm:$0xf]
        %v557 = vld [vmem:[%s427 + $0x1c0] sm:$0xff]
        %v558 = vld [vmem:[%s427 + $0x1c8] sm:$0xff]
        %v559 = vld [vmem:[%s427 + $0x1d0] sm:$0xff]
        %v560 = vld [vmem:[%s427 + $0x1d8] sm:$0xf]
        %v561 = vld [vmem:[%s427 + $0x1dc] sm:$0xff]
        %v562 = vld [vmem:[%s427 + $0x1e4] sm:$0xff]
        %v563 = vld [vmem:[%s427 + $0x1ec] sm:$0xff]
        %v564 = vld [vmem:[%s427 + $0x1f4] sm:$0xf]
        %v565 = vld [vmem:[%s427 + $0x1f8] sm:$0xff]
        %v566 = vld [vmem:[%s427 + $0x200] sm:$0xff]
        %v567 = vld [vmem:[%s427 + $0x208] sm:$0xff]
        %v568 = vld [vmem:[%s427 + $0x210] sm:$0xf]
        %v569 = vld [vmem:[%s427 + $0x214] sm:$0xff]
        %v570 = vld [vmem:[%s427 + $0x21c] sm:$0xff]
        %v571 = vld [vmem:[%s427 + $0x224] sm:$0xff]
        %v572 = vld [vmem:[%s427 + $0x22c] sm:$0xf]
        %v573 = vld [vmem:[%s427 + $0x230] sm:$0xff]
        %v574 = vld [vmem:[%s427 + $0x238] sm:$0xff]
        %v575 = vld [vmem:[%s427 + $0x240] sm:$0xff]
        %v576 = vld [vmem:[%s427 + $0x248] sm:$0xf]
        %v577 = vld [vmem:[%s427 + $0x24c] sm:$0xff]
        %v578 = vld [vmem:[%s427 + $0x254] sm:$0xff]
        %v579 = vld [vmem:[%s427 + $0x25c] sm:$0xff]
        %v580 = vld [vmem:[%s427 + $0x264] sm:$0xf]
        %v581 = vld [vmem:[%s427 + $0x268] sm:$0xff]
        %v582 = vld [vmem:[%s427 + $0x270] sm:$0xff]
        %v583 = vld [vmem:[%s427 + $0x278] sm:$0xff]
        %v584 = vld [vmem:[%s427 + $0x280] sm:$0xf]
        %v585 = vld [vmem:[%s427 + $0x284] sm:$0xff]
        %v586 = vld [vmem:[%s427 + $0x28c] sm:$0xff]
        %v587 = vld [vmem:[%s427 + $0x294] sm:$0xff]
        %v588 = vld [vmem:[%s427 + $0x29c] sm:$0xf]
        %v589 = vld [vmem:[%s427 + $0x2a0] sm:$0xff]
        %v590 = vld [vmem:[%s427 + $0x2a8] sm:$0xff]
        %v591 = vld [vmem:[%s427 + $0x2b0] sm:$0xff]
        %v592 = vld [vmem:[%s427 + $0x2b8] sm:$0xf]
        %v593 = vld [vmem:[%s427 + $0x2bc] sm:$0xff]
        %v594 = vld [vmem:[%s427 + $0x2c4] sm:$0xff]
        %v595 = vld [vmem:[%s427 + $0x2cc] sm:$0xff]
        %v596 = vld [vmem:[%s427 + $0x2d4] sm:$0xf]
        %v597 = vld [vmem:[%s427 + $0x2d8] sm:$0xff]
        %v598 = vld [vmem:[%s427 + $0x2e0] sm:$0xff]
        %v599 = vld [vmem:[%s427 + $0x2e8] sm:$0xff]
        %v600 = vld [vmem:[%s427 + $0x2f0] sm:$0xf]
        %v601 = vld [vmem:[%s427 + $0x2f4] sm:$0xff]
        %v602 = vld [vmem:[%s427 + $0x2fc] sm:$0xff]
        %v603 = vld [vmem:[%s427 + $0x304] sm:$0xff]
        %v604 = vld [vmem:[%s427 + $0x30c] sm:$0xf]
        %v605 = vld [vmem:[%s427 + $0x310] sm:$0xff]
        %v606 = vld [vmem:[%s427 + $0x318] sm:$0xff]
        %v607 = vld [vmem:[%s427 + $0x320] sm:$0xff]
        %v608 = vld [vmem:[%s427 + $0x328] sm:$0xf]
        %v609 = vld [vmem:[%s427 + $0x32c] sm:$0xff]
        %v610 = vld [vmem:[%s427 + $0x334] sm:$0xff]
        %v611 = vld [vmem:[%s427 + $0x33c] sm:$0xff]
        %v612 = vld [vmem:[%s427 + $0x344] sm:$0xf]
        %v613 = vld [vmem:[%s427 + $0x348] sm:$0xff]
        %v614 = vld [vmem:[%s427 + $0x350] sm:$0xff]
        %v615 = vld [vmem:[%s427 + $0x358] sm:$0xff]
        %v616 = vld [vmem:[%s427 + $0x360] sm:$0xf]
        %v617 = vld [vmem:[%s427 + $0x364] sm:$0xff]
        %v618 = vld [vmem:[%s427 + $0x36c] sm:$0xff]
        %v619 = vld [vmem:[%s427 + $0x374] sm:$0xff]
        %v620 = vld [vmem:[%s427 + $0x37c] sm:$0xf]
        %v621 = vld [vmem:[#allocation5] sm:$0xf]
        %v622 = vld [vmem:[#allocation5 + $0x4] sm:$0xf]
        %v623 = vld [vmem:[#allocation5 + $0x8] sm:$0xf]
        %v624 = vld [vmem:[#allocation5 + $0xc] sm:$0xf]
        %v625 = vld [vmem:[#allocation5 + $0x10] sm:$0xf]
        %v626 = vld [vmem:[#allocation5 + $0x14] sm:$0xf]
        %v627 = vld [vmem:[#allocation5 + $0x18] sm:$0xf]
        %v628 = vld [vmem:[#allocation5 + $0x1c] sm:$0xf]
        %v629 = vld [vmem:[#allocation5 + $0x20] sm:$0xf]
        %v630 = vld [vmem:[#allocation5 + $0x24] sm:$0xf]
        %v631 = vld [vmem:[#allocation5 + $0x28] sm:$0xf]
        %v632 = vld [vmem:[#allocation5 + $0x2c] sm:$0xf]
        %v633 = vld [vmem:[#allocation5 + $0x30] sm:$0xf]
        %v634 = vld [vmem:[#allocation5 + $0x34] sm:$0xf]
        %v635 = vld [vmem:[#allocation5 + $0x38] sm:$0xf]
        %v636 = vld [vmem:[#allocation5 + $0x3c] sm:$0xf]
        %v637 = vld [vmem:[#allocation5 + $0x40] sm:$0xf]
        %v638 = vld [vmem:[#allocation5 + $0x44] sm:$0xf]
        %v639 = vld [vmem:[#allocation5 + $0x48] sm:$0xf]
        %v640 = vld [vmem:[#allocation5 + $0x4c] sm:$0xf]
        %v641 = vld [vmem:[#allocation5 + $0x50] sm:$0xf]
        %v642 = vld [vmem:[#allocation5 + $0x54] sm:$0xf]
        %v643 = vld [vmem:[#allocation5 + $0x58] sm:$0xf]
        %v644 = vld [vmem:[#allocation5 + $0x5c] sm:$0xf]
        %v645 = vld [vmem:[#allocation5 + $0x60] sm:$0xf]
        %v646 = vld [vmem:[#allocation5 + $0x64] sm:$0xf]
        %v647 = vld [vmem:[#allocation5 + $0x68] sm:$0xf]
        %v648 = vld [vmem:[#allocation5 + $0x6c] sm:$0xf]
        %v649 = vld [vmem:[#allocation5 + $0x70] sm:$0xf]
        %v650 = vld [vmem:[#allocation5 + $0x74] sm:$0xf]
        %v651 = vld [vmem:[#allocation5 + $0x78] sm:$0xf]
        %v652 = vld [vmem:[#allocation5 + $0x7c] sm:$0xf]
        %v653 = vld [vmem:[#allocation5 + $0x80] sm:$0xf]
        %v654 = vld [vmem:[#allocation5 + $0x84] sm:$0xf]
        %v655 = vld [vmem:[#allocation5 + $0x88] sm:$0xf]
        %v656 = vld [vmem:[#allocation5 + $0x8c] sm:$0xf]
        %v657 = vld [vmem:[#allocation5 + $0x90] sm:$0xf]
        %v658 = vld [vmem:[#allocation5 + $0x94] sm:$0xf]
        %v659 = vld [vmem:[#allocation5 + $0x98] sm:$0xf]
        %v660 = vld [vmem:[#allocation5 + $0x9c] sm:$0xf]
        %v661 = vld [vmem:[#allocation5 + $0xa0] sm:$0xf]
        %v662 = vld [vmem:[#allocation5 + $0xa4] sm:$0xf]
        %v663 = vld [vmem:[#allocation5 + $0xa8] sm:$0xf]
        %v664 = vld [vmem:[#allocation5 + $0xac] sm:$0xf]
        %v665 = vld [vmem:[#allocation5 + $0xb0] sm:$0xf]
        %v666 = vld [vmem:[#allocation5 + $0xb4] sm:$0xf]
        %v667 = vld [vmem:[#allocation5 + $0xb8] sm:$0xf]
        %v668 = vld [vmem:[#allocation5 + $0xbc] sm:$0xf]
        %v669 = vld [vmem:[#allocation5 + $0xc0] sm:$0xf]
        %v670 = vld [vmem:[#allocation5 + $0xc4] sm:$0xf]
        %v671 = vld [vmem:[#allocation5 + $0xc8] sm:$0xf]
        %v672 = vld [vmem:[#allocation5 + $0xcc] sm:$0xf]
        %v673 = vld [vmem:[#allocation5 + $0xd0] sm:$0xf]
        %v674 = vld [vmem:[#allocation5 + $0xd4] sm:$0xf]
        %v675 = vld [vmem:[#allocation5 + $0xd8] sm:$0xf]
        %v676 = vld [vmem:[#allocation5 + $0xdc] sm:$0xf]
        %v677 = vld [vmem:[#allocation5 + $0xe0] sm:$0xf]
        %v678 = vld [vmem:[#allocation5 + $0xe4] sm:$0xf]
        %v679 = vld [vmem:[#allocation5 + $0xe8] sm:$0xf]
        %v680 = vld [vmem:[#allocation5 + $0xec] sm:$0xf]
        %v681 = vld [vmem:[#allocation5 + $0xf0] sm:$0xf]
        %v682 = vld [vmem:[#allocation5 + $0xf4] sm:$0xf]
        %v683 = vld [vmem:[#allocation5 + $0xf8] sm:$0xf]
        %v684 = vld [vmem:[#allocation5 + $0xfc] sm:$0xf]
        %v685 = vld [vmem:[#allocation5 + $0x100] sm:$0xf]
        %v686 = vld [vmem:[#allocation5 + $0x104] sm:$0xf]
        %v687 = vld [vmem:[#allocation5 + $0x108] sm:$0xf]
        %v688 = vld [vmem:[#allocation5 + $0x10c] sm:$0xf]
        %v689 = vld [vmem:[#allocation5 + $0x110] sm:$0xf]
        %v690 = vld [vmem:[#allocation5 + $0x114] sm:$0xf]
        %v691 = vld [vmem:[#allocation5 + $0x118] sm:$0xf]
        %v692 = vld [vmem:[#allocation5 + $0x11c] sm:$0xf]
        %v693 = vld [vmem:[#allocation5 + $0x120] sm:$0xf]
        %v694 = vld [vmem:[#allocation5 + $0x124] sm:$0xf]
        %v695 = vld [vmem:[#allocation5 + $0x128] sm:$0xf]
        %v696 = vld [vmem:[#allocation5 + $0x12c] sm:$0xf]
        %v697 = vld [vmem:[#allocation5 + $0x130] sm:$0xf]
        %v698 = vld [vmem:[#allocation5 + $0x134] sm:$0xf]
        %v699 = vld [vmem:[#allocation5 + $0x138] sm:$0xf]
        %v700 = vld [vmem:[#allocation5 + $0x13c] sm:$0xf]
        %v701 = vld [vmem:[#allocation5 + $0x140] sm:$0xf]
        %v702 = vld [vmem:[#allocation5 + $0x144] sm:$0xf]
        %v703 = vld [vmem:[#allocation5 + $0x148] sm:$0xf]
        %v704 = vld [vmem:[#allocation5 + $0x14c] sm:$0xf]
        %v705 = vld [vmem:[#allocation5 + $0x150] sm:$0xf]
        %v706 = vld [vmem:[#allocation5 + $0x154] sm:$0xf]
        %v707 = vld [vmem:[#allocation5 + $0x158] sm:$0xf]
        %v708 = vld [vmem:[#allocation5 + $0x15c] sm:$0xf]
        %v709 = vld [vmem:[#allocation5 + $0x160] sm:$0xf]
        %v710 = vld [vmem:[#allocation5 + $0x164] sm:$0xf]
        %v711 = vld [vmem:[#allocation5 + $0x168] sm:$0xf]
        %v712 = vld [vmem:[#allocation5 + $0x16c] sm:$0xf]
        %v713 = vld [vmem:[#allocation5 + $0x170] sm:$0xf]
        %v714 = vld [vmem:[#allocation5 + $0x174] sm:$0xf]
        %v715 = vld [vmem:[#allocation5 + $0x178] sm:$0xf]
        %v716 = vld [vmem:[#allocation5 + $0x17c] sm:$0xf]
        %v717 = vld [vmem:[#allocation5 + $0x180] sm:$0xf]
        %v718 = vld [vmem:[#allocation5 + $0x184] sm:$0xf]
        %v719 = vld [vmem:[#allocation5 + $0x188] sm:$0xf]
        %v720 = vld [vmem:[#allocation5 + $0x18c] sm:$0xf]
        %v721 = vld [vmem:[#allocation5 + $0x190] sm:$0xf]
        %v722 = vld [vmem:[#allocation5 + $0x194] sm:$0xf]
        %v723 = vld [vmem:[#allocation5 + $0x198] sm:$0xf]
        %v724 = vld [vmem:[#allocation5 + $0x19c] sm:$0xf]
        %v725 = vld [vmem:[#allocation5 + $0x1a0] sm:$0xf]
        %v726 = vld [vmem:[#allocation5 + $0x1a4] sm:$0xf]
        %v727 = vld [vmem:[#allocation5 + $0x1a8] sm:$0xf]
        %v728 = vld [vmem:[#allocation5 + $0x1ac] sm:$0xf]
        %v729 = vld [vmem:[#allocation5 + $0x1b0] sm:$0xf]
        %v730 = vld [vmem:[#allocation5 + $0x1b4] sm:$0xf]
        %v731 = vld [vmem:[#allocation5 + $0x1b8] sm:$0xf]
        %v732 = vld [vmem:[#allocation5 + $0x1bc] sm:$0xf]
        %v733 = vld [vmem:[%s2] sm:$0x1]
        %v735 = vlaneseq
        %v736 = vshrl.u32 %v735, 7
        %v737 = vsub.s32 0, %v736
        %v738 = vrot.slane %v733, %v737
        %v868 = vunpack.c.l.b16 %v493
        %v869 = vunpack.c.h.b16 %v493
        %v870 = vunpack.c.l.b16 %v494
        %v871 = vunpack.c.h.b16 %v494
        %v872 = vunpack.c.l.b16 %v495
        %v873 = vunpack.c.h.b16 %v495
        %v874 = vunpack.c.l.b16 %v496
        %v875 = vunpack.c.l.b16 %v497
        %v876 = vunpack.c.h.b16 %v497
        %v877 = vunpack.c.l.b16 %v498
        %v878 = vunpack.c.h.b16 %v498
        %v879 = vunpack.c.l.b16 %v499
        %v880 = vunpack.c.h.b16 %v499
        %v881 = vunpack.c.l.b16 %v500
        %v882 = vunpack.c.l.b16 %v501
        %v883 = vunpack.c.h.b16 %v501
        %v884 = vunpack.c.l.b16 %v502
        %v885 = vunpack.c.h.b16 %v502
        %v886 = vunpack.c.l.b16 %v503
        %v887 = vunpack.c.h.b16 %v503
        %v888 = vunpack.c.l.b16 %v504
        %v889 = vunpack.c.l.b16 %v505
        %v890 = vunpack.c.h.b16 %v505
        %v891 = vunpack.c.l.b16 %v506
        %v892 = vunpack.c.h.b16 %v506
        %v893 = vunpack.c.l.b16 %v507
        %v894 = vunpack.c.h.b16 %v507
        %v895 = vunpack.c.l.b16 %v508
        %v896 = vunpack.c.l.b16 %v509
        %v897 = vunpack.c.h.b16 %v509
        %v898 = vunpack.c.l.b16 %v510
        %v899 = vunpack.c.h.b16 %v510
        %v900 = vunpack.c.l.b16 %v511
        %v901 = vunpack.c.h.b16 %v511
        %v902 = vunpack.c.l.b16 %v512
        %v903 = vunpack.c.l.b16 %v513
        %v904 = vunpack.c.h.b16 %v513
        %v905 = vunpack.c.l.b16 %v514
        %v906 = vunpack.c.h.b16 %v514
        %v907 = vunpack.c.l.b16 %v515
        %v908 = vunpack.c.h.b16 %v515
        %v909 = vunpack.c.l.b16 %v516
        %v910 = vunpack.c.l.b16 %v517
        %v911 = vunpack.c.h.b16 %v517
        %v912 = vunpack.c.l.b16 %v518
        %v913 = vunpack.c.h.b16 %v518
        %v914 = vunpack.c.l.b16 %v519
        %v915 = vunpack.c.h.b16 %v519
        %v916 = vunpack.c.l.b16 %v520
        %v917 = vunpack.c.l.b16 %v521
        %v918 = vunpack.c.h.b16 %v521
        %v919 = vunpack.c.l.b16 %v522
        %v920 = vunpack.c.h.b16 %v522
        %v921 = vunpack.c.l.b16 %v523
        %v922 = vunpack.c.h.b16 %v523
        %v923 = vunpack.c.l.b16 %v524
        %v924 = vunpack.c.l.b16 %v525
        %v925 = vunpack.c.h.b16 %v525
        %v926 = vunpack.c.l.b16 %v526
        %v927 = vunpack.c.h.b16 %v526
        %v928 = vunpack.c.l.b16 %v527
        %v929 = vunpack.c.h.b16 %v527
        %v930 = vunpack.c.l.b16 %v528
        %v931 = vunpack.c.l.b16 %v529
        %v932 = vunpack.c.h.b16 %v529
        %v933 = vunpack.c.l.b16 %v530
        %v934 = vunpack.c.h.b16 %v530
        %v935 = vunpack.c.l.b16 %v531
        %v936 = vunpack.c.h.b16 %v531
        %v937 = vunpack.c.l.b16 %v532
        %v938 = vunpack.c.l.b16 %v533
        %v939 = vunpack.c.h.b16 %v533
        %v940 = vunpack.c.l.b16 %v534
        %v941 = vunpack.c.h.b16 %v534
        %v942 = vunpack.c.l.b16 %v535
        %v943 = vunpack.c.h.b16 %v535
        %v944 = vunpack.c.l.b16 %v536
        %v945 = vunpack.c.l.b16 %v537
        %v946 = vunpack.c.h.b16 %v537
        %v947 = vunpack.c.l.b16 %v538
        %v948 = vunpack.c.h.b16 %v538
        %v949 = vunpack.c.l.b16 %v539
        %v950 = vunpack.c.h.b16 %v539
        %v951 = vunpack.c.l.b16 %v540
        %v952 = vunpack.c.l.b16 %v541
        %v953 = vunpack.c.h.b16 %v541
        %v954 = vunpack.c.l.b16 %v542
        %v955 = vunpack.c.h.b16 %v542
        %v956 = vunpack.c.l.b16 %v543
        %v957 = vunpack.c.h.b16 %v543
        %v958 = vunpack.c.l.b16 %v544
        %v959 = vunpack.c.l.b16 %v545
        %v960 = vunpack.c.h.b16 %v545
        %v961 = vunpack.c.l.b16 %v546
        %v962 = vunpack.c.h.b16 %v546
        %v963 = vunpack.c.l.b16 %v547
        %v964 = vunpack.c.h.b16 %v547
        %v965 = vunpack.c.l.b16 %v548
        %v966 = vunpack.c.l.b16 %v549
        %v967 = vunpack.c.h.b16 %v549
        %v968 = vunpack.c.l.b16 %v550
        %v969 = vunpack.c.h.b16 %v550
        %v970 = vunpack.c.l.b16 %v551
        %v971 = vunpack.c.h.b16 %v551
        %v972 = vunpack.c.l.b16 %v552
        %v973 = vunpack.c.l.b16 %v553
        %v974 = vunpack.c.h.b16 %v553
        %v975 = vunpack.c.l.b16 %v554
        %v976 = vunpack.c.h.b16 %v554
        %v977 = vunpack.c.l.b16 %v555
        %v978 = vunpack.c.h.b16 %v555
        %v979 = vunpack.c.l.b16 %v556
        %v980 = vunpack.c.l.b16 %v557
        %v981 = vunpack.c.h.b16 %v557
        %v982 = vunpack.c.l.b16 %v558
        %v983 = vunpack.c.h.b16 %v558
        %v984 = vunpack.c.l.b16 %v559
        %v985 = vunpack.c.h.b16 %v559
        %v986 = vunpack.c.l.b16 %v560
        %v987 = vunpack.c.l.b16 %v561
        %v988 = vunpack.c.h.b16 %v561
        %v989 = vunpack.c.l.b16 %v562
        %v990 = vunpack.c.h.b16 %v562
        %v991 = vunpack.c.l.b16 %v563
        %v992 = vunpack.c.h.b16 %v563
        %v993 = vunpack.c.l.b16 %v564
        %v994 = vunpack.c.l.b16 %v565
        %v995 = vunpack.c.h.b16 %v565
        %v996 = vunpack.c.l.b16 %v566
        %v997 = vunpack.c.h.b16 %v566
        %v998 = vunpack.c.l.b16 %v567
        %v999 = vunpack.c.h.b16 %v567
        %v1000 = vunpack.c.l.b16 %v568
        %v1001 = vunpack.c.l.b16 %v569
        %v1002 = vunpack.c.h.b16 %v569
        %v1003 = vunpack.c.l.b16 %v570
        %v1004 = vunpack.c.h.b16 %v570
        %v1005 = vunpack.c.l.b16 %v571
        %v1006 = vunpack.c.h.b16 %v571
        %v1007 = vunpack.c.l.b16 %v572
        %v1008 = vunpack.c.l.b16 %v573
        %v1009 = vunpack.c.h.b16 %v573
        %v1010 = vunpack.c.l.b16 %v574
        %v1011 = vunpack.c.h.b16 %v574
        %v1012 = vunpack.c.l.b16 %v575
        %v1013 = vunpack.c.h.b16 %v575
        %v1014 = vunpack.c.l.b16 %v576
        %v1015 = vunpack.c.l.b16 %v577
        %v1016 = vunpack.c.h.b16 %v577
        %v1017 = vunpack.c.l.b16 %v578
        %v1018 = vunpack.c.h.b16 %v578
        %v1019 = vunpack.c.l.b16 %v579
        %v1020 = vunpack.c.h.b16 %v579
        %v1021 = vunpack.c.l.b16 %v580
        %v1022 = vunpack.c.l.b16 %v581
        %v1023 = vunpack.c.h.b16 %v581
        %v1024 = vunpack.c.l.b16 %v582
        %v1025 = vunpack.c.h.b16 %v582
        %v1026 = vunpack.c.l.b16 %v583
        %v1027 = vunpack.c.h.b16 %v583
        %v1028 = vunpack.c.l.b16 %v584
        %v1029 = vunpack.c.l.b16 %v585
        %v1030 = vunpack.c.h.b16 %v585
        %v1031 = vunpack.c.l.b16 %v586
        %v1032 = vunpack.c.h.b16 %v586
        %v1033 = vunpack.c.l.b16 %v587
        %v1034 = vunpack.c.h.b16 %v587
        %v1035 = vunpack.c.l.b16 %v588
        %v1036 = vunpack.c.l.b16 %v589
        %v1037 = vunpack.c.h.b16 %v589
        %v1038 = vunpack.c.l.b16 %v590
        %v1039 = vunpack.c.h.b16 %v590
        %v1040 = vunpack.c.l.b16 %v591
        %v1041 = vunpack.c.h.b16 %v591
        %v1042 = vunpack.c.l.b16 %v592
        %v1043 = vunpack.c.l.b16 %v593
        %v1044 = vunpack.c.h.b16 %v593
        %v1045 = vunpack.c.l.b16 %v594
        %v1046 = vunpack.c.h.b16 %v594
        %v1047 = vunpack.c.l.b16 %v595
        %v1048 = vunpack.c.h.b16 %v595
        %v1049 = vunpack.c.l.b16 %v596
        %v1050 = vunpack.c.l.b16 %v597
        %v1051 = vunpack.c.h.b16 %v597
        %v1052 = vunpack.c.l.b16 %v598
        %v1053 = vunpack.c.h.b16 %v598
        %v1054 = vunpack.c.l.b16 %v599
        %v1055 = vunpack.c.h.b16 %v599
        %v1056 = vunpack.c.l.b16 %v600
        %v1057 = vunpack.c.l.b16 %v601
        %v1058 = vunpack.c.h.b16 %v601
        %v1059 = vunpack.c.l.b16 %v602
        %v1060 = vunpack.c.h.b16 %v602
        %v1061 = vunpack.c.l.b16 %v603
        %v1062 = vunpack.c.h.b16 %v603
        %v1063 = vunpack.c.l.b16 %v604
        %v1064 = vunpack.c.l.b16 %v605
        %v1065 = vunpack.c.h.b16 %v605
        %v1066 = vunpack.c.l.b16 %v606
        %v1067 = vunpack.c.h.b16 %v606
        %v1068 = vunpack.c.l.b16 %v607
        %v1069 = vunpack.c.h.b16 %v607
        %v1070 = vunpack.c.l.b16 %v608
        %v1071 = vunpack.c.l.b16 %v609
        %v1072 = vunpack.c.h.b16 %v609
        %v1073 = vunpack.c.l.b16 %v610
        %v1074 = vunpack.c.h.b16 %v610
        %v1075 = vunpack.c.l.b16 %v611
        %v1076 = vunpack.c.h.b16 %v611
        %v1077 = vunpack.c.l.b16 %v612
        %v1078 = vunpack.c.l.b16 %v613
        %v1079 = vunpack.c.h.b16 %v613
        %v1080 = vunpack.c.l.b16 %v614
        %v1081 = vunpack.c.h.b16 %v614
        %v1082 = vunpack.c.l.b16 %v615
        %v1083 = vunpack.c.h.b16 %v615
        %v1084 = vunpack.c.l.b16 %v616
        %v1085 = vunpack.c.l.b16 %v617
        %v1086 = vunpack.c.h.b16 %v617
        %v1087 = vunpack.c.l.b16 %v618
        %v1088 = vunpack.c.h.b16 %v618
        %v1089 = vunpack.c.l.b16 %v619
        %v1090 = vunpack.c.h.b16 %v619
        %v1091 = vunpack.c.l.b16 %v620
        %v1092 = vpack.c.b16 %v875, %v868
        %v1093 = vpack.c.b16 %v876, %v869
        %v1094 = vpack.c.b16 %v877, %v870
        %v1095 = vpack.c.b16 %v878, %v871
        %v1096 = vpack.c.b16 %v879, %v872
        %v1097 = vpack.c.b16 %v880, %v873
        %v1098 = vpack.c.b16 %v881, %v874
        %v1099 = vpack.c.b16 %v889, %v882
        %v1100 = vpack.c.b16 %v890, %v883
        %v1101 = vpack.c.b16 %v891, %v884
        %v1102 = vpack.c.b16 %v892, %v885
        %v1103 = vpack.c.b16 %v893, %v886
        %v1104 = vpack.c.b16 %v894, %v887
        %v1105 = vpack.c.b16 %v895, %v888
        %v1106 = vpack.c.b16 %v903, %v896
        %v1107 = vpack.c.b16 %v904, %v897
        %v1108 = vpack.c.b16 %v905, %v898
        %v1109 = vpack.c.b16 %v906, %v899
        %v1110 = vpack.c.b16 %v907, %v900
        %v1111 = vpack.c.b16 %v908, %v901
        %v1112 = vpack.c.b16 %v909, %v902
        %v1113 = vpack.c.b16 %v917, %v910
        %v1114 = vpack.c.b16 %v918, %v911
        %v1115 = vpack.c.b16 %v919, %v912
        %v1116 = vpack.c.b16 %v920, %v913
        %v1117 = vpack.c.b16 %v921, %v914
        %v1118 = vpack.c.b16 %v922, %v915
        %v1119 = vpack.c.b16 %v923, %v916
        %v1120 = vpack.c.b16 %v931, %v924
        %v1121 = vpack.c.b16 %v932, %v925
        %v1122 = vpack.c.b16 %v933, %v926
        %v1123 = vpack.c.b16 %v934, %v927
        %v1124 = vpack.c.b16 %v935, %v928
        %v1125 = vpack.c.b16 %v936, %v929
        %v1126 = vpack.c.b16 %v937, %v930
        %v1127 = vpack.c.b16 %v945, %v938
        %v1128 = vpack.c.b16 %v946, %v939
        %v1129 = vpack.c.b16 %v947, %v940
        %v1130 = vpack.c.b16 %v948, %v941
        %v1131 = vpack.c.b16 %v949, %v942
        %v1132 = vpack.c.b16 %v950, %v943
        %v1133 = vpack.c.b16 %v951, %v944
        %v1134 = vpack.c.b16 %v959, %v952
        %v1135 = vpack.c.b16 %v960, %v953
        %v1136 = vpack.c.b16 %v961, %v954
        %v1137 = vpack.c.b16 %v962, %v955
        %v1138 = vpack.c.b16 %v963, %v956
        %v1139 = vpack.c.b16 %v964, %v957
        %v1140 = vpack.c.b16 %v965, %v958
        %v1141 = vpack.c.b16 %v973, %v966
        %v1142 = vpack.c.b16 %v974, %v967
        %v1143 = vpack.c.b16 %v975, %v968
        %v1144 = vpack.c.b16 %v976, %v969
        %v1145 = vpack.c.b16 %v977, %v970
        %v1146 = vpack.c.b16 %v978, %v971
        %v1147 = vpack.c.b16 %v979, %v972
        %v1148 = vpack.c.b16 %v987, %v980
        %v1149 = vpack.c.b16 %v988, %v981
        %v1150 = vpack.c.b16 %v989, %v982
        %v1151 = vpack.c.b16 %v990, %v983
        %v1152 = vpack.c.b16 %v991, %v984
        %v1153 = vpack.c.b16 %v992, %v985
        %v1154 = vpack.c.b16 %v993, %v986
        %v1155 = vpack.c.b16 %v1001, %v994
        %v1156 = vpack.c.b16 %v1002, %v995
        %v1157 = vpack.c.b16 %v1003, %v996
        %v1158 = vpack.c.b16 %v1004, %v997
        %v1159 = vpack.c.b16 %v1005, %v998
        %v1160 = vpack.c.b16 %v1006, %v999
        %v1161 = vpack.c.b16 %v1007, %v1000
        %v1162 = vpack.c.b16 %v1015, %v1008
        %v1163 = vpack.c.b16 %v1016, %v1009
        %v1164 = vpack.c.b16 %v1017, %v1010
        %v1165 = vpack.c.b16 %v1018, %v1011
        %v1166 = vpack.c.b16 %v1019, %v1012
        %v1167 = vpack.c.b16 %v1020, %v1013
        %v1168 = vpack.c.b16 %v1021, %v1014
        %v1169 = vpack.c.b16 %v1029, %v1022
        %v1170 = vpack.c.b16 %v1030, %v1023
        %v1171 = vpack.c.b16 %v1031, %v1024
        %v1172 = vpack.c.b16 %v1032, %v1025
        %v1173 = vpack.c.b16 %v1033, %v1026
        %v1174 = vpack.c.b16 %v1034, %v1027
        %v1175 = vpack.c.b16 %v1035, %v1028
        %v1176 = vpack.c.b16 %v1043, %v1036
        %v1177 = vpack.c.b16 %v1044, %v1037
        %v1178 = vpack.c.b16 %v1045, %v1038
        %v1179 = vpack.c.b16 %v1046, %v1039
        %v1180 = vpack.c.b16 %v1047, %v1040
        %v1181 = vpack.c.b16 %v1048, %v1041
        %v1182 = vpack.c.b16 %v1049, %v1042
        %v1183 = vpack.c.b16 %v1057, %v1050
        %v1184 = vpack.c.b16 %v1058, %v1051
        %v1185 = vpack.c.b16 %v1059, %v1052
        %v1186 = vpack.c.b16 %v1060, %v1053
        %v1187 = vpack.c.b16 %v1061, %v1054
        %v1188 = vpack.c.b16 %v1062, %v1055
        %v1189 = vpack.c.b16 %v1063, %v1056
        %v1190 = vpack.c.b16 %v1071, %v1064
        %v1191 = vpack.c.b16 %v1072, %v1065
        %v1192 = vpack.c.b16 %v1073, %v1066
        %v1193 = vpack.c.b16 %v1074, %v1067
        %v1194 = vpack.c.b16 %v1075, %v1068
        %v1195 = vpack.c.b16 %v1076, %v1069
        %v1196 = vpack.c.b16 %v1077, %v1070
        %v1197 = vpack.c.b16 %v1085, %v1078
        %v1198 = vpack.c.b16 %v1086, %v1079
        %v1199 = vpack.c.b16 %v1087, %v1080
        %v1200 = vpack.c.b16 %v1088, %v1081
        %v1201 = vpack.c.b16 %v1089, %v1082
        %v1202 = vpack.c.b16 %v1090, %v1083
        %v1203 = vpack.c.b16 %v1091, %v1084
        %v1428 = vunpack.c.l.b16 %v621
        %v1429 = vunpack.c.l.b16 %v622
        %v1430 = vunpack.c.l.b16 %v623
        %v1431 = vunpack.c.l.b16 %v624
        %v1432 = vunpack.c.l.b16 %v625
        %v1433 = vunpack.c.l.b16 %v626
        %v1434 = vunpack.c.l.b16 %v627
        %v1435 = vunpack.c.l.b16 %v628
        %v1436 = vunpack.c.l.b16 %v629
        %v1437 = vunpack.c.l.b16 %v630
        %v1438 = vunpack.c.l.b16 %v631
        %v1439 = vunpack.c.l.b16 %v632
        %v1440 = vunpack.c.l.b16 %v633
        %v1441 = vunpack.c.l.b16 %v634
        %v1442 = vunpack.c.l.b16 %v635
        %v1443 = vunpack.c.l.b16 %v636
        %v1444 = vunpack.c.l.b16 %v637
        %v1445 = vunpack.c.l.b16 %v638
        %v1446 = vunpack.c.l.b16 %v639
        %v1447 = vunpack.c.l.b16 %v640
        %v1448 = vunpack.c.l.b16 %v641
        %v1449 = vunpack.c.l.b16 %v642
        %v1450 = vunpack.c.l.b16 %v643
        %v1451 = vunpack.c.l.b16 %v644
        %v1452 = vunpack.c.l.b16 %v645
        %v1453 = vunpack.c.l.b16 %v646
        %v1454 = vunpack.c.l.b16 %v647
        %v1455 = vunpack.c.l.b16 %v648
        %v1456 = vunpack.c.l.b16 %v649
        %v1457 = vunpack.c.l.b16 %v650
        %v1458 = vunpack.c.l.b16 %v651
        %v1459 = vunpack.c.l.b16 %v652
        %v1460 = vunpack.c.l.b16 %v653
        %v1461 = vunpack.c.l.b16 %v654
        %v1462 = vunpack.c.l.b16 %v655
        %v1463 = vunpack.c.l.b16 %v656
        %v1464 = vunpack.c.l.b16 %v657
        %v1465 = vunpack.c.l.b16 %v658
        %v1466 = vunpack.c.l.b16 %v659
        %v1467 = vunpack.c.l.b16 %v660
        %v1468 = vunpack.c.l.b16 %v661
        %v1469 = vunpack.c.l.b16 %v662
        %v1470 = vunpack.c.l.b16 %v663
        %v1471 = vunpack.c.l.b16 %v664
        %v1472 = vunpack.c.l.b16 %v665
        %v1473 = vunpack.c.l.b16 %v666
        %v1474 = vunpack.c.l.b16 %v667
        %v1475 = vunpack.c.l.b16 %v668
        %v1476 = vunpack.c.l.b16 %v669
        %v1477 = vunpack.c.l.b16 %v670
        %v1478 = vunpack.c.l.b16 %v671
        %v1479 = vunpack.c.l.b16 %v672
        %v1480 = vunpack.c.l.b16 %v673
        %v1481 = vunpack.c.l.b16 %v674
        %v1482 = vunpack.c.l.b16 %v675
        %v1483 = vunpack.c.l.b16 %v676
        %v1484 = vunpack.c.l.b16 %v677
        %v1485 = vunpack.c.l.b16 %v678
        %v1486 = vunpack.c.l.b16 %v679
        %v1487 = vunpack.c.l.b16 %v680
        %v1488 = vunpack.c.l.b16 %v681
        %v1489 = vunpack.c.l.b16 %v682
        %v1490 = vunpack.c.l.b16 %v683
        %v1491 = vunpack.c.l.b16 %v684
        %v1492 = vunpack.c.l.b16 %v685
        %v1493 = vunpack.c.l.b16 %v686
        %v1494 = vunpack.c.l.b16 %v687
        %v1495 = vunpack.c.l.b16 %v688
        %v1496 = vunpack.c.l.b16 %v689
        %v1497 = vunpack.c.l.b16 %v690
        %v1498 = vunpack.c.l.b16 %v691
        %v1499 = vunpack.c.l.b16 %v692
        %v1500 = vunpack.c.l.b16 %v693
        %v1501 = vunpack.c.l.b16 %v694
        %v1502 = vunpack.c.l.b16 %v695
        %v1503 = vunpack.c.l.b16 %v696
        %v1504 = vunpack.c.l.b16 %v697
        %v1505 = vunpack.c.l.b16 %v698
        %v1506 = vunpack.c.l.b16 %v699
        %v1507 = vunpack.c.l.b16 %v700
        %v1508 = vunpack.c.l.b16 %v701
        %v1509 = vunpack.c.l.b16 %v702
        %v1510 = vunpack.c.l.b16 %v703
        %v1511 = vunpack.c.l.b16 %v704
        %v1512 = vunpack.c.l.b16 %v705
        %v1513 = vunpack.c.l.b16 %v706
        %v1514 = vunpack.c.l.b16 %v707
        %v1515 = vunpack.c.l.b16 %v708
        %v1516 = vunpack.c.l.b16 %v709
        %v1517 = vunpack.c.l.b16 %v710
        %v1518 = vunpack.c.l.b16 %v711
        %v1519 = vunpack.c.l.b16 %v712
        %v1520 = vunpack.c.l.b16 %v713
        %v1521 = vunpack.c.l.b16 %v714
        %v1522 = vunpack.c.l.b16 %v715
        %v1523 = vunpack.c.l.b16 %v716
        %v1524 = vunpack.c.l.b16 %v717
        %v1525 = vunpack.c.l.b16 %v718
        %v1526 = vunpack.c.l.b16 %v719
        %v1527 = vunpack.c.l.b16 %v720
        %v1528 = vunpack.c.l.b16 %v721
        %v1529 = vunpack.c.l.b16 %v722
        %v1530 = vunpack.c.l.b16 %v723
        %v1531 = vunpack.c.l.b16 %v724
        %v1532 = vunpack.c.l.b16 %v725
        %v1533 = vunpack.c.l.b16 %v726
        %v1534 = vunpack.c.l.b16 %v727
        %v1535 = vunpack.c.l.b16 %v728
        %v1536 = vunpack.c.l.b16 %v729
        %v1537 = vunpack.c.l.b16 %v730
        %v1538 = vunpack.c.l.b16 %v731
        %v1539 = vunpack.c.l.b16 %v732
        %v1540 = vpack.c.b16 %v1429, %v1428
        %v1541 = vpack.c.b16 %v1431, %v1430
        %v1542 = vpack.c.b16 %v1433, %v1432
        %v1543 = vpack.c.b16 %v1435, %v1434
        %v1544 = vpack.c.b16 %v1437, %v1436
        %v1545 = vpack.c.b16 %v1439, %v1438
        %v1546 = vpack.c.b16 %v1441, %v1440
        %v1547 = vpack.c.b16 %v1443, %v1442
        %v1548 = vpack.c.b16 %v1445, %v1444
        %v1549 = vpack.c.b16 %v1447, %v1446
        %v1550 = vpack.c.b16 %v1449, %v1448
        %v1551 = vpack.c.b16 %v1451, %v1450
        %v1552 = vpack.c.b16 %v1453, %v1452
        %v1553 = vpack.c.b16 %v1455, %v1454
        %v1554 = vpack.c.b16 %v1457, %v1456
        %v1555 = vpack.c.b16 %v1459, %v1458
        %v1556 = vpack.c.b16 %v1461, %v1460
        %v1557 = vpack.c.b16 %v1463, %v1462
        %v1558 = vpack.c.b16 %v1465, %v1464
        %v1559 = vpack.c.b16 %v1467, %v1466
        %v1560 = vpack.c.b16 %v1469, %v1468
        %v1561 = vpack.c.b16 %v1471, %v1470
        %v1562 = vpack.c.b16 %v1473, %v1472
        %v1563 = vpack.c.b16 %v1475, %v1474
        %v1564 = vpack.c.b16 %v1477, %v1476
        %v1565 = vpack.c.b16 %v1479, %v1478
        %v1566 = vpack.c.b16 %v1481, %v1480
        %v1567 = vpack.c.b16 %v1483, %v1482
        %v1568 = vpack.c.b16 %v1485, %v1484
        %v1569 = vpack.c.b16 %v1487, %v1486
        %v1570 = vpack.c.b16 %v1489, %v1488
        %v1571 = vpack.c.b16 %v1491, %v1490
        %v1572 = vpack.c.b16 %v1493, %v1492
        %v1573 = vpack.c.b16 %v1495, %v1494
        %v1574 = vpack.c.b16 %v1497, %v1496
        %v1575 = vpack.c.b16 %v1499, %v1498
        %v1576 = vpack.c.b16 %v1501, %v1500
        %v1577 = vpack.c.b16 %v1503, %v1502
        %v1578 = vpack.c.b16 %v1505, %v1504
        %v1579 = vpack.c.b16 %v1507, %v1506
        %v1580 = vpack.c.b16 %v1509, %v1508
        %v1581 = vpack.c.b16 %v1511, %v1510
        %v1582 = vpack.c.b16 %v1513, %v1512
        %v1583 = vpack.c.b16 %v1515, %v1514
        %v1584 = vpack.c.b16 %v1517, %v1516
        %v1585 = vpack.c.b16 %v1519, %v1518
        %v1586 = vpack.c.b16 %v1521, %v1520
        %v1587 = vpack.c.b16 %v1523, %v1522
        %v1588 = vpack.c.b16 %v1525, %v1524
        %v1589 = vpack.c.b16 %v1527, %v1526
        %v1590 = vpack.c.b16 %v1529, %v1528
        %v1591 = vpack.c.b16 %v1531, %v1530
        %v1592 = vpack.c.b16 %v1533, %v1532
        %v1593 = vpack.c.b16 %v1535, %v1534
        %v1594 = vpack.c.b16 %v1537, %v1536
        %v1595 = vpack.c.b16 %v1539, %v1538
        %1652 = vmatprep.subr.bf16.mxu0 0
        %1653 = vmatpush1.bf16.msra.mxu0 %v1547
        %1654 = vmatprep.subr.bf16.mxu0 0
        %1655 = vmatpush1.bf16.msra.mxu0 %v1546
        %1656 = vmatprep.subr.bf16.mxu0 0
        %1657 = vmatpush1.bf16.msra.mxu0 %v1545
        %1658 = vmatprep.subr.bf16.mxu0 0
        %1659 = vmatpush1.bf16.msra.mxu0 %v1544
        %1660 = vmatprep.subr.bf16.mxu0 0
        %1661 = vmatpush1.bf16.msra.mxu0 %v1543
        %1662 = vmatprep.subr.bf16.mxu0 0
        %1663 = vmatpush1.bf16.msra.mxu0 %v1542
        %1664 = vmatprep.subr.bf16.mxu0 0
        %1665 = vmatpush1.bf16.msra.mxu0 %v1541
        %1666 = vmatprep.subr.bf16.mxu0 0
        %1667 = vmatpush1.bf16.msra.mxu0 %v1540
        %1668 = vmatprep.subr.bf16.mxu0 0
        %1669 = vmatpush2.bf16.msra.mxu0 %v1555
        %1670 = vmatprep.subr.bf16.mxu0 0
        %1671 = vmatpush2.bf16.msra.mxu0 %v1554
        %1672 = vmatprep.subr.bf16.mxu0 0
        %1673 = vmatpush2.bf16.msra.mxu0 %v1553
        %1674 = vmatprep.subr.bf16.mxu0 0
        %1675 = vmatpush2.bf16.msra.mxu0 %v1552
        %1676 = vmatprep.subr.bf16.mxu0 0
        %1677 = vmatpush2.bf16.msra.mxu0 %v1551
        %1678 = vmatprep.subr.bf16.mxu0 0
        %1679 = vmatpush2.bf16.msra.mxu0 %v1550
        %1680 = vmatprep.subr.bf16.mxu0 0
        %1681 = vmatpush2.bf16.msra.mxu0 %v1549
        %1682 = vmatprep.subr.bf16.mxu0 0
        %1683 = vmatpush2.bf16.msra.mxu0 %v1548
        %1684 = vmatprep.mubr.bf16.mxu0 %v1093
        %1685 = vmatmul.mubr.bf16.gmra.mxu0 %v1092
        %v1686 = vpop.f32.mrf.mxu0
        %v1687 = vadd.f32 %v738, %v1686
        %v1688 = vpop.f32.mrf.mxu0
        %v1689 = vpop.f32.mrf.mxu0
        %v1690 = vadd.f32 %v738, %v1689
        %v1691 = vpop.f32.mrf.mxu0
        %1692 = vmatprep.mubr.bf16.mxu0 %v1100
        %1693 = vmatmul.mubr.bf16.gmra.mxu0 %v1099
        %v1694 = vpop.f32.mrf.mxu0
        %v1695 = vadd.f32 %v738, %v1694
        %v1696 = vpop.f32.mrf.mxu0
        %v1697 = vpop.f32.mrf.mxu0
        %v1698 = vadd.f32 %v738, %v1697
        %v1699 = vpop.f32.mrf.mxu0
        %1700 = vmatprep.mubr.bf16.mxu0 %v1107
        %1701 = vmatmul.mubr.bf16.gmra.mxu0 %v1106
        %v1702 = vpop.f32.mrf.mxu0
        %v1703 = vadd.f32 %v738, %v1702
        %v1704 = vpop.f32.mrf.mxu0
        %v1705 = vpop.f32.mrf.mxu0
        %v1706 = vadd.f32 %v738, %v1705
        %v1707 = vpop.f32.mrf.mxu0
        %1708 = vmatprep.mubr.bf16.mxu0 %v1114
        %1709 = vmatmul.mubr.bf16.gmra.mxu0 %v1113
        %v1710 = vpop.f32.mrf.mxu0
        %v1711 = vadd.f32 %v738, %v1710
        %v1712 = vpop.f32.mrf.mxu0
        %v1713 = vpop.f32.mrf.mxu0
        %v1714 = vadd.f32 %v738, %v1713
        %v1715 = vpop.f32.mrf.mxu0
        %1716 = vmatprep.mubr.bf16.mxu0 %v1121
        %1717 = vmatmul.mubr.bf16.gmra.mxu0 %v1120
        %v1718 = vpop.f32.mrf.mxu0
        %v1719 = vadd.f32 %v738, %v1718
        %v1720 = vpop.f32.mrf.mxu0
        %v1721 = vpop.f32.mrf.mxu0
        %v1722 = vadd.f32 %v738, %v1721
        %v1723 = vpop.f32.mrf.mxu0
        %1724 = vmatprep.mubr.bf16.mxu0 %v1128
        %1725 = vmatmul.mubr.bf16.gmra.mxu0 %v1127
        %v1726 = vpop.f32.mrf.mxu0
        %v1727 = vadd.f32 %v738, %v1726
        %v1728 = vpop.f32.mrf.mxu0
        %v1729 = vpop.f32.mrf.mxu0
        %v1730 = vadd.f32 %v738, %v1729
        %v1731 = vpop.f32.mrf.mxu0
        %1732 = vmatprep.mubr.bf16.mxu0 %v1135
        %1733 = vmatmul.mubr.bf16.gmra.mxu0 %v1134
        %v1734 = vpop.f32.mrf.mxu0
        %v1735 = vadd.f32 %v738, %v1734
        %v1736 = vpop.f32.mrf.mxu0
        %v1737 = vpop.f32.mrf.mxu0
        %v1738 = vadd.f32 %v738, %v1737
        %v1739 = vpop.f32.mrf.mxu0
        %1740 = vmatprep.mubr.bf16.mxu0 %v1142
        %1741 = vmatmul.mubr.bf16.gmra.mxu0 %v1141
        %v1742 = vpop.f32.mrf.mxu0
        %v1743 = vadd.f32 %v738, %v1742
        %v1744 = vpop.f32.mrf.mxu0
        %v1745 = vpop.f32.mrf.mxu0
        %v1746 = vadd.f32 %v738, %v1745
        %v1747 = vpop.f32.mrf.mxu0
        %1748 = vmatprep.mubr.bf16.mxu0 %v1149
        %1749 = vmatmul.mubr.bf16.gmra.mxu0 %v1148
        %v1750 = vpop.f32.mrf.mxu0
        %v1751 = vadd.f32 %v738, %v1750
        %v1752 = vpop.f32.mrf.mxu0
        %v1753 = vpop.f32.mrf.mxu0
        %v1754 = vadd.f32 %v738, %v1753
        %v1755 = vpop.f32.mrf.mxu0
        %1756 = vmatprep.mubr.bf16.mxu0 %v1156
        %1757 = vmatmul.mubr.bf16.gmra.mxu0 %v1155
        %v1758 = vpop.f32.mrf.mxu0
        %v1759 = vadd.f32 %v738, %v1758
        %v1760 = vpop.f32.mrf.mxu0
        %v1761 = vpop.f32.mrf.mxu0
        %v1762 = vadd.f32 %v738, %v1761
        %v1763 = vpop.f32.mrf.mxu0
        %1764 = vmatprep.mubr.bf16.mxu0 %v1163
        %1765 = vmatmul.mubr.bf16.gmra.mxu0 %v1162
        %v1766 = vpop.f32.mrf.mxu0
        %v1767 = vadd.f32 %v738, %v1766
        %v1768 = vpop.f32.mrf.mxu0
        %v1769 = vpop.f32.mrf.mxu0
        %v1770 = vadd.f32 %v738, %v1769
        %v1771 = vpop.f32.mrf.mxu0
        %1772 = vmatprep.mubr.bf16.mxu0 %v1170
        %1773 = vmatmul.mubr.bf16.gmra.mxu0 %v1169
        %v1774 = vpop.f32.mrf.mxu0
        %v1775 = vadd.f32 %v738, %v1774
        %v1776 = vpop.f32.mrf.mxu0
        %v1777 = vpop.f32.mrf.mxu0
        %v1778 = vadd.f32 %v738, %v1777
        %v1779 = vpop.f32.mrf.mxu0
        %1780 = vmatprep.mubr.bf16.mxu0 %v1177
        %1781 = vmatmul.mubr.bf16.gmra.mxu0 %v1176
        %v1782 = vpop.f32.mrf.mxu0
        %v1783 = vadd.f32 %v738, %v1782
        %v1784 = vpop.f32.mrf.mxu0
        %v1785 = vpop.f32.mrf.mxu0
        %v1786 = vadd.f32 %v738, %v1785
        %v1787 = vpop.f32.mrf.mxu0
        %1788 = vmatprep.mubr.bf16.mxu0 %v1184
        %1789 = vmatmul.mubr.bf16.gmra.mxu0 %v1183
        %v1790 = vpop.f32.mrf.mxu0
        %v1791 = vadd.f32 %v738, %v1790
        %v1792 = vpop.f32.mrf.mxu0
        %v1793 = vpop.f32.mrf.mxu0
        %v1794 = vadd.f32 %v738, %v1793
        %v1795 = vpop.f32.mrf.mxu0
        %1796 = vmatprep.mubr.bf16.mxu0 %v1191
        %1797 = vmatmul.mubr.bf16.gmra.mxu0 %v1190
        %v1798 = vpop.f32.mrf.mxu0
        %v1799 = vadd.f32 %v738, %v1798
        %v1800 = vpop.f32.mrf.mxu0
        %v1801 = vpop.f32.mrf.mxu0
        %v1802 = vadd.f32 %v738, %v1801
        %v1803 = vpop.f32.mrf.mxu0
        %1804 = vmatprep.mubr.bf16.mxu0 %v1198
        %1805 = vmatmul.mubr.bf16.gmra.mxu0 %v1197
        %v1806 = vpop.f32.mrf.mxu0
        %v1807 = vadd.f32 %v738, %v1806
        %v1808 = vpop.f32.mrf.mxu0
        %v1809 = vpop.f32.mrf.mxu0
        %v1810 = vadd.f32 %v738, %v1809
        %v1811 = vpop.f32.mrf.mxu0
        %1812 = vdwg.mxu0
        %1813 = vmatprep.subr.bf16.mxu0 0
        %1814 = vmatpush1.bf16.msra.mxu0 %v1563
        %1815 = vmatprep.subr.bf16.mxu0 0
        %1816 = vmatpush1.bf16.msra.mxu0 %v1562
        %1817 = vmatprep.subr.bf16.mxu0 0
        %1818 = vmatpush1.bf16.msra.mxu0 %v1561
        %1819 = vmatprep.subr.bf16.mxu0 0
        %1820 = vmatpush1.bf16.msra.mxu0 %v1560
        %1821 = vmatprep.subr.bf16.mxu0 0
        %1822 = vmatpush1.bf16.msra.mxu0 %v1559
        %1823 = vmatprep.subr.bf16.mxu0 0
        %1824 = vmatpush1.bf16.msra.mxu0 %v1558
        %1825 = vmatprep.subr.bf16.mxu0 0
        %1826 = vmatpush1.bf16.msra.mxu0 %v1557
        %1827 = vmatprep.subr.bf16.mxu0 0
        %1828 = vmatpush1.bf16.msra.mxu0 %v1556
        %1829 = vmatprep.subr.bf16.mxu0 0
        %1830 = vmatpush2.bf16.msra.mxu0 %v1571
        %1831 = vmatprep.subr.bf16.mxu0 0
        %1832 = vmatpush2.bf16.msra.mxu0 %v1570
        %1833 = vmatprep.subr.bf16.mxu0 0
        %1834 = vmatpush2.bf16.msra.mxu0 %v1569
        %1835 = vmatprep.subr.bf16.mxu0 0
        %1836 = vmatpush2.bf16.msra.mxu0 %v1568
        %1837 = vmatprep.subr.bf16.mxu0 0
        %1838 = vmatpush2.bf16.msra.mxu0 %v1567
        %1839 = vmatprep.subr.bf16.mxu0 0
        %1840 = vmatpush2.bf16.msra.mxu0 %v1566
        %1841 = vmatprep.subr.bf16.mxu0 0
        %1842 = vmatpush2.bf16.msra.mxu0 %v1565
        %1843 = vmatprep.subr.bf16.mxu0 0
        %1844 = vmatpush2.bf16.msra.mxu0 %v1564
        %1845 = vmatprep.mubr.bf16.mxu0 %v1095
        %1846 = vmatmul.mubr.bf16.gmra.mxu0 %v1094
        %v1847 = vpop.f32.mrf.mxu0
        %v1848 = vadd.f32 %v1687, %v1847
        %v1849 = vpop.f32.mrf.mxu0
        %v1850 = vpop.f32.mrf.mxu0
        %v1851 = vadd.f32 %v1690, %v1850
        %v1852 = vpop.f32.mrf.mxu0
        %1853 = vmatprep.mubr.bf16.mxu0 %v1102
        %1854 = vmatmul.mubr.bf16.gmra.mxu0 %v1101
        %v1855 = vpop.f32.mrf.mxu0
        %v1856 = vadd.f32 %v1695, %v1855
        %v1857 = vpop.f32.mrf.mxu0
        %v1858 = vpop.f32.mrf.mxu0
        %v1859 = vadd.f32 %v1698, %v1858
        %v1860 = vpop.f32.mrf.mxu0
        %1861 = vmatprep.mubr.bf16.mxu0 %v1109
        %1862 = vmatmul.mubr.bf16.gmra.mxu0 %v1108
        %v1863 = vpop.f32.mrf.mxu0
        %v1864 = vadd.f32 %v1703, %v1863
        %v1865 = vpop.f32.mrf.mxu0
        %v1866 = vpop.f32.mrf.mxu0
        %v1867 = vadd.f32 %v1706, %v1866
        %v1868 = vpop.f32.mrf.mxu0
        %1869 = vmatprep.mubr.bf16.mxu0 %v1116
        %1870 = vmatmul.mubr.bf16.gmra.mxu0 %v1115
        %v1871 = vpop.f32.mrf.mxu0
        %v1872 = vadd.f32 %v1711, %v1871
        %v1873 = vpop.f32.mrf.mxu0
        %v1874 = vpop.f32.mrf.mxu0
        %v1875 = vadd.f32 %v1714, %v1874
        %v1876 = vpop.f32.mrf.mxu0
        %1877 = vmatprep.mubr.bf16.mxu0 %v1123
        %1878 = vmatmul.mubr.bf16.gmra.mxu0 %v1122
        %v1879 = vpop.f32.mrf.mxu0
        %v1880 = vadd.f32 %v1719, %v1879
        %v1881 = vpop.f32.mrf.mxu0
        %v1882 = vpop.f32.mrf.mxu0
        %v1883 = vadd.f32 %v1722, %v1882
        %v1884 = vpop.f32.mrf.mxu0
        %1885 = vmatprep.mubr.bf16.mxu0 %v1130
        %1886 = vmatmul.mubr.bf16.gmra.mxu0 %v1129
        %v1887 = vpop.f32.mrf.mxu0
        %v1888 = vadd.f32 %v1727, %v1887
        %v1889 = vpop.f32.mrf.mxu0
        %v1890 = vpop.f32.mrf.mxu0
        %v1891 = vadd.f32 %v1730, %v1890
        %v1892 = vpop.f32.mrf.mxu0
        %1893 = vmatprep.mubr.bf16.mxu0 %v1137
        %1894 = vmatmul.mubr.bf16.gmra.mxu0 %v1136
        %v1895 = vpop.f32.mrf.mxu0
        %v1896 = vadd.f32 %v1735, %v1895
        %v1897 = vpop.f32.mrf.mxu0
        %v1898 = vpop.f32.mrf.mxu0
        %v1899 = vadd.f32 %v1738, %v1898
        %v1900 = vpop.f32.mrf.mxu0
        %1901 = vmatprep.mubr.bf16.mxu0 %v1144
        %1902 = vmatmul.mubr.bf16.gmra.mxu0 %v1143
        %v1903 = vpop.f32.mrf.mxu0
        %v1904 = vadd.f32 %v1743, %v1903
        %v1905 = vpop.f32.mrf.mxu0
        %v1906 = vpop.f32.mrf.mxu0
        %v1907 = vadd.f32 %v1746, %v1906
        %v1908 = vpop.f32.mrf.mxu0
        %1909 = vmatprep.mubr.bf16.mxu0 %v1151
        %1910 = vmatmul.mubr.bf16.gmra.mxu0 %v1150
        %v1911 = vpop.f32.mrf.mxu0
        %v1912 = vadd.f32 %v1751, %v1911
        %v1913 = vpop.f32.mrf.mxu0
        %v1914 = vpop.f32.mrf.mxu0
        %v1915 = vadd.f32 %v1754, %v1914
        %v1916 = vpop.f32.mrf.mxu0
        %1917 = vmatprep.mubr.bf16.mxu0 %v1158
        %1918 = vmatmul.mubr.bf16.gmra.mxu0 %v1157
        %v1919 = vpop.f32.mrf.mxu0
        %v1920 = vadd.f32 %v1759, %v1919
        %v1921 = vpop.f32.mrf.mxu0
        %v1922 = vpop.f32.mrf.mxu0
        %v1923 = vadd.f32 %v1762, %v1922
        %v1924 = vpop.f32.mrf.mxu0
        %1925 = vmatprep.mubr.bf16.mxu0 %v1165
        %1926 = vmatmul.mubr.bf16.gmra.mxu0 %v1164
        %v1927 = vpop.f32.mrf.mxu0
        %v1928 = vadd.f32 %v1767, %v1927
        %v1929 = vpop.f32.mrf.mxu0
        %v1930 = vpop.f32.mrf.mxu0
        %v1931 = vadd.f32 %v1770, %v1930
        %v1932 = vpop.f32.mrf.mxu0
        %1933 = vmatprep.mubr.bf16.mxu0 %v1172
        %1934 = vmatmul.mubr.bf16.gmra.mxu0 %v1171
        %v1935 = vpop.f32.mrf.mxu0
        %v1936 = vadd.f32 %v1775, %v1935
        %v1937 = vpop.f32.mrf.mxu0
        %v1938 = vpop.f32.mrf.mxu0
        %v1939 = vadd.f32 %v1778, %v1938
        %v1940 = vpop.f32.mrf.mxu0
        %1941 = vmatprep.mubr.bf16.mxu0 %v1179
        %1942 = vmatmul.mubr.bf16.gmra.mxu0 %v1178
        %v1943 = vpop.f32.mrf.mxu0
        %v1944 = vadd.f32 %v1783, %v1943
        %v1945 = vpop.f32.mrf.mxu0
        %v1946 = vpop.f32.mrf.mxu0
        %v1947 = vadd.f32 %v1786, %v1946
        %v1948 = vpop.f32.mrf.mxu0
        %1949 = vmatprep.mubr.bf16.mxu0 %v1186
        %1950 = vmatmul.mubr.bf16.gmra.mxu0 %v1185
        %v1951 = vpop.f32.mrf.mxu0
        %v1952 = vadd.f32 %v1791, %v1951
        %v1953 = vpop.f32.mrf.mxu0
        %v1954 = vpop.f32.mrf.mxu0
        %v1955 = vadd.f32 %v1794, %v1954
        %v1956 = vpop.f32.mrf.mxu0
        %1957 = vmatprep.mubr.bf16.mxu0 %v1193
        %1958 = vmatmul.mubr.bf16.gmra.mxu0 %v1192
        %v1959 = vpop.f32.mrf.mxu0
        %v1960 = vadd.f32 %v1799, %v1959
        %v1961 = vpop.f32.mrf.mxu0
        %v1962 = vpop.f32.mrf.mxu0
        %v1963 = vadd.f32 %v1802, %v1962
        %v1964 = vpop.f32.mrf.mxu0
        %1965 = vmatprep.mubr.bf16.mxu0 %v1200
        %1966 = vmatmul.mubr.bf16.gmra.mxu0 %v1199
        %v1967 = vpop.f32.mrf.mxu0
        %v1968 = vadd.f32 %v1807, %v1967
        %v1969 = vpop.f32.mrf.mxu0
        %v1970 = vpop.f32.mrf.mxu0
        %v1971 = vadd.f32 %v1810, %v1970
        %v1972 = vpop.f32.mrf.mxu0
        %1973 = vdwg.mxu0
        %1974 = vmatprep.subr.bf16.mxu0 0
        %1975 = vmatpush1.bf16.msra.mxu0 %v1579
        %1976 = vmatprep.subr.bf16.mxu0 0
        %1977 = vmatpush1.bf16.msra.mxu0 %v1578
        %1978 = vmatprep.subr.bf16.mxu0 0
        %1979 = vmatpush1.bf16.msra.mxu0 %v1577
        %1980 = vmatprep.subr.bf16.mxu0 0
        %1981 = vmatpush1.bf16.msra.mxu0 %v1576
        %1982 = vmatprep.subr.bf16.mxu0 0
        %1983 = vmatpush1.bf16.msra.mxu0 %v1575
        %1984 = vmatprep.subr.bf16.mxu0 0
        %1985 = vmatpush1.bf16.msra.mxu0 %v1574
        %1986 = vmatprep.subr.bf16.mxu0 0
        %1987 = vmatpush1.bf16.msra.mxu0 %v1573
        %1988 = vmatprep.subr.bf16.mxu0 0
        %1989 = vmatpush1.bf16.msra.mxu0 %v1572
        %1990 = vmatprep.subr.bf16.mxu0 0
        %1991 = vmatpush2.bf16.msra.mxu0 %v1587
        %1992 = vmatprep.subr.bf16.mxu0 0
        %1993 = vmatpush2.bf16.msra.mxu0 %v1586
        %1994 = vmatprep.subr.bf16.mxu0 0
        %1995 = vmatpush2.bf16.msra.mxu0 %v1585
        %1996 = vmatprep.subr.bf16.mxu0 0
        %1997 = vmatpush2.bf16.msra.mxu0 %v1584
        %1998 = vmatprep.subr.bf16.mxu0 0
        %1999 = vmatpush2.bf16.msra.mxu0 %v1583
        %2000 = vmatprep.subr.bf16.mxu0 0
        %2001 = vmatpush2.bf16.msra.mxu0 %v1582
        %2002 = vmatprep.subr.bf16.mxu0 0
        %2003 = vmatpush2.bf16.msra.mxu0 %v1581
        %2004 = vmatprep.subr.bf16.mxu0 0
        %2005 = vmatpush2.bf16.msra.mxu0 %v1580
        %2006 = vmatprep.mubr.bf16.mxu0 %v1097
        %2007 = vmatmul.mubr.bf16.gmra.mxu0 %v1096
        %v2008 = vpop.f32.mrf.mxu0
        %v2009 = vadd.f32 %v1848, %v2008
        %v2010 = vpop.f32.mrf.mxu0
        %v2011 = vpop.f32.mrf.mxu0
        %v2012 = vadd.f32 %v1851, %v2011
        %v2013 = vpop.f32.mrf.mxu0
        %2014 = vmatprep.mubr.bf16.mxu0 %v1104
        %2015 = vmatmul.mubr.bf16.gmra.mxu0 %v1103
        %v2016 = vpop.f32.mrf.mxu0
        %v2017 = vadd.f32 %v1856, %v2016
        %v2018 = vpop.f32.mrf.mxu0
        %v2019 = vpop.f32.mrf.mxu0
        %v2020 = vadd.f32 %v1859, %v2019
        %v2021 = vpop.f32.mrf.mxu0
        %2022 = vmatprep.mubr.bf16.mxu0 %v1111
        %2023 = vmatmul.mubr.bf16.gmra.mxu0 %v1110
        %v2024 = vpop.f32.mrf.mxu0
        %v2025 = vadd.f32 %v1864, %v2024
        %v2026 = vpop.f32.mrf.mxu0
        %v2027 = vpop.f32.mrf.mxu0
        %v2028 = vadd.f32 %v1867, %v2027
        %v2029 = vpop.f32.mrf.mxu0
        %2030 = vmatprep.mubr.bf16.mxu0 %v1118
        %2031 = vmatmul.mubr.bf16.gmra.mxu0 %v1117
        %v2032 = vpop.f32.mrf.mxu0
        %v2033 = vadd.f32 %v1872, %v2032
        %v2034 = vpop.f32.mrf.mxu0
        %v2035 = vpop.f32.mrf.mxu0
        %v2036 = vadd.f32 %v1875, %v2035
        %v2037 = vpop.f32.mrf.mxu0
        %2038 = vmatprep.mubr.bf16.mxu0 %v1125
        %2039 = vmatmul.mubr.bf16.gmra.mxu0 %v1124
        %v2040 = vpop.f32.mrf.mxu0
        %v2041 = vadd.f32 %v1880, %v2040
        %v2042 = vpop.f32.mrf.mxu0
        %v2043 = vpop.f32.mrf.mxu0
        %v2044 = vadd.f32 %v1883, %v2043
        %v2045 = vpop.f32.mrf.mxu0
        %2046 = vmatprep.mubr.bf16.mxu0 %v1132
        %2047 = vmatmul.mubr.bf16.gmra.mxu0 %v1131
        %v2048 = vpop.f32.mrf.mxu0
        %v2049 = vadd.f32 %v1888, %v2048
        %v2050 = vpop.f32.mrf.mxu0
        %v2051 = vpop.f32.mrf.mxu0
        %v2052 = vadd.f32 %v1891, %v2051
        %v2053 = vpop.f32.mrf.mxu0
        %2054 = vmatprep.mubr.bf16.mxu0 %v1139
        %2055 = vmatmul.mubr.bf16.gmra.mxu0 %v1138
        %v2056 = vpop.f32.mrf.mxu0
        %v2057 = vadd.f32 %v1896, %v2056
        %v2058 = vpop.f32.mrf.mxu0
        %v2059 = vpop.f32.mrf.mxu0
        %v2060 = vadd.f32 %v1899, %v2059
        %v2061 = vpop.f32.mrf.mxu0
        %2062 = vmatprep.mubr.bf16.mxu0 %v1146
        %2063 = vmatmul.mubr.bf16.gmra.mxu0 %v1145
        %v2064 = vpop.f32.mrf.mxu0
        %v2065 = vadd.f32 %v1904, %v2064
        %v2066 = vpop.f32.mrf.mxu0
        %v2067 = vpop.f32.mrf.mxu0
        %v2068 = vadd.f32 %v1907, %v2067
        %v2069 = vpop.f32.mrf.mxu0
        %2070 = vmatprep.mubr.bf16.mxu0 %v1153
        %2071 = vmatmul.mubr.bf16.gmra.mxu0 %v1152
        %v2072 = vpop.f32.mrf.mxu0
        %v2073 = vadd.f32 %v1912, %v2072
        %v2074 = vpop.f32.mrf.mxu0
        %v2075 = vpop.f32.mrf.mxu0
        %v2076 = vadd.f32 %v1915, %v2075
        %v2077 = vpop.f32.mrf.mxu0
        %2078 = vmatprep.mubr.bf16.mxu0 %v1160
        %2079 = vmatmul.mubr.bf16.gmra.mxu0 %v1159
        %v2080 = vpop.f32.mrf.mxu0
        %v2081 = vadd.f32 %v1920, %v2080
        %v2082 = vpop.f32.mrf.mxu0
        %v2083 = vpop.f32.mrf.mxu0
        %v2084 = vadd.f32 %v1923, %v2083
        %v2085 = vpop.f32.mrf.mxu0
        %2086 = vmatprep.mubr.bf16.mxu0 %v1167
        %2087 = vmatmul.mubr.bf16.gmra.mxu0 %v1166
        %v2088 = vpop.f32.mrf.mxu0
        %v2089 = vadd.f32 %v1928, %v2088
        %v2090 = vpop.f32.mrf.mxu0
        %v2091 = vpop.f32.mrf.mxu0
        %v2092 = vadd.f32 %v1931, %v2091
        %v2093 = vpop.f32.mrf.mxu0
        %2094 = vmatprep.mubr.bf16.mxu0 %v1174
        %2095 = vmatmul.mubr.bf16.gmra.mxu0 %v1173
        %v2096 = vpop.f32.mrf.mxu0
        %v2097 = vadd.f32 %v1936, %v2096
        %v2098 = vpop.f32.mrf.mxu0
        %v2099 = vpop.f32.mrf.mxu0
        %v2100 = vadd.f32 %v1939, %v2099
        %v2101 = vpop.f32.mrf.mxu0
        %2102 = vmatprep.mubr.bf16.mxu0 %v1181
        %2103 = vmatmul.mubr.bf16.gmra.mxu0 %v1180
        %v2104 = vpop.f32.mrf.mxu0
        %v2105 = vadd.f32 %v1944, %v2104
        %v2106 = vpop.f32.mrf.mxu0
        %v2107 = vpop.f32.mrf.mxu0
        %v2108 = vadd.f32 %v1947, %v2107
        %v2109 = vpop.f32.mrf.mxu0
        %2110 = vmatprep.mubr.bf16.mxu0 %v1188
        %2111 = vmatmul.mubr.bf16.gmra.mxu0 %v1187
        %v2112 = vpop.f32.mrf.mxu0
        %v2113 = vadd.f32 %v1952, %v2112
        %v2114 = vpop.f32.mrf.mxu0
        %v2115 = vpop.f32.mrf.mxu0
        %v2116 = vadd.f32 %v1955, %v2115
        %v2117 = vpop.f32.mrf.mxu0
        %2118 = vmatprep.mubr.bf16.mxu0 %v1195
        %2119 = vmatmul.mubr.bf16.gmra.mxu0 %v1194
        %v2120 = vpop.f32.mrf.mxu0
        %v2121 = vadd.f32 %v1960, %v2120
        %v2122 = vpop.f32.mrf.mxu0
        %v2123 = vpop.f32.mrf.mxu0
        %v2124 = vadd.f32 %v1963, %v2123
        %v2125 = vpop.f32.mrf.mxu0
        %2126 = vmatprep.mubr.bf16.mxu0 %v1202
        %2127 = vmatmul.mubr.bf16.gmra.mxu0 %v1201
        %v2128 = vpop.f32.mrf.mxu0
        %v2129 = vadd.f32 %v1968, %v2128
        %v2130 = vpop.f32.mrf.mxu0
        %v2131 = vpop.f32.mrf.mxu0
        %v2132 = vadd.f32 %v1971, %v2131
        %v2133 = vpop.f32.mrf.mxu0
        %2134 = vdwg.mxu0
        %2135 = vmatprep.subr.bf16.mxu0 0
        %2136 = vmatpush1.bf16.msra.mxu0 %v1595
        %2137 = vmatprep.subr.bf16.mxu0 0
        %2138 = vmatpush1.bf16.msra.mxu0 %v1594
        %2139 = vmatprep.subr.bf16.mxu0 0
        %2140 = vmatpush1.bf16.msra.mxu0 %v1593
        %2141 = vmatprep.subr.bf16.mxu0 0
        %2142 = vmatpush1.bf16.msra.mxu0 %v1592
        %2143 = vmatprep.subr.bf16.mxu0 0
        %2144 = vmatpush1.bf16.msra.mxu0 %v1591
        %2145 = vmatprep.subr.bf16.mxu0 0
        %2146 = vmatpush1.bf16.msra.mxu0 %v1590
        %2147 = vmatprep.subr.bf16.mxu0 0
        %2148 = vmatpush1.bf16.msra.mxu0 %v1589
        %2149 = vmatprep.subr.bf16.mxu0 0
        %2150 = vmatpush1.bf16.msra.mxu0 %v1588
        %2151 = vmatprep.subr.bf16.mxu0 0
        %2152 = vmatpush2.bf16.msra.mxu0 0
        %2153 = vmatprep.subr.bf16.mxu0 0
        %2154 = vmatpush2.bf16.msra.mxu0 0
        %2155 = vmatprep.subr.bf16.mxu0 0
        %2156 = vmatpush2.bf16.msra.mxu0 0
        %2157 = vmatprep.subr.bf16.mxu0 0
        %2158 = vmatpush2.bf16.msra.mxu0 0
        %2159 = vmatprep.subr.bf16.mxu0 0
        %2160 = vmatpush2.bf16.msra.mxu0 0
        %2161 = vmatprep.subr.bf16.mxu0 0
        %2162 = vmatpush2.bf16.msra.mxu0 0
        %2163 = vmatprep.subr.bf16.mxu0 0
        %2164 = vmatpush2.bf16.msra.mxu0 0
        %2165 = vmatprep.subr.bf16.mxu0 0
        %2166 = vmatpush2.bf16.msra.mxu0 0
        %2167 = vmatprep.mubr.bf16.mxu0 0
        %2168 = vmatmul.mubr.bf16.gmra.mxu0 %v1098
        %v2169 = vpop.f32.mrf.mxu0
        %v2170 = vadd.f32 %v2009, %v2169
        %v2171 = vpop.f32.mrf.mxu0
        %v2172 = vpop.f32.mrf.mxu0
        %v2173 = vadd.f32 %v2012, %v2172
        %v2174 = vpop.f32.mrf.mxu0
        %2175 = vmatprep.mubr.bf16.mxu0 0
        %2176 = vmatmul.mubr.bf16.gmra.mxu0 %v1105
        %v2177 = vpop.f32.mrf.mxu0
        %v2178 = vadd.f32 %v2017, %v2177
        %v2179 = vpop.f32.mrf.mxu0
        %v2180 = vpop.f32.mrf.mxu0
        %v2181 = vadd.f32 %v2020, %v2180
        %v2182 = vpop.f32.mrf.mxu0
        %2183 = vmatprep.mubr.bf16.mxu0 0
        %2184 = vmatmul.mubr.bf16.gmra.mxu0 %v1112
        %v2185 = vpop.f32.mrf.mxu0
        %v2186 = vadd.f32 %v2025, %v2185
        %v2187 = vpop.f32.mrf.mxu0
        %v2188 = vpop.f32.mrf.mxu0
        %v2189 = vadd.f32 %v2028, %v2188
        %v2190 = vpop.f32.mrf.mxu0
        %2191 = vmatprep.mubr.bf16.mxu0 0
        %2192 = vmatmul.mubr.bf16.gmra.mxu0 %v1119
        %v2193 = vpop.f32.mrf.mxu0
        %v2194 = vadd.f32 %v2033, %v2193
        %v2195 = vpop.f32.mrf.mxu0
        %v2196 = vpop.f32.mrf.mxu0
        %v2197 = vadd.f32 %v2036, %v2196
        %v2198 = vpop.f32.mrf.mxu0
        %2199 = vmatprep.mubr.bf16.mxu0 0
        %2200 = vmatmul.mubr.bf16.gmra.mxu0 %v1126
        %v2201 = vpop.f32.mrf.mxu0
        %v2202 = vadd.f32 %v2041, %v2201
        %v2203 = vpop.f32.mrf.mxu0
        %v2204 = vpop.f32.mrf.mxu0
        %v2205 = vadd.f32 %v2044, %v2204
        %v2206 = vpop.f32.mrf.mxu0
        %2207 = vmatprep.mubr.bf16.mxu0 0
        %2208 = vmatmul.mubr.bf16.gmra.mxu0 %v1133
        %v2209 = vpop.f32.mrf.mxu0
        %v2210 = vadd.f32 %v2049, %v2209
        %v2211 = vpop.f32.mrf.mxu0
        %v2212 = vpop.f32.mrf.mxu0
        %v2213 = vadd.f32 %v2052, %v2212
        %v2214 = vpop.f32.mrf.mxu0
        %2215 = vmatprep.mubr.bf16.mxu0 0
        %2216 = vmatmul.mubr.bf16.gmra.mxu0 %v1140
        %v2217 = vpop.f32.mrf.mxu0
        %v2218 = vadd.f32 %v2057, %v2217
        %v2219 = vpop.f32.mrf.mxu0
        %v2220 = vpop.f32.mrf.mxu0
        %v2221 = vadd.f32 %v2060, %v2220
        %v2222 = vpop.f32.mrf.mxu0
        %2223 = vmatprep.mubr.bf16.mxu0 0
        %2224 = vmatmul.mubr.bf16.gmra.mxu0 %v1147
        %v2225 = vpop.f32.mrf.mxu0
        %v2226 = vadd.f32 %v2065, %v2225
        %v2227 = vpop.f32.mrf.mxu0
        %v2228 = vpop.f32.mrf.mxu0
        %v2229 = vadd.f32 %v2068, %v2228
        %v2230 = vpop.f32.mrf.mxu0
        %2231 = vmatprep.mubr.bf16.mxu0 0
        %2232 = vmatmul.mubr.bf16.gmra.mxu0 %v1154
        %v2233 = vpop.f32.mrf.mxu0
        %v2234 = vadd.f32 %v2073, %v2233
        %v2235 = vpop.f32.mrf.mxu0
        %v2236 = vpop.f32.mrf.mxu0
        %v2237 = vadd.f32 %v2076, %v2236
        %v2238 = vpop.f32.mrf.mxu0
        %2239 = vmatprep.mubr.bf16.mxu0 0
        %2240 = vmatmul.mubr.bf16.gmra.mxu0 %v1161
        %v2241 = vpop.f32.mrf.mxu0
        %v2242 = vadd.f32 %v2081, %v2241
        %v2243 = vpop.f32.mrf.mxu0
        %v2244 = vpop.f32.mrf.mxu0
        %v2245 = vadd.f32 %v2084, %v2244
        %v2246 = vpop.f32.mrf.mxu0
        %2247 = vmatprep.mubr.bf16.mxu0 0
        %2248 = vmatmul.mubr.bf16.gmra.mxu0 %v1168
        %v2249 = vpop.f32.mrf.mxu0
        %v2250 = vadd.f32 %v2089, %v2249
        %v2251 = vpop.f32.mrf.mxu0
        %v2252 = vpop.f32.mrf.mxu0
        %v2253 = vadd.f32 %v2092, %v2252
        %v2254 = vpop.f32.mrf.mxu0
        %2255 = vmatprep.mubr.bf16.mxu0 0
        %2256 = vmatmul.mubr.bf16.gmra.mxu0 %v1175
        %v2257 = vpop.f32.mrf.mxu0
        %v2258 = vadd.f32 %v2097, %v2257
        %v2259 = vpop.f32.mrf.mxu0
        %v2260 = vpop.f32.mrf.mxu0
        %v2261 = vadd.f32 %v2100, %v2260
        %v2262 = vpop.f32.mrf.mxu0
        %2263 = vmatprep.mubr.bf16.mxu0 0
        %2264 = vmatmul.mubr.bf16.gmra.mxu0 %v1182
        %v2265 = vpop.f32.mrf.mxu0
        %v2266 = vadd.f32 %v2105, %v2265
        %v2267 = vpop.f32.mrf.mxu0
        %v2268 = vpop.f32.mrf.mxu0
        %v2269 = vadd.f32 %v2108, %v2268
        %v2270 = vpop.f32.mrf.mxu0
        %2271 = vmatprep.mubr.bf16.mxu0 0
        %2272 = vmatmul.mubr.bf16.gmra.mxu0 %v1189
        %v2273 = vpop.f32.mrf.mxu0
        %v2274 = vadd.f32 %v2113, %v2273
        %v2275 = vpop.f32.mrf.mxu0
        %v2276 = vpop.f32.mrf.mxu0
        %v2277 = vadd.f32 %v2116, %v2276
        %v2278 = vpop.f32.mrf.mxu0
        %2279 = vmatprep.mubr.bf16.mxu0 0
        %2280 = vmatmul.mubr.bf16.gmra.mxu0 %v1196
        %v2281 = vpop.f32.mrf.mxu0
        %v2282 = vadd.f32 %v2121, %v2281
        %v2283 = vpop.f32.mrf.mxu0
        %v2284 = vpop.f32.mrf.mxu0
        %v2285 = vadd.f32 %v2124, %v2284
        %v2286 = vpop.f32.mrf.mxu0
        %2287 = vmatprep.mubr.bf16.mxu0 0
        %2288 = vmatmul.mubr.bf16.gmra.mxu0 %v1203
        %v2289 = vpop.f32.mrf.mxu0
        %v2290 = vadd.f32 %v2129, %v2289
        %v2291 = vpop.f32.mrf.mxu0
        %v2292 = vpop.f32.mrf.mxu0
        %v2293 = vadd.f32 %v2132, %v2292
        %v2294 = vpop.f32.mrf.mxu0
        %2295 = vdwg.mxu0
        %v2296 = vmax.f32 %v2170, 0.0
        %v2297 = vmax.f32 %v2173, 0.0
        %v2298 = vmax.f32 %v2178, 0.0
        %v2299 = vmax.f32 %v2181, 0.0
        %v2300 = vmax.f32 %v2186, 0.0
        %v2301 = vmax.f32 %v2189, 0.0
        %v2302 = vmax.f32 %v2194, 0.0
        %v2303 = vmax.f32 %v2197, 0.0
        %v2304 = vmax.f32 %v2202, 0.0
        %v2305 = vmax.f32 %v2205, 0.0
        %v2306 = vmax.f32 %v2210, 0.0
        %v2307 = vmax.f32 %v2213, 0.0
        %v2308 = vmax.f32 %v2218, 0.0
        %v2309 = vmax.f32 %v2221, 0.0
        %v2310 = vmax.f32 %v2226, 0.0
        %v2311 = vmax.f32 %v2229, 0.0
        %v2312 = vmax.f32 %v2234, 0.0
        %v2313 = vmax.f32 %v2237, 0.0
        %v2314 = vmax.f32 %v2242, 0.0
        %v2315 = vmax.f32 %v2245, 0.0
        %v2316 = vmax.f32 %v2250, 0.0
        %v2317 = vmax.f32 %v2253, 0.0
        %v2318 = vmax.f32 %v2258, 0.0
        %v2319 = vmax.f32 %v2261, 0.0
        %v2320 = vmax.f32 %v2266, 0.0
        %v2321 = vmax.f32 %v2269, 0.0
        %v2322 = vmax.f32 %v2274, 0.0
        %v2323 = vmax.f32 %v2277, 0.0
        %v2324 = vmax.f32 %v2282, 0.0
        %v2325 = vmax.f32 %v2285, 0.0
        %v2326 = vmax.f32 %v2290, 0.0
        %v2327 = vmax.f32 %v2293, 0.0
        %v2328 = vpack.c.bf16 %v2297, %v2296
        %v2329 = vpack.c.bf16 %v2299, %v2298
        %v2330 = vpack.c.bf16 %v2301, %v2300
        %v2331 = vpack.c.bf16 %v2303, %v2302
        %v2332 = vpack.c.bf16 %v2305, %v2304
        %v2333 = vpack.c.bf16 %v2307, %v2306
        %v2334 = vpack.c.bf16 %v2309, %v2308
        %v2335 = vpack.c.bf16 %v2311, %v2310
        %v2336 = vpack.c.bf16 %v2313, %v2312
        %v2337 = vpack.c.bf16 %v2315, %v2314
        %v2338 = vpack.c.bf16 %v2317, %v2316
        %v2339 = vpack.c.bf16 %v2319, %v2318
        %v2340 = vpack.c.bf16 %v2321, %v2320
        %v2341 = vpack.c.bf16 %v2323, %v2322
        %v2342 = vpack.c.bf16 %v2325, %v2324
        %v2343 = vpack.c.bf16 %v2327, %v2326
        %v2344 = vld [vmem:[#allocation7] sm:$0xf]
        %v2345 = vld [vmem:[#allocation7 + $0x4] sm:$0xf]
        %v2346 = vld [vmem:[#allocation7 + $0x8] sm:$0xf]
        %v2347 = vld [vmem:[#allocation7 + $0xc] sm:$0xf]
        %v2348 = vld [vmem:[#allocation7 + $0x10] sm:$0xf]
        %v2349 = vld [vmem:[#allocation7 + $0x14] sm:$0xf]
        %v2350 = vld [vmem:[#allocation7 + $0x18] sm:$0xf]
        %v2351 = vld [vmem:[#allocation7 + $0x1c] sm:$0xf]
        %v2352 = vld [vmem:[#allocation7 + $0x20] sm:$0xf]
        %v2353 = vld [vmem:[#allocation7 + $0x24] sm:$0xf]
        %v2354 = vld [vmem:[#allocation7 + $0x28] sm:$0xf]
        %v2355 = vld [vmem:[#allocation7 + $0x2c] sm:$0xf]
        %v2356 = vld [vmem:[#allocation7 + $0x30] sm:$0xf]
        %v2357 = vld [vmem:[#allocation7 + $0x34] sm:$0xf]
        %v2358 = vld [vmem:[#allocation7 + $0x38] sm:$0xf]
        %v2359 = vld [vmem:[#allocation7 + $0x3c] sm:$0xf]
        %v2360 = vld [vmem:[%s4] sm:$0x1]
        %v2362 = vlaneseq
        %v2363 = vshrl.u32 %v2362, 7
        %v2364 = vsub.s32 0, %v2363
        %v2365 = vrot.slane %v2360, %v2364
        %v2383 = vunpack.c.l.b16 %v2344
        %v2384 = vunpack.c.l.b16 %v2345
        %v2385 = vunpack.c.l.b16 %v2346
        %v2386 = vunpack.c.l.b16 %v2347
        %v2387 = vunpack.c.l.b16 %v2348
        %v2388 = vunpack.c.l.b16 %v2349
        %v2389 = vunpack.c.l.b16 %v2350
        %v2390 = vunpack.c.l.b16 %v2351
        %v2391 = vunpack.c.l.b16 %v2352
        %v2392 = vunpack.c.l.b16 %v2353
        %v2393 = vunpack.c.l.b16 %v2354
        %v2394 = vunpack.c.l.b16 %v2355
        %v2395 = vunpack.c.l.b16 %v2356
        %v2396 = vunpack.c.l.b16 %v2357
        %v2397 = vunpack.c.l.b16 %v2358
        %v2398 = vunpack.c.l.b16 %v2359
        %v2399 = vpack.c.b16 %v2384, %v2383
        %v2400 = vpack.c.b16 %v2386, %v2385
        %v2401 = vpack.c.b16 %v2388, %v2387
        %v2402 = vpack.c.b16 %v2390, %v2389
        %v2403 = vpack.c.b16 %v2392, %v2391
        %v2404 = vpack.c.b16 %v2394, %v2393
        %v2405 = vpack.c.b16 %v2396, %v2395
        %v2406 = vpack.c.b16 %v2398, %v2397
        %2415 = vmatprep.subr.bf16.mxu0 0
        %2416 = vmatpush1.bf16.msra.mxu0 %v2406
        %2417 = vmatprep.subr.bf16.mxu0 0
        %2418 = vmatpush1.bf16.msra.mxu0 %v2405
        %2419 = vmatprep.subr.bf16.mxu0 0
        %2420 = vmatpush1.bf16.msra.mxu0 %v2404
        %2421 = vmatprep.subr.bf16.mxu0 0
        %2422 = vmatpush1.bf16.msra.mxu0 %v2403
        %2423 = vmatprep.subr.bf16.mxu0 0
        %2424 = vmatpush1.bf16.msra.mxu0 %v2402
        %2425 = vmatprep.subr.bf16.mxu0 0
        %2426 = vmatpush1.bf16.msra.mxu0 %v2401
        %2427 = vmatprep.subr.bf16.mxu0 0
        %2428 = vmatpush1.bf16.msra.mxu0 %v2400
        %2429 = vmatprep.subr.bf16.mxu0 0
        %2430 = vmatpush1.bf16.msra.mxu0 %v2399
        %2431 = vmatprep.subr.bf16.mxu0 0
        %2432 = vmatpush2.bf16.msra.mxu0 0
        %2433 = vmatprep.subr.bf16.mxu0 0
        %2434 = vmatpush2.bf16.msra.mxu0 0
        %2435 = vmatprep.subr.bf16.mxu0 0
        %2436 = vmatpush2.bf16.msra.mxu0 0
        %2437 = vmatprep.subr.bf16.mxu0 0
        %2438 = vmatpush2.bf16.msra.mxu0 0
        %2439 = vmatprep.subr.bf16.mxu0 0
        %2440 = vmatpush2.bf16.msra.mxu0 0
        %2441 = vmatprep.subr.bf16.mxu0 0
        %2442 = vmatpush2.bf16.msra.mxu0 0
        %2443 = vmatprep.subr.bf16.mxu0 0
        %2444 = vmatpush2.bf16.msra.mxu0 0
        %2445 = vmatprep.subr.bf16.mxu0 0
        %2446 = vmatpush2.bf16.msra.mxu0 0
        %2447 = vmatprep.mubr.bf16.mxu0 0
        %2448 = vmatmul.mubr.bf16.gmra.mxu0 %v2328
        %v2449 = vpop.f32.mrf.mxu0
        %v2450 = vadd.f32 %v2365, %v2449
        %v2451 = vpop.f32.mrf.mxu0
        %v2452 = vpop.f32.mrf.mxu0
        %v2453 = vadd.f32 %v2365, %v2452
        %v2454 = vpop.f32.mrf.mxu0
        %2455 = vmatprep.mubr.bf16.mxu0 0
        %2456 = vmatmul.mubr.bf16.gmra.mxu0 %v2329
        %v2457 = vpop.f32.mrf.mxu0
        %v2458 = vadd.f32 %v2365, %v2457
        %v2459 = vpop.f32.mrf.mxu0
        %v2460 = vpop.f32.mrf.mxu0
        %v2461 = vadd.f32 %v2365, %v2460
        %v2462 = vpop.f32.mrf.mxu0
        %2463 = vmatprep.mubr.bf16.mxu0 0
        %2464 = vmatmul.mubr.bf16.gmra.mxu0 %v2330
        %v2465 = vpop.f32.mrf.mxu0
        %v2466 = vadd.f32 %v2365, %v2465
        %v2467 = vpop.f32.mrf.mxu0
        %v2468 = vpop.f32.mrf.mxu0
        %v2469 = vadd.f32 %v2365, %v2468
        %v2470 = vpop.f32.mrf.mxu0
        %2471 = vmatprep.mubr.bf16.mxu0 0
        %2472 = vmatmul.mubr.bf16.gmra.mxu0 %v2331
        %v2473 = vpop.f32.mrf.mxu0
        %v2474 = vadd.f32 %v2365, %v2473
        %v2475 = vpop.f32.mrf.mxu0
        %v2476 = vpop.f32.mrf.mxu0
        %v2477 = vadd.f32 %v2365, %v2476
        %v2478 = vpop.f32.mrf.mxu0
        %2479 = vmatprep.mubr.bf16.mxu0 0
        %2480 = vmatmul.mubr.bf16.gmra.mxu0 %v2332
        %v2481 = vpop.f32.mrf.mxu0
        %v2482 = vadd.f32 %v2365, %v2481
        %v2483 = vpop.f32.mrf.mxu0
        %v2484 = vpop.f32.mrf.mxu0
        %v2485 = vadd.f32 %v2365, %v2484
        %v2486 = vpop.f32.mrf.mxu0
        %2487 = vmatprep.mubr.bf16.mxu0 0
        %2488 = vmatmul.mubr.bf16.gmra.mxu0 %v2333
        %v2489 = vpop.f32.mrf.mxu0
        %v2490 = vadd.f32 %v2365, %v2489
        %v2491 = vpop.f32.mrf.mxu0
        %v2492 = vpop.f32.mrf.mxu0
        %v2493 = vadd.f32 %v2365, %v2492
        %v2494 = vpop.f32.mrf.mxu0
        %2495 = vmatprep.mubr.bf16.mxu0 0
        %2496 = vmatmul.mubr.bf16.gmra.mxu0 %v2334
        %v2497 = vpop.f32.mrf.mxu0
        %v2498 = vadd.f32 %v2365, %v2497
        %v2499 = vpop.f32.mrf.mxu0
        %v2500 = vpop.f32.mrf.mxu0
        %v2501 = vadd.f32 %v2365, %v2500
        %v2502 = vpop.f32.mrf.mxu0
        %2503 = vmatprep.mubr.bf16.mxu0 0
        %2504 = vmatmul.mubr.bf16.gmra.mxu0 %v2335
        %v2505 = vpop.f32.mrf.mxu0
        %v2506 = vadd.f32 %v2365, %v2505
        %v2507 = vpop.f32.mrf.mxu0
        %v2508 = vpop.f32.mrf.mxu0
        %v2509 = vadd.f32 %v2365, %v2508
        %v2510 = vpop.f32.mrf.mxu0
        %2511 = vmatprep.mubr.bf16.mxu0 0
        %2512 = vmatmul.mubr.bf16.gmra.mxu0 %v2336
        %v2513 = vpop.f32.mrf.mxu0
        %v2514 = vadd.f32 %v2365, %v2513
        %v2515 = vpop.f32.mrf.mxu0
        %v2516 = vpop.f32.mrf.mxu0
        %v2517 = vadd.f32 %v2365, %v2516
        %v2518 = vpop.f32.mrf.mxu0
        %2519 = vmatprep.mubr.bf16.mxu0 0
        %2520 = vmatmul.mubr.bf16.gmra.mxu0 %v2337
        %v2521 = vpop.f32.mrf.mxu0
        %v2522 = vadd.f32 %v2365, %v2521
        %v2523 = vpop.f32.mrf.mxu0
        %v2524 = vpop.f32.mrf.mxu0
        %v2525 = vadd.f32 %v2365, %v2524
        %v2526 = vpop.f32.mrf.mxu0
        %2527 = vmatprep.mubr.bf16.mxu0 0
        %2528 = vmatmul.mubr.bf16.gmra.mxu0 %v2338
        %v2529 = vpop.f32.mrf.mxu0
        %v2530 = vadd.f32 %v2365, %v2529
        %v2531 = vpop.f32.mrf.mxu0
        %v2532 = vpop.f32.mrf.mxu0
        %v2533 = vadd.f32 %v2365, %v2532
        %v2534 = vpop.f32.mrf.mxu0
        %2535 = vmatprep.mubr.bf16.mxu0 0
        %2536 = vmatmul.mubr.bf16.gmra.mxu0 %v2339
        %v2537 = vpop.f32.mrf.mxu0
        %v2538 = vadd.f32 %v2365, %v2537
        %v2539 = vpop.f32.mrf.mxu0
        %v2540 = vpop.f32.mrf.mxu0
        %v2541 = vadd.f32 %v2365, %v2540
        %v2542 = vpop.f32.mrf.mxu0
        %2543 = vmatprep.mubr.bf16.mxu0 0
        %2544 = vmatmul.mubr.bf16.gmra.mxu0 %v2340
        %v2545 = vpop.f32.mrf.mxu0
        %v2546 = vadd.f32 %v2365, %v2545
        %v2547 = vpop.f32.mrf.mxu0
        %v2548 = vpop.f32.mrf.mxu0
        %v2549 = vadd.f32 %v2365, %v2548
        %v2550 = vpop.f32.mrf.mxu0
        %2551 = vmatprep.mubr.bf16.mxu0 0
        %2552 = vmatmul.mubr.bf16.gmra.mxu0 %v2341
        %v2553 = vpop.f32.mrf.mxu0
        %v2554 = vadd.f32 %v2365, %v2553
        %v2555 = vpop.f32.mrf.mxu0
        %v2556 = vpop.f32.mrf.mxu0
        %v2557 = vadd.f32 %v2365, %v2556
        %v2558 = vpop.f32.mrf.mxu0
        %2559 = vmatprep.mubr.bf16.mxu0 0
        %2560 = vmatmul.mubr.bf16.gmra.mxu0 %v2342
        %v2561 = vpop.f32.mrf.mxu0
        %v2562 = vadd.f32 %v2365, %v2561
        %v2563 = vpop.f32.mrf.mxu0
        %v2564 = vpop.f32.mrf.mxu0
        %v2565 = vadd.f32 %v2365, %v2564
        %v2566 = vpop.f32.mrf.mxu0
        %2567 = vmatprep.mubr.bf16.mxu0 0
        %2568 = vmatmul.mubr.bf16.gmra.mxu0 %v2343
        %v2569 = vpop.f32.mrf.mxu0
        %v2570 = vadd.f32 %v2365, %v2569
        %v2571 = vpop.f32.mrf.mxu0
        %v2572 = vpop.f32.mrf.mxu0
        %v2573 = vadd.f32 %v2365, %v2572
        %v2574 = vpop.f32.mrf.mxu0
        %2575 = vdwg.mxu0
        %v2576 = vmax.f32 %v2450, 0.0
        %v2577 = vmax.f32 %v2453, 0.0
        %v2578 = vmax.f32 %v2458, 0.0
        %v2579 = vmax.f32 %v2461, 0.0
        %v2580 = vmax.f32 %v2466, 0.0
        %v2581 = vmax.f32 %v2469, 0.0
        %v2582 = vmax.f32 %v2474, 0.0
        %v2583 = vmax.f32 %v2477, 0.0
        %v2584 = vmax.f32 %v2482, 0.0
        %v2585 = vmax.f32 %v2485, 0.0
        %v2586 = vmax.f32 %v2490, 0.0
        %v2587 = vmax.f32 %v2493, 0.0
        %v2588 = vmax.f32 %v2498, 0.0
        %v2589 = vmax.f32 %v2501, 0.0
        %v2590 = vmax.f32 %v2506, 0.0
        %v2591 = vmax.f32 %v2509, 0.0
        %v2592 = vmax.f32 %v2514, 0.0
        %v2593 = vmax.f32 %v2517, 0.0
        %v2594 = vmax.f32 %v2522, 0.0
        %v2595 = vmax.f32 %v2525, 0.0
        %v2596 = vmax.f32 %v2530, 0.0
        %v2597 = vmax.f32 %v2533, 0.0
        %v2598 = vmax.f32 %v2538, 0.0
        %v2599 = vmax.f32 %v2541, 0.0
        %v2600 = vmax.f32 %v2546, 0.0
        %v2601 = vmax.f32 %v2549, 0.0
        %v2602 = vmax.f32 %v2554, 0.0
        %v2603 = vmax.f32 %v2557, 0.0
        %v2604 = vmax.f32 %v2562, 0.0
        %v2605 = vmax.f32 %v2565, 0.0
        %v2606 = vmax.f32 %v2570, 0.0
        %v2607 = vmax.f32 %v2573, 0.0
        %v2608 = vpack.c.bf16 %v2577, %v2576
        %v2609 = vpack.c.bf16 %v2579, %v2578
        %v2610 = vpack.c.bf16 %v2581, %v2580
        %v2611 = vpack.c.bf16 %v2583, %v2582
        %v2612 = vpack.c.bf16 %v2585, %v2584
        %v2613 = vpack.c.bf16 %v2587, %v2586
        %v2614 = vpack.c.bf16 %v2589, %v2588
        %v2615 = vpack.c.bf16 %v2591, %v2590
        %v2616 = vpack.c.bf16 %v2593, %v2592
        %v2617 = vpack.c.bf16 %v2595, %v2594
        %v2618 = vpack.c.bf16 %v2597, %v2596
        %v2619 = vpack.c.bf16 %v2599, %v2598
        %v2620 = vpack.c.bf16 %v2601, %v2600
        %v2621 = vpack.c.bf16 %v2603, %v2602
        %v2622 = vpack.c.bf16 %v2605, %v2604
        %v2623 = vpack.c.bf16 %v2607, %v2606
        %v2624 = vld [vmem:[#allocation8] sm:$0xf]
        %v2625 = vld [vmem:[#allocation8 + $0x4] sm:$0xf]
        %v2626 = vld [vmem:[#allocation8 + $0x8] sm:$0xf]
        %v2627 = vld [vmem:[#allocation8 + $0xc] sm:$0xf]
        %v2628 = vld [vmem:[#allocation8 + $0x10] sm:$0xf]
        %v2629 = vld [vmem:[#allocation8 + $0x14] sm:$0xf]
        %v2630 = vld [vmem:[#allocation8 + $0x18] sm:$0xf]
        %v2631 = vld [vmem:[#allocation8 + $0x1c] sm:$0xf]
        %v2632 = vld [vmem:[#allocation8 + $0x20] sm:$0xf]
        %v2633 = vld [vmem:[#allocation8 + $0x24] sm:$0xf]
        %v2634 = vld [vmem:[#allocation8 + $0x28] sm:$0xf]
        %v2635 = vld [vmem:[#allocation8 + $0x2c] sm:$0xf]
        %v2636 = vld [vmem:[#allocation8 + $0x30] sm:$0xf]
        %v2637 = vld [vmem:[#allocation8 + $0x34] sm:$0xf]
        %v2638 = vld [vmem:[#allocation8 + $0x38] sm:$0xf]
        %v2639 = vld [vmem:[#allocation8 + $0x3c] sm:$0xf]
        %v2640 = vld [vmem:[%s6] sm:$0x1]
        %v2642 = vlaneseq
        %v2643 = vshrl.u32 %v2642, 7
        %v2644 = vsub.s32 0, %v2643
        %v2645 = vrot.slane %v2640, %v2644
        %v2663 = vunpack.c.l.b16 %v2624
        %v2664 = vunpack.c.l.b16 %v2625
        %v2665 = vunpack.c.l.b16 %v2626
        %v2666 = vunpack.c.l.b16 %v2627
        %v2667 = vunpack.c.l.b16 %v2628
        %v2668 = vunpack.c.l.b16 %v2629
        %v2669 = vunpack.c.l.b16 %v2630
        %v2670 = vunpack.c.l.b16 %v2631
        %v2671 = vunpack.c.l.b16 %v2632
        %v2672 = vunpack.c.l.b16 %v2633
        %v2673 = vunpack.c.l.b16 %v2634
        %v2674 = vunpack.c.l.b16 %v2635
        %v2675 = vunpack.c.l.b16 %v2636
        %v2676 = vunpack.c.l.b16 %v2637
        %v2677 = vunpack.c.l.b16 %v2638
        %v2678 = vunpack.c.l.b16 %v2639
        %v2679 = vpack.c.b16 %v2664, %v2663
        %v2680 = vpack.c.b16 %v2666, %v2665
        %v2681 = vpack.c.b16 %v2668, %v2667
        %v2682 = vpack.c.b16 %v2670, %v2669
        %v2683 = vpack.c.b16 %v2672, %v2671
        %v2684 = vpack.c.b16 %v2674, %v2673
        %v2685 = vpack.c.b16 %v2676, %v2675
        %v2686 = vpack.c.b16 %v2678, %v2677
        %2695 = vmatprep.subr.bf16.mxu0 0
        %2696 = vmatpush1.bf16.msra.mxu0 %v2686
        %2697 = vmatprep.subr.bf16.mxu0 0
        %2698 = vmatpush1.bf16.msra.mxu0 %v2685
        %2699 = vmatprep.subr.bf16.mxu0 0
        %2700 = vmatpush1.bf16.msra.mxu0 %v2684
        %2701 = vmatprep.subr.bf16.mxu0 0
        %2702 = vmatpush1.bf16.msra.mxu0 %v2683
        %2703 = vmatprep.subr.bf16.mxu0 0
        %2704 = vmatpush1.bf16.msra.mxu0 %v2682
        %2705 = vmatprep.subr.bf16.mxu0 0
        %2706 = vmatpush1.bf16.msra.mxu0 %v2681
        %2707 = vmatprep.subr.bf16.mxu0 0
        %2708 = vmatpush1.bf16.msra.mxu0 %v2680
        %2709 = vmatprep.subr.bf16.mxu0 0
        %2710 = vmatpush1.bf16.msra.mxu0 %v2679
        %2711 = vmatprep.subr.bf16.mxu0 0
        %2712 = vmatpush2.bf16.msra.mxu0 0
        %2713 = vmatprep.subr.bf16.mxu0 0
        %2714 = vmatpush2.bf16.msra.mxu0 0
        %2715 = vmatprep.subr.bf16.mxu0 0
        %2716 = vmatpush2.bf16.msra.mxu0 0
        %2717 = vmatprep.subr.bf16.mxu0 0
        %2718 = vmatpush2.bf16.msra.mxu0 0
        %2719 = vmatprep.subr.bf16.mxu0 0
        %2720 = vmatpush2.bf16.msra.mxu0 0
        %2721 = vmatprep.subr.bf16.mxu0 0
        %2722 = vmatpush2.bf16.msra.mxu0 0
        %2723 = vmatprep.subr.bf16.mxu0 0
        %2724 = vmatpush2.bf16.msra.mxu0 0
        %2725 = vmatprep.subr.bf16.mxu0 0
        %2726 = vmatpush2.bf16.msra.mxu0 0
        %2727 = vmatprep.mubr.bf16.mxu0 0
        %2728 = vmatmul.mubr.bf16.gmra.mxu0 %v2608
        %v2729 = vpop.f32.mrf.mxu0
        %v2730 = vadd.f32 %v2645, %v2729
        %v2731 = vpop.f32.mrf.mxu0
        %v2732 = vpop.f32.mrf.mxu0
        %v2733 = vadd.f32 %v2645, %v2732
        %v2734 = vpop.f32.mrf.mxu0
        %2735 = vmatprep.mubr.bf16.mxu0 0
        %2736 = vmatmul.mubr.bf16.gmra.mxu0 %v2609
        %v2737 = vpop.f32.mrf.mxu0
        %v2738 = vadd.f32 %v2645, %v2737
        %v2739 = vpop.f32.mrf.mxu0
        %v2740 = vpop.f32.mrf.mxu0
        %v2741 = vadd.f32 %v2645, %v2740
        %v2742 = vpop.f32.mrf.mxu0
        %2743 = vmatprep.mubr.bf16.mxu0 0
        %2744 = vmatmul.mubr.bf16.gmra.mxu0 %v2610
        %v2745 = vpop.f32.mrf.mxu0
        %v2746 = vadd.f32 %v2645, %v2745
        %v2747 = vpop.f32.mrf.mxu0
        %v2748 = vpop.f32.mrf.mxu0
        %v2749 = vadd.f32 %v2645, %v2748
        %v2750 = vpop.f32.mrf.mxu0
        %2751 = vmatprep.mubr.bf16.mxu0 0
        %2752 = vmatmul.mubr.bf16.gmra.mxu0 %v2611
        %v2753 = vpop.f32.mrf.mxu0
        %v2754 = vadd.f32 %v2645, %v2753
        %v2755 = vpop.f32.mrf.mxu0
        %v2756 = vpop.f32.mrf.mxu0
        %v2757 = vadd.f32 %v2645, %v2756
        %v2758 = vpop.f32.mrf.mxu0
        %2759 = vmatprep.mubr.bf16.mxu0 0
        %2760 = vmatmul.mubr.bf16.gmra.mxu0 %v2612
        %v2761 = vpop.f32.mrf.mxu0
        %v2762 = vadd.f32 %v2645, %v2761
        %v2763 = vpop.f32.mrf.mxu0
        %v2764 = vpop.f32.mrf.mxu0
        %v2765 = vadd.f32 %v2645, %v2764
        %v2766 = vpop.f32.mrf.mxu0
        %2767 = vmatprep.mubr.bf16.mxu0 0
        %2768 = vmatmul.mubr.bf16.gmra.mxu0 %v2613
        %v2769 = vpop.f32.mrf.mxu0
        %v2770 = vadd.f32 %v2645, %v2769
        %v2771 = vpop.f32.mrf.mxu0
        %v2772 = vpop.f32.mrf.mxu0
        %v2773 = vadd.f32 %v2645, %v2772
        %v2774 = vpop.f32.mrf.mxu0
        %2775 = vmatprep.mubr.bf16.mxu0 0
        %2776 = vmatmul.mubr.bf16.gmra.mxu0 %v2614
        %v2777 = vpop.f32.mrf.mxu0
        %v2778 = vadd.f32 %v2645, %v2777
        %v2779 = vpop.f32.mrf.mxu0
        %v2780 = vpop.f32.mrf.mxu0
        %v2781 = vadd.f32 %v2645, %v2780
        %v2782 = vpop.f32.mrf.mxu0
        %2783 = vmatprep.mubr.bf16.mxu0 0
        %2784 = vmatmul.mubr.bf16.gmra.mxu0 %v2615
        %v2785 = vpop.f32.mrf.mxu0
        %v2786 = vadd.f32 %v2645, %v2785
        %v2787 = vpop.f32.mrf.mxu0
        %v2788 = vpop.f32.mrf.mxu0
        %v2789 = vadd.f32 %v2645, %v2788
        %v2790 = vpop.f32.mrf.mxu0
        %2791 = vmatprep.mubr.bf16.mxu0 0
        %2792 = vmatmul.mubr.bf16.gmra.mxu0 %v2616
        %v2793 = vpop.f32.mrf.mxu0
        %v2794 = vadd.f32 %v2645, %v2793
        %v2795 = vpop.f32.mrf.mxu0
        %v2796 = vpop.f32.mrf.mxu0
        %v2797 = vadd.f32 %v2645, %v2796
        %v2798 = vpop.f32.mrf.mxu0
        %2799 = vmatprep.mubr.bf16.mxu0 0
        %2800 = vmatmul.mubr.bf16.gmra.mxu0 %v2617
        %v2801 = vpop.f32.mrf.mxu0
        %v2802 = vadd.f32 %v2645, %v2801
        %v2803 = vpop.f32.mrf.mxu0
        %v2804 = vpop.f32.mrf.mxu0
        %v2805 = vadd.f32 %v2645, %v2804
        %v2806 = vpop.f32.mrf.mxu0
        %2807 = vmatprep.mubr.bf16.mxu0 0
        %2808 = vmatmul.mubr.bf16.gmra.mxu0 %v2618
        %v2809 = vpop.f32.mrf.mxu0
        %v2810 = vadd.f32 %v2645, %v2809
        %v2811 = vpop.f32.mrf.mxu0
        %v2812 = vpop.f32.mrf.mxu0
        %v2813 = vadd.f32 %v2645, %v2812
        %v2814 = vpop.f32.mrf.mxu0
        %2815 = vmatprep.mubr.bf16.mxu0 0
        %2816 = vmatmul.mubr.bf16.gmra.mxu0 %v2619
        %v2817 = vpop.f32.mrf.mxu0
        %v2818 = vadd.f32 %v2645, %v2817
        %v2819 = vpop.f32.mrf.mxu0
        %v2820 = vpop.f32.mrf.mxu0
        %v2821 = vadd.f32 %v2645, %v2820
        %v2822 = vpop.f32.mrf.mxu0
        %2823 = vmatprep.mubr.bf16.mxu0 0
        %2824 = vmatmul.mubr.bf16.gmra.mxu0 %v2620
        %v2825 = vpop.f32.mrf.mxu0
        %v2826 = vadd.f32 %v2645, %v2825
        %v2827 = vpop.f32.mrf.mxu0
        %v2828 = vpop.f32.mrf.mxu0
        %v2829 = vadd.f32 %v2645, %v2828
        %v2830 = vpop.f32.mrf.mxu0
        %2831 = vmatprep.mubr.bf16.mxu0 0
        %2832 = vmatmul.mubr.bf16.gmra.mxu0 %v2621
        %v2833 = vpop.f32.mrf.mxu0
        %v2834 = vadd.f32 %v2645, %v2833
        %v2835 = vpop.f32.mrf.mxu0
        %v2836 = vpop.f32.mrf.mxu0
        %v2837 = vadd.f32 %v2645, %v2836
        %v2838 = vpop.f32.mrf.mxu0
        %2839 = vmatprep.mubr.bf16.mxu0 0
        %2840 = vmatmul.mubr.bf16.gmra.mxu0 %v2622
        %v2841 = vpop.f32.mrf.mxu0
        %v2842 = vadd.f32 %v2645, %v2841
        %v2843 = vpop.f32.mrf.mxu0
        %v2844 = vpop.f32.mrf.mxu0
        %v2845 = vadd.f32 %v2645, %v2844
        %v2846 = vpop.f32.mrf.mxu0
        %2847 = vmatprep.mubr.bf16.mxu0 0
        %2848 = vmatmul.mubr.bf16.gmra.mxu0 %v2623
        %v2849 = vpop.f32.mrf.mxu0
        %v2850 = vadd.f32 %v2645, %v2849
        %v2851 = vpop.f32.mrf.mxu0
        %v2852 = vpop.f32.mrf.mxu0
        %v2853 = vadd.f32 %v2645, %v2852
        %v2854 = vpop.f32.mrf.mxu0
        %2855 = vdwg.mxu0
        %v2856 = vmax.f32 %v2730, 0.0
        %v2857 = vmax.f32 %v2733, 0.0
        %v2858 = vmax.f32 %v2738, 0.0
        %v2859 = vmax.f32 %v2741, 0.0
        %v2860 = vmax.f32 %v2746, 0.0
        %v2861 = vmax.f32 %v2749, 0.0
        %v2862 = vmax.f32 %v2754, 0.0
        %v2863 = vmax.f32 %v2757, 0.0
        %v2864 = vmax.f32 %v2762, 0.0
        %v2865 = vmax.f32 %v2765, 0.0
        %v2866 = vmax.f32 %v2770, 0.0
        %v2867 = vmax.f32 %v2773, 0.0
        %v2868 = vmax.f32 %v2778, 0.0
        %v2869 = vmax.f32 %v2781, 0.0
        %v2870 = vmax.f32 %v2786, 0.0
        %v2871 = vmax.f32 %v2789, 0.0
        %v2872 = vmax.f32 %v2794, 0.0
        %v2873 = vmax.f32 %v2797, 0.0
        %v2874 = vmax.f32 %v2802, 0.0
        %v2875 = vmax.f32 %v2805, 0.0
        %v2876 = vmax.f32 %v2810, 0.0
        %v2877 = vmax.f32 %v2813, 0.0
        %v2878 = vmax.f32 %v2818, 0.0
        %v2879 = vmax.f32 %v2821, 0.0
        %v2880 = vmax.f32 %v2826, 0.0
        %v2881 = vmax.f32 %v2829, 0.0
        %v2882 = vmax.f32 %v2834, 0.0
        %v2883 = vmax.f32 %v2837, 0.0
        %v2884 = vmax.f32 %v2842, 0.0
        %v2885 = vmax.f32 %v2845, 0.0
        %v2886 = vmax.f32 %v2850, 0.0
        %v2887 = vmax.f32 %v2853, 0.0
        %v2888 = vpack.c.bf16 %v2857, %v2856
        %v2889 = vpack.c.bf16 %v2859, %v2858
        %v2890 = vpack.c.bf16 %v2861, %v2860
        %v2891 = vpack.c.bf16 %v2863, %v2862
        %v2892 = vpack.c.bf16 %v2865, %v2864
        %v2893 = vpack.c.bf16 %v2867, %v2866
        %v2894 = vpack.c.bf16 %v2869, %v2868
        %v2895 = vpack.c.bf16 %v2871, %v2870
        %v2896 = vpack.c.bf16 %v2873, %v2872
        %v2897 = vpack.c.bf16 %v2875, %v2874
        %v2898 = vpack.c.bf16 %v2877, %v2876
        %v2899 = vpack.c.bf16 %v2879, %v2878
        %v2900 = vpack.c.bf16 %v2881, %v2880
        %v2901 = vpack.c.bf16 %v2883, %v2882
        %v2902 = vpack.c.bf16 %v2885, %v2884
        %v2903 = vpack.c.bf16 %v2887, %v2886
        %v2904 = vld [vmem:[#allocation10] sm:$0xf]
        %v2905 = vld [vmem:[#allocation10 + $0x4] sm:$0xf]
        %v2906 = vld [vmem:[#allocation10 + $0x8] sm:$0xf]
        %v2907 = vld [vmem:[#allocation10 + $0xc] sm:$0xf]
        %v2908 = vld [vmem:[#allocation10 + $0x10] sm:$0xf]
        %v2909 = vld [vmem:[#allocation10 + $0x14] sm:$0xf]
        %v2910 = vld [vmem:[#allocation10 + $0x18] sm:$0xf]
        %v2911 = vld [vmem:[#allocation10 + $0x1c] sm:$0xf]
        %v2912 = vld [vmem:[#allocation10 + $0x20] sm:$0xf]
        %v2913 = vld [vmem:[#allocation10 + $0x24] sm:$0xf]
        %v2914 = vld [vmem:[#allocation10 + $0x28] sm:$0xf]
        %v2915 = vld [vmem:[#allocation10 + $0x2c] sm:$0xf]
        %v2916 = vld [vmem:[#allocation10 + $0x30] sm:$0xf]
        %v2917 = vld [vmem:[#allocation10 + $0x34] sm:$0xf]
        %v2918 = vld [vmem:[#allocation10 + $0x38] sm:$0xf]
        %v2919 = vld [vmem:[#allocation10 + $0x3c] sm:$0xf]
        %v2920 = vld [vmem:[%s8] sm:$0x1]
        %v2922 = vlaneseq
        %v2923 = vshrl.u32 %v2922, 7
        %v2924 = vsub.s32 0, %v2923
        %v2925 = vrot.slane %v2920, %v2924
        %v2943 = vunpack.c.l.b16 %v2904
        %v2944 = vunpack.c.l.b16 %v2905
        %v2945 = vunpack.c.l.b16 %v2906
        %v2946 = vunpack.c.l.b16 %v2907
        %v2947 = vunpack.c.l.b16 %v2908
        %v2948 = vunpack.c.l.b16 %v2909
        %v2949 = vunpack.c.l.b16 %v2910
        %v2950 = vunpack.c.l.b16 %v2911
        %v2951 = vunpack.c.l.b16 %v2912
        %v2952 = vunpack.c.l.b16 %v2913
        %v2953 = vunpack.c.l.b16 %v2914
        %v2954 = vunpack.c.l.b16 %v2915
        %v2955 = vunpack.c.l.b16 %v2916
        %v2956 = vunpack.c.l.b16 %v2917
        %v2957 = vunpack.c.l.b16 %v2918
        %v2958 = vunpack.c.l.b16 %v2919
        %v2959 = vpack.c.b16 %v2944, %v2943
        %v2960 = vpack.c.b16 %v2946, %v2945
        %v2961 = vpack.c.b16 %v2948, %v2947
        %v2962 = vpack.c.b16 %v2950, %v2949
        %v2963 = vpack.c.b16 %v2952, %v2951
        %v2964 = vpack.c.b16 %v2954, %v2953
        %v2965 = vpack.c.b16 %v2956, %v2955
        %v2966 = vpack.c.b16 %v2958, %v2957
        %2975 = vmatprep.subr.bf16.mxu0 0
        %2976 = vmatpush1.bf16.msra.mxu0 %v2966
        %2977 = vmatprep.subr.bf16.mxu0 0
        %2978 = vmatpush1.bf16.msra.mxu0 %v2965
        %2979 = vmatprep.subr.bf16.mxu0 0
        %2980 = vmatpush1.bf16.msra.mxu0 %v2964
        %2981 = vmatprep.subr.bf16.mxu0 0
        %2982 = vmatpush1.bf16.msra.mxu0 %v2963
        %2983 = vmatprep.subr.bf16.mxu0 0
        %2984 = vmatpush1.bf16.msra.mxu0 %v2962
        %2985 = vmatprep.subr.bf16.mxu0 0
        %2986 = vmatpush1.bf16.msra.mxu0 %v2961
        %2987 = vmatprep.subr.bf16.mxu0 0
        %2988 = vmatpush1.bf16.msra.mxu0 %v2960
        %2989 = vmatprep.subr.bf16.mxu0 0
        %2990 = vmatpush1.bf16.msra.mxu0 %v2959
        %2991 = vmatprep.subr.bf16.mxu0 0
        %2992 = vmatpush2.bf16.msra.mxu0 0
        %2993 = vmatprep.subr.bf16.mxu0 0
        %2994 = vmatpush2.bf16.msra.mxu0 0
        %2995 = vmatprep.subr.bf16.mxu0 0
        %2996 = vmatpush2.bf16.msra.mxu0 0
        %2997 = vmatprep.subr.bf16.mxu0 0
        %2998 = vmatpush2.bf16.msra.mxu0 0
        %2999 = vmatprep.subr.bf16.mxu0 0
        %3000 = vmatpush2.bf16.msra.mxu0 0
        %3001 = vmatprep.subr.bf16.mxu0 0
        %3002 = vmatpush2.bf16.msra.mxu0 0
        %3003 = vmatprep.subr.bf16.mxu0 0
        %3004 = vmatpush2.bf16.msra.mxu0 0
        %3005 = vmatprep.subr.bf16.mxu0 0
        %3006 = vmatpush2.bf16.msra.mxu0 0
        %3007 = vmatprep.mubr.bf16.mxu0 0
        %3008 = vmatmul.mubr.bf16.gmra.mxu0 %v2888
        %v3009 = vpop.f32.mrf.mxu0
        %v3010 = vadd.f32 %v2925, %v3009
        %v3011 = vpop.f32.mrf.mxu0
        %v3012 = vpop.f32.mrf.mxu0
        %v3013 = vadd.f32 %v2925, %v3012
        %v3014 = vpop.f32.mrf.mxu0
        %3015 = vmatprep.mubr.bf16.mxu0 0
        %3016 = vmatmul.mubr.bf16.gmra.mxu0 %v2889
        %v3017 = vpop.f32.mrf.mxu0
        %v3018 = vadd.f32 %v2925, %v3017
        %v3019 = vpop.f32.mrf.mxu0
        %v3020 = vpop.f32.mrf.mxu0
        %v3021 = vadd.f32 %v2925, %v3020
        %v3022 = vpop.f32.mrf.mxu0
        %3023 = vmatprep.mubr.bf16.mxu0 0
        %3024 = vmatmul.mubr.bf16.gmra.mxu0 %v2890
        %v3025 = vpop.f32.mrf.mxu0
        %v3026 = vadd.f32 %v2925, %v3025
        %v3027 = vpop.f32.mrf.mxu0
        %v3028 = vpop.f32.mrf.mxu0
        %v3029 = vadd.f32 %v2925, %v3028
        %v3030 = vpop.f32.mrf.mxu0
        %3031 = vmatprep.mubr.bf16.mxu0 0
        %3032 = vmatmul.mubr.bf16.gmra.mxu0 %v2891
        %v3033 = vpop.f32.mrf.mxu0
        %v3034 = vadd.f32 %v2925, %v3033
        %v3035 = vpop.f32.mrf.mxu0
        %v3036 = vpop.f32.mrf.mxu0
        %v3037 = vadd.f32 %v2925, %v3036
        %v3038 = vpop.f32.mrf.mxu0
        %3039 = vmatprep.mubr.bf16.mxu0 0
        %3040 = vmatmul.mubr.bf16.gmra.mxu0 %v2892
        %v3041 = vpop.f32.mrf.mxu0
        %v3042 = vadd.f32 %v2925, %v3041
        %v3043 = vpop.f32.mrf.mxu0
        %v3044 = vpop.f32.mrf.mxu0
        %v3045 = vadd.f32 %v2925, %v3044
        %v3046 = vpop.f32.mrf.mxu0
        %3047 = vmatprep.mubr.bf16.mxu0 0
        %3048 = vmatmul.mubr.bf16.gmra.mxu0 %v2893
        %v3049 = vpop.f32.mrf.mxu0
        %v3050 = vadd.f32 %v2925, %v3049
        %v3051 = vpop.f32.mrf.mxu0
        %v3052 = vpop.f32.mrf.mxu0
        %v3053 = vadd.f32 %v2925, %v3052
        %v3054 = vpop.f32.mrf.mxu0
        %3055 = vmatprep.mubr.bf16.mxu0 0
        %3056 = vmatmul.mubr.bf16.gmra.mxu0 %v2894
        %v3057 = vpop.f32.mrf.mxu0
        %v3058 = vadd.f32 %v2925, %v3057
        %v3059 = vpop.f32.mrf.mxu0
        %v3060 = vpop.f32.mrf.mxu0
        %v3061 = vadd.f32 %v2925, %v3060
        %v3062 = vpop.f32.mrf.mxu0
        %3063 = vmatprep.mubr.bf16.mxu0 0
        %3064 = vmatmul.mubr.bf16.gmra.mxu0 %v2895
        %v3065 = vpop.f32.mrf.mxu0
        %v3066 = vadd.f32 %v2925, %v3065
        %v3067 = vpop.f32.mrf.mxu0
        %v3068 = vpop.f32.mrf.mxu0
        %v3069 = vadd.f32 %v2925, %v3068
        %v3070 = vpop.f32.mrf.mxu0
        %3071 = vmatprep.mubr.bf16.mxu0 0
        %3072 = vmatmul.mubr.bf16.gmra.mxu0 %v2896
        %v3073 = vpop.f32.mrf.mxu0
        %v3074 = vadd.f32 %v2925, %v3073
        %v3075 = vpop.f32.mrf.mxu0
        %v3076 = vpop.f32.mrf.mxu0
        %v3077 = vadd.f32 %v2925, %v3076
        %v3078 = vpop.f32.mrf.mxu0
        %3079 = vmatprep.mubr.bf16.mxu0 0
        %3080 = vmatmul.mubr.bf16.gmra.mxu0 %v2897
        %v3081 = vpop.f32.mrf.mxu0
        %v3082 = vadd.f32 %v2925, %v3081
        %v3083 = vpop.f32.mrf.mxu0
        %v3084 = vpop.f32.mrf.mxu0
        %v3085 = vadd.f32 %v2925, %v3084
        %v3086 = vpop.f32.mrf.mxu0
        %3087 = vmatprep.mubr.bf16.mxu0 0
        %3088 = vmatmul.mubr.bf16.gmra.mxu0 %v2898
        %v3089 = vpop.f32.mrf.mxu0
        %v3090 = vadd.f32 %v2925, %v3089
        %v3091 = vpop.f32.mrf.mxu0
        %v3092 = vpop.f32.mrf.mxu0
        %v3093 = vadd.f32 %v2925, %v3092
        %v3094 = vpop.f32.mrf.mxu0
        %3095 = vmatprep.mubr.bf16.mxu0 0
        %3096 = vmatmul.mubr.bf16.gmra.mxu0 %v2899
        %v3097 = vpop.f32.mrf.mxu0
        %v3098 = vadd.f32 %v2925, %v3097
        %v3099 = vpop.f32.mrf.mxu0
        %v3100 = vpop.f32.mrf.mxu0
        %v3101 = vadd.f32 %v2925, %v3100
        %v3102 = vpop.f32.mrf.mxu0
        %3103 = vmatprep.mubr.bf16.mxu0 0
        %3104 = vmatmul.mubr.bf16.gmra.mxu0 %v2900
        %v3105 = vpop.f32.mrf.mxu0
        %v3106 = vadd.f32 %v2925, %v3105
        %v3107 = vpop.f32.mrf.mxu0
        %v3108 = vpop.f32.mrf.mxu0
        %v3109 = vadd.f32 %v2925, %v3108
        %v3110 = vpop.f32.mrf.mxu0
        %3111 = vmatprep.mubr.bf16.mxu0 0
        %3112 = vmatmul.mubr.bf16.gmra.mxu0 %v2901
        %v3113 = vpop.f32.mrf.mxu0
        %v3114 = vadd.f32 %v2925, %v3113
        %v3115 = vpop.f32.mrf.mxu0
        %v3116 = vpop.f32.mrf.mxu0
        %v3117 = vadd.f32 %v2925, %v3116
        %v3118 = vpop.f32.mrf.mxu0
        %3119 = vmatprep.mubr.bf16.mxu0 0
        %3120 = vmatmul.mubr.bf16.gmra.mxu0 %v2902
        %v3121 = vpop.f32.mrf.mxu0
        %v3122 = vadd.f32 %v2925, %v3121
        %v3123 = vpop.f32.mrf.mxu0
        %v3124 = vpop.f32.mrf.mxu0
        %v3125 = vadd.f32 %v2925, %v3124
        %v3126 = vpop.f32.mrf.mxu0
        %3127 = vmatprep.mubr.bf16.mxu0 0
        %3128 = vmatmul.mubr.bf16.gmra.mxu0 %v2903
        %v3129 = vpop.f32.mrf.mxu0
        %v3130 = vadd.f32 %v2925, %v3129
        %v3131 = vpop.f32.mrf.mxu0
        %v3132 = vpop.f32.mrf.mxu0
        %v3133 = vadd.f32 %v2925, %v3132
        %v3134 = vpop.f32.mrf.mxu0
        %3135 = vdwg.mxu0
        %v3136 = vmax.f32 %v3010, 0.0
        %v3137 = vmax.f32 %v3013, 0.0
        %v3138 = vmax.f32 %v3018, 0.0
        %v3139 = vmax.f32 %v3021, 0.0
        %v3140 = vmax.f32 %v3026, 0.0
        %v3141 = vmax.f32 %v3029, 0.0
        %v3142 = vmax.f32 %v3034, 0.0
        %v3143 = vmax.f32 %v3037, 0.0
        %v3144 = vmax.f32 %v3042, 0.0
        %v3145 = vmax.f32 %v3045, 0.0
        %v3146 = vmax.f32 %v3050, 0.0
        %v3147 = vmax.f32 %v3053, 0.0
        %v3148 = vmax.f32 %v3058, 0.0
        %v3149 = vmax.f32 %v3061, 0.0
        %v3150 = vmax.f32 %v3066, 0.0
        %v3151 = vmax.f32 %v3069, 0.0
        %v3152 = vmax.f32 %v3074, 0.0
        %v3153 = vmax.f32 %v3077, 0.0
        %v3154 = vmax.f32 %v3082, 0.0
        %v3155 = vmax.f32 %v3085, 0.0
        %v3156 = vmax.f32 %v3090, 0.0
        %v3157 = vmax.f32 %v3093, 0.0
        %v3158 = vmax.f32 %v3098, 0.0
        %v3159 = vmax.f32 %v3101, 0.0
        %v3160 = vmax.f32 %v3106, 0.0
        %v3161 = vmax.f32 %v3109, 0.0
        %v3162 = vmax.f32 %v3114, 0.0
        %v3163 = vmax.f32 %v3117, 0.0
        %v3164 = vmax.f32 %v3122, 0.0
        %v3165 = vmax.f32 %v3125, 0.0
        %v3166 = vmax.f32 %v3130, 0.0
        %v3167 = vmax.f32 %v3133, 0.0
        %v3168 = vpack.c.bf16 %v3137, %v3136
        %v3169 = vpack.c.bf16 %v3139, %v3138
        %v3170 = vpack.c.bf16 %v3141, %v3140
        %v3171 = vpack.c.bf16 %v3143, %v3142
        %v3172 = vpack.c.bf16 %v3145, %v3144
        %v3173 = vpack.c.bf16 %v3147, %v3146
        %v3174 = vpack.c.bf16 %v3149, %v3148
        %v3175 = vpack.c.bf16 %v3151, %v3150
        %v3176 = vpack.c.bf16 %v3153, %v3152
        %v3177 = vpack.c.bf16 %v3155, %v3154
        %v3178 = vpack.c.bf16 %v3157, %v3156
        %v3179 = vpack.c.bf16 %v3159, %v3158
        %v3180 = vpack.c.bf16 %v3161, %v3160
        %v3181 = vpack.c.bf16 %v3163, %v3162
        %v3182 = vpack.c.bf16 %v3165, %v3164
        %v3183 = vpack.c.bf16 %v3167, %v3166
        %v3184 = vld [vmem:[#allocation11] sm:$0xf]
        %v3185 = vld [vmem:[#allocation11 + $0x4] sm:$0xf]
        %v3186 = vld [vmem:[#allocation11 + $0x8] sm:$0xf]
        %v3187 = vld [vmem:[#allocation11 + $0xc] sm:$0xf]
        %v3188 = vld [vmem:[#allocation11 + $0x10] sm:$0xf]
        %v3189 = vld [vmem:[#allocation11 + $0x14] sm:$0xf]
        %v3190 = vld [vmem:[#allocation11 + $0x18] sm:$0xf]
        %v3191 = vld [vmem:[#allocation11 + $0x1c] sm:$0xf]
        %v3192 = vld [vmem:[#allocation11 + $0x20] sm:$0xf]
        %v3193 = vld [vmem:[#allocation11 + $0x24] sm:$0xf]
        %v3194 = vld [vmem:[#allocation11 + $0x28] sm:$0xf]
        %v3195 = vld [vmem:[#allocation11 + $0x2c] sm:$0xf]
        %v3196 = vld [vmem:[#allocation11 + $0x30] sm:$0xf]
        %v3197 = vld [vmem:[#allocation11 + $0x34] sm:$0xf]
        %v3198 = vld [vmem:[#allocation11 + $0x38] sm:$0xf]
        %v3199 = vld [vmem:[#allocation11 + $0x3c] sm:$0xf]
        %v3216 = vunpack.c.l.b16 %v3184
        %v3217 = vunpack.c.l.b16 %v3185
        %v3218 = vunpack.c.l.b16 %v3186
        %v3219 = vunpack.c.l.b16 %v3187
        %v3220 = vunpack.c.l.b16 %v3188
        %v3221 = vunpack.c.l.b16 %v3189
        %v3222 = vunpack.c.l.b16 %v3190
        %v3223 = vunpack.c.l.b16 %v3191
        %v3224 = vunpack.c.l.b16 %v3192
        %v3225 = vunpack.c.l.b16 %v3193
        %v3226 = vunpack.c.l.b16 %v3194
        %v3227 = vunpack.c.l.b16 %v3195
        %v3228 = vunpack.c.l.b16 %v3196
        %v3229 = vunpack.c.l.b16 %v3197
        %v3230 = vunpack.c.l.b16 %v3198
        %v3231 = vunpack.c.l.b16 %v3199
        %v3232 = vpack.c.b16 %v3217, %v3216
        %v3233 = vpack.c.b16 %v3219, %v3218
        %v3234 = vpack.c.b16 %v3221, %v3220
        %v3235 = vpack.c.b16 %v3223, %v3222
        %v3236 = vpack.c.b16 %v3225, %v3224
        %v3237 = vpack.c.b16 %v3227, %v3226
        %v3238 = vpack.c.b16 %v3229, %v3228
        %v3239 = vpack.c.b16 %v3231, %v3230
        %3248 = vmatprep.subr.bf16.mxu0 0
        %3249 = vmatpush1.bf16.msra.mxu0 %v3239
        %3250 = vmatprep.subr.bf16.mxu0 0
        %3251 = vmatpush1.bf16.msra.mxu0 %v3238
        %3252 = vmatprep.subr.bf16.mxu0 0
        %3253 = vmatpush1.bf16.msra.mxu0 %v3237
        %3254 = vmatprep.subr.bf16.mxu0 0
        %3255 = vmatpush1.bf16.msra.mxu0 %v3236
        %3256 = vmatprep.subr.bf16.mxu0 0
        %3257 = vmatpush1.bf16.msra.mxu0 %v3235
        %3258 = vmatprep.subr.bf16.mxu0 0
        %3259 = vmatpush1.bf16.msra.mxu0 %v3234
        %3260 = vmatprep.subr.bf16.mxu0 0
        %3261 = vmatpush1.bf16.msra.mxu0 %v3233
        %3262 = vmatprep.subr.bf16.mxu0 0
        %3263 = vmatpush1.bf16.msra.mxu0 %v3232
        %3264 = vmatprep.subr.bf16.mxu0 0
        %3265 = vmatpush2.bf16.msra.mxu0 0
        %3266 = vmatprep.subr.bf16.mxu0 0
        %3267 = vmatpush2.bf16.msra.mxu0 0
        %3268 = vmatprep.subr.bf16.mxu0 0
        %3269 = vmatpush2.bf16.msra.mxu0 0
        %3270 = vmatprep.subr.bf16.mxu0 0
        %3271 = vmatpush2.bf16.msra.mxu0 0
        %3272 = vmatprep.subr.bf16.mxu0 0
        %3273 = vmatpush2.bf16.msra.mxu0 0
        %3274 = vmatprep.subr.bf16.mxu0 0
        %3275 = vmatpush2.bf16.msra.mxu0 0
        %3276 = vmatprep.subr.bf16.mxu0 0
        %3277 = vmatpush2.bf16.msra.mxu0 0
        %3278 = vmatprep.subr.bf16.mxu0 0
        %3279 = vmatpush2.bf16.msra.mxu0 0
        %3280 = vmatprep.mubr.bf16.mxu0 0
        %3281 = vmatmul.mubr.bf16.gmra.mxu0 %v3168
        %v3282 = vpop.f32.mrf.mxu0
        %v3283 = vadd.f32 0.0, %v3282
        %v3284 = vpop.f32.mrf.mxu0
        %v3285 = vpop.f32.mrf.mxu0
        %v3286 = vadd.f32 0.0, %v3285
        %v3287 = vpop.f32.mrf.mxu0
        %3288 = vmatprep.mubr.bf16.mxu0 0
        %3289 = vmatmul.mubr.bf16.gmra.mxu0 %v3169
        %v3290 = vpop.f32.mrf.mxu0
        %v3291 = vadd.f32 0.0, %v3290
        %v3292 = vpop.f32.mrf.mxu0
        %v3293 = vpop.f32.mrf.mxu0
        %v3294 = vadd.f32 0.0, %v3293
        %v3295 = vpop.f32.mrf.mxu0
        %3296 = vmatprep.mubr.bf16.mxu0 0
        %3297 = vmatmul.mubr.bf16.gmra.mxu0 %v3170
        %v3298 = vpop.f32.mrf.mxu0
        %v3299 = vadd.f32 0.0, %v3298
        %v3300 = vpop.f32.mrf.mxu0
        %v3301 = vpop.f32.mrf.mxu0
        %v3302 = vadd.f32 0.0, %v3301
        %v3303 = vpop.f32.mrf.mxu0
        %3304 = vmatprep.mubr.bf16.mxu0 0
        %3305 = vmatmul.mubr.bf16.gmra.mxu0 %v3171
        %v3306 = vpop.f32.mrf.mxu0
        %v3307 = vadd.f32 0.0, %v3306
        %v3308 = vpop.f32.mrf.mxu0
        %v3309 = vpop.f32.mrf.mxu0
        %v3310 = vadd.f32 0.0, %v3309
        %v3311 = vpop.f32.mrf.mxu0
        %3312 = vmatprep.mubr.bf16.mxu0 0
        %3313 = vmatmul.mubr.bf16.gmra.mxu0 %v3172
        %v3314 = vpop.f32.mrf.mxu0
        %v3315 = vadd.f32 0.0, %v3314
        %v3316 = vpop.f32.mrf.mxu0
        %v3317 = vpop.f32.mrf.mxu0
        %v3318 = vadd.f32 0.0, %v3317
        %v3319 = vpop.f32.mrf.mxu0
        %3320 = vmatprep.mubr.bf16.mxu0 0
        %3321 = vmatmul.mubr.bf16.gmra.mxu0 %v3173
        %v3322 = vpop.f32.mrf.mxu0
        %v3323 = vadd.f32 0.0, %v3322
        %v3324 = vpop.f32.mrf.mxu0
        %v3325 = vpop.f32.mrf.mxu0
        %v3326 = vadd.f32 0.0, %v3325
        %v3327 = vpop.f32.mrf.mxu0
        %3328 = vmatprep.mubr.bf16.mxu0 0
        %3329 = vmatmul.mubr.bf16.gmra.mxu0 %v3174
        %v3330 = vpop.f32.mrf.mxu0
        %v3331 = vadd.f32 0.0, %v3330
        %v3332 = vpop.f32.mrf.mxu0
        %v3333 = vpop.f32.mrf.mxu0
        %v3334 = vadd.f32 0.0, %v3333
        %v3335 = vpop.f32.mrf.mxu0
        %3336 = vmatprep.mubr.bf16.mxu0 0
        %3337 = vmatmul.mubr.bf16.gmra.mxu0 %v3175
        %v3338 = vpop.f32.mrf.mxu0
        %v3339 = vadd.f32 0.0, %v3338
        %v3340 = vpop.f32.mrf.mxu0
        %v3341 = vpop.f32.mrf.mxu0
        %v3342 = vadd.f32 0.0, %v3341
        %v3343 = vpop.f32.mrf.mxu0
        %3344 = vmatprep.mubr.bf16.mxu0 0
        %3345 = vmatmul.mubr.bf16.gmra.mxu0 %v3176
        %v3346 = vpop.f32.mrf.mxu0
        %v3347 = vadd.f32 0.0, %v3346
        %v3348 = vpop.f32.mrf.mxu0
        %v3349 = vpop.f32.mrf.mxu0
        %v3350 = vadd.f32 0.0, %v3349
        %v3351 = vpop.f32.mrf.mxu0
        %3352 = vmatprep.mubr.bf16.mxu0 0
        %3353 = vmatmul.mubr.bf16.gmra.mxu0 %v3177
        %v3354 = vpop.f32.mrf.mxu0
        %v3355 = vadd.f32 0.0, %v3354
        %v3356 = vpop.f32.mrf.mxu0
        %v3357 = vpop.f32.mrf.mxu0
        %v3358 = vadd.f32 0.0, %v3357
        %v3359 = vpop.f32.mrf.mxu0
        %3360 = vmatprep.mubr.bf16.mxu0 0
        %3361 = vmatmul.mubr.bf16.gmra.mxu0 %v3178
        %v3362 = vpop.f32.mrf.mxu0
        %v3363 = vadd.f32 0.0, %v3362
        %v3364 = vpop.f32.mrf.mxu0
        %v3365 = vpop.f32.mrf.mxu0
        %v3366 = vadd.f32 0.0, %v3365
        %v3367 = vpop.f32.mrf.mxu0
        %3368 = vmatprep.mubr.bf16.mxu0 0
        %3369 = vmatmul.mubr.bf16.gmra.mxu0 %v3179
        %v3370 = vpop.f32.mrf.mxu0
        %v3371 = vadd.f32 0.0, %v3370
        %v3372 = vpop.f32.mrf.mxu0
        %v3373 = vpop.f32.mrf.mxu0
        %v3374 = vadd.f32 0.0, %v3373
        %v3375 = vpop.f32.mrf.mxu0
        %3376 = vmatprep.mubr.bf16.mxu0 0
        %3377 = vmatmul.mubr.bf16.gmra.mxu0 %v3180
        %v3378 = vpop.f32.mrf.mxu0
        %v3379 = vadd.f32 0.0, %v3378
        %v3380 = vpop.f32.mrf.mxu0
        %v3381 = vpop.f32.mrf.mxu0
        %v3382 = vadd.f32 0.0, %v3381
        %v3383 = vpop.f32.mrf.mxu0
        %3384 = vmatprep.mubr.bf16.mxu0 0
        %3385 = vmatmul.mubr.bf16.gmra.mxu0 %v3181
        %v3386 = vpop.f32.mrf.mxu0
        %v3387 = vadd.f32 0.0, %v3386
        %v3388 = vpop.f32.mrf.mxu0
        %v3389 = vpop.f32.mrf.mxu0
        %v3390 = vadd.f32 0.0, %v3389
        %v3391 = vpop.f32.mrf.mxu0
        %3392 = vmatprep.mubr.bf16.mxu0 0
        %3393 = vmatmul.mubr.bf16.gmra.mxu0 %v3182
        %v3394 = vpop.f32.mrf.mxu0
        %v3395 = vadd.f32 0.0, %v3394
        %v3396 = vpop.f32.mrf.mxu0
        %v3397 = vpop.f32.mrf.mxu0
        %v3398 = vadd.f32 0.0, %v3397
        %v3399 = vpop.f32.mrf.mxu0
        %3400 = vmatprep.mubr.bf16.mxu0 0
        %3401 = vmatmul.mubr.bf16.gmra.mxu0 %v3183
        %v3402 = vpop.f32.mrf.mxu0
        %v3403 = vadd.f32 0.0, %v3402
        %v3404 = vpop.f32.mrf.mxu0
        %v3405 = vpop.f32.mrf.mxu0
        %v3406 = vadd.f32 0.0, %v3405
        %v3407 = vpop.f32.mrf.mxu0
        %3408 = vdwg.mxu0
        %v3409 = vlaneseq
        %v3410 = vshrl.u32 %v3409, 7
        %v3411 = vadd.s32 %v3410, 8
        %v3412 = vadd.s32 %v3410, 16
        %v3413 = vadd.s32 %v3410, 24
        %v3414 = vadd.s32 %v3410, 32
        %v3415 = vadd.s32 %v3410, 40
        %v3416 = vadd.s32 %v3410, 48
        %v3417 = vadd.s32 %v3410, 56
        %v3418 = vadd.s32 %v3410, 64
        %v3419 = vadd.s32 %v3410, 72
        %v3420 = vadd.s32 %v3410, 80
        %v3421 = vadd.s32 %v3410, 88
        %v3422 = vadd.s32 %v3410, 96
        %v3423 = vadd.s32 %v3410, 104
        %v3424 = vadd.s32 %v3410, 112
        %v3425 = vadd.s32 %v3410, 120
        %v3426 = vadd.s32 %v3410, 128
        %v3427 = vadd.s32 %v3410, 136
        %v3428 = vadd.s32 %v3410, 144
        %v3429 = vadd.s32 %v3410, 152
        %v3430 = vadd.s32 %v3410, 160
        %v3431 = vadd.s32 %v3410, 168
        %v3432 = vadd.s32 %v3410, 176
        %v3433 = vadd.s32 %v3410, 184
        %v3434 = vadd.s32 %v3410, 192
        %v3435 = vadd.s32 %v3410, 200
        %v3436 = vadd.s32 %v3410, 208
        %v3437 = vadd.s32 %v3410, 216
        %v3438 = vadd.s32 %v3410, 224
        %v3439 = vadd.s32 %v3410, 232
        %v3440 = vadd.s32 %v3410, 240
        %v3441 = vadd.s32 %v3410, 248
        %v3442 = vlaneseq
        %v3443 = vand.u32 %v3442, 127
        %v3444 = vand.u32 %v3410, 127
        %v3445 = vand.u32 %v3411, 127
        %v3446 = vand.u32 %v3412, 127
        %v3447 = vand.u32 %v3413, 127
        %v3448 = vand.u32 %v3414, 127
        %v3449 = vand.u32 %v3415, 127
        %v3450 = vand.u32 %v3416, 127
        %v3451 = vand.u32 %v3417, 127
        %v3452 = vand.u32 %v3418, 127
        %v3453 = vand.u32 %v3419, 127
        %v3454 = vand.u32 %v3420, 127
        %v3455 = vand.u32 %v3421, 127
        %v3456 = vand.u32 %v3422, 127
        %v3457 = vand.u32 %v3423, 127
        %v3458 = vand.u32 %v3424, 127
        %v3459 = vand.u32 %v3425, 127
        %v3460 = vand.u32 %v3426, 127
        %v3461 = vand.u32 %v3427, 127
        %v3462 = vand.u32 %v3428, 127
        %v3463 = vand.u32 %v3429, 127
        %v3464 = vand.u32 %v3430, 127
        %v3465 = vand.u32 %v3431, 127
        %v3466 = vand.u32 %v3432, 127
        %v3467 = vand.u32 %v3433, 127
        %v3468 = vand.u32 %v3434, 127
        %v3469 = vand.u32 %v3435, 127
        %v3470 = vand.u32 %v3436, 127
        %v3471 = vand.u32 %v3437, 127
        %v3472 = vand.u32 %v3438, 127
        %v3473 = vand.u32 %v3439, 127
        %v3474 = vand.u32 %v3440, 127
        %v3475 = vand.u32 %v3441, 127
        %vm3476 = vcmp.eq.s32.totalorder %v3444, %v3443
        %vm3477 = vcmp.eq.s32.totalorder %v3445, %v3443
        %vm3478 = vcmp.eq.s32.totalorder %v3446, %v3443
        %vm3479 = vcmp.eq.s32.totalorder %v3447, %v3443
        %vm3480 = vcmp.eq.s32.totalorder %v3448, %v3443
        %vm3481 = vcmp.eq.s32.totalorder %v3449, %v3443
        %vm3482 = vcmp.eq.s32.totalorder %v3450, %v3443
        %vm3483 = vcmp.eq.s32.totalorder %v3451, %v3443
        %vm3484 = vcmp.eq.s32.totalorder %v3452, %v3443
        %vm3485 = vcmp.eq.s32.totalorder %v3453, %v3443
        %vm3486 = vcmp.eq.s32.totalorder %v3454, %v3443
        %vm3487 = vcmp.eq.s32.totalorder %v3455, %v3443
        %vm3488 = vcmp.eq.s32.totalorder %v3456, %v3443
        %vm3489 = vcmp.eq.s32.totalorder %v3457, %v3443
        %vm3490 = vcmp.eq.s32.totalorder %v3458, %v3443
        %vm3491 = vcmp.eq.s32.totalorder %v3459, %v3443
        %vm3492 = vcmp.eq.s32.totalorder %v3460, %v3443
        %vm3493 = vcmp.eq.s32.totalorder %v3461, %v3443
        %vm3494 = vcmp.eq.s32.totalorder %v3462, %v3443
        %vm3495 = vcmp.eq.s32.totalorder %v3463, %v3443
        %vm3496 = vcmp.eq.s32.totalorder %v3464, %v3443
        %vm3497 = vcmp.eq.s32.totalorder %v3465, %v3443
        %vm3498 = vcmp.eq.s32.totalorder %v3466, %v3443
        %vm3499 = vcmp.eq.s32.totalorder %v3467, %v3443
        %vm3500 = vcmp.eq.s32.totalorder %v3468, %v3443
        %vm3501 = vcmp.eq.s32.totalorder %v3469, %v3443
        %vm3502 = vcmp.eq.s32.totalorder %v3470, %v3443
        %vm3503 = vcmp.eq.s32.totalorder %v3471, %v3443
        %vm3504 = vcmp.eq.s32.totalorder %v3472, %v3443
        %vm3505 = vcmp.eq.s32.totalorder %v3473, %v3443
        %vm3506 = vcmp.eq.s32.totalorder %v3474, %v3443
        %vm3507 = vcmp.eq.s32.totalorder %v3475, %v3443
        %s3508 = smul.u32 %s31, 256
        %v3509 = vstv %s3508
        %v3510 = vadd.s32 %v3509, %v3410
        %v3511 = vadd.s32 %v3509, %v3411
        %v3512 = vadd.s32 %v3509, %v3412
        %v3513 = vadd.s32 %v3509, %v3413
        %v3514 = vadd.s32 %v3509, %v3414
        %v3515 = vadd.s32 %v3509, %v3415
        %v3516 = vadd.s32 %v3509, %v3416
        %v3517 = vadd.s32 %v3509, %v3417
        %v3518 = vadd.s32 %v3509, %v3418
        %v3519 = vadd.s32 %v3509, %v3419
        %v3520 = vadd.s32 %v3509, %v3420
        %v3521 = vadd.s32 %v3509, %v3421
        %v3522 = vadd.s32 %v3509, %v3422
        %v3523 = vadd.s32 %v3509, %v3423
        %v3524 = vadd.s32 %v3509, %v3424
        %v3525 = vadd.s32 %v3509, %v3425
        %v3526 = vadd.s32 %v3509, %v3426
        %v3527 = vadd.s32 %v3509, %v3427
        %v3528 = vadd.s32 %v3509, %v3428
        %v3529 = vadd.s32 %v3509, %v3429
        %v3530 = vadd.s32 %v3509, %v3430
        %v3531 = vadd.s32 %v3509, %v3431
        %v3532 = vadd.s32 %v3509, %v3432
        %v3533 = vadd.s32 %v3509, %v3433
        %v3534 = vadd.s32 %v3509, %v3434
        %v3535 = vadd.s32 %v3509, %v3435
        %v3536 = vadd.s32 %v3509, %v3436
        %v3537 = vadd.s32 %v3509, %v3437
        %v3538 = vadd.s32 %v3509, %v3438
        %v3539 = vadd.s32 %v3509, %v3439
        %v3540 = vadd.s32 %v3509, %v3440
        %v3541 = vadd.s32 %v3509, %v3441
        %vm3542 = vcmp.lt.s32.totalorder %v3510, 384
        %vm3543 = vcmp.lt.s32.totalorder %v3511, 384
        %vm3544 = vcmp.lt.s32.totalorder %v3512, 384
        %vm3545 = vcmp.lt.s32.totalorder %v3513, 384
        %vm3546 = vcmp.lt.s32.totalorder %v3514, 384
        %vm3547 = vcmp.lt.s32.totalorder %v3515, 384
        %vm3548 = vcmp.lt.s32.totalorder %v3516, 384
        %vm3549 = vcmp.lt.s32.totalorder %v3517, 384
        %vm3550 = vcmp.lt.s32.totalorder %v3518, 384
        %vm3551 = vcmp.lt.s32.totalorder %v3519, 384
        %vm3552 = vcmp.lt.s32.totalorder %v3520, 384
        %vm3553 = vcmp.lt.s32.totalorder %v3521, 384
        %vm3554 = vcmp.lt.s32.totalorder %v3522, 384
        %vm3555 = vcmp.lt.s32.totalorder %v3523, 384
        %vm3556 = vcmp.lt.s32.totalorder %v3524, 384
        %vm3557 = vcmp.lt.s32.totalorder %v3525, 384
        %vm3558 = vcmp.lt.s32.totalorder %v3526, 384
        %vm3559 = vcmp.lt.s32.totalorder %v3527, 384
        %vm3560 = vcmp.lt.s32.totalorder %v3528, 384
        %vm3561 = vcmp.lt.s32.totalorder %v3529, 384
        %vm3562 = vcmp.lt.s32.totalorder %v3530, 384
        %vm3563 = vcmp.lt.s32.totalorder %v3531, 384
        %vm3564 = vcmp.lt.s32.totalorder %v3532, 384
        %vm3565 = vcmp.lt.s32.totalorder %v3533, 384
        %vm3566 = vcmp.lt.s32.totalorder %v3534, 384
        %vm3567 = vcmp.lt.s32.totalorder %v3535, 384
        %vm3568 = vcmp.lt.s32.totalorder %v3536, 384
        %vm3569 = vcmp.lt.s32.totalorder %v3537, 384
        %vm3570 = vcmp.lt.s32.totalorder %v3538, 384
        %vm3571 = vcmp.lt.s32.totalorder %v3539, 384
        %vm3572 = vcmp.lt.s32.totalorder %v3540, 384
        %vm3573 = vcmp.lt.s32.totalorder %v3541, 384
        %vm3574 = vmand %vm3476, %vm3542
        %vm3575 = vmand %vm3477, %vm3543
        %vm3576 = vmand %vm3478, %vm3544
        %vm3577 = vmand %vm3479, %vm3545
        %vm3578 = vmand %vm3480, %vm3546
        %vm3579 = vmand %vm3481, %vm3547
        %vm3580 = vmand %vm3482, %vm3548
        %vm3581 = vmand %vm3483, %vm3549
        %vm3582 = vmand %vm3484, %vm3550
        %vm3583 = vmand %vm3485, %vm3551
        %vm3584 = vmand %vm3486, %vm3552
        %vm3585 = vmand %vm3487, %vm3553
        %vm3586 = vmand %vm3488, %vm3554
        %vm3587 = vmand %vm3489, %vm3555
        %vm3588 = vmand %vm3490, %vm3556
        %vm3589 = vmand %vm3491, %vm3557
        %vm3590 = vmand %vm3492, %vm3558
        %vm3591 = vmand %vm3493, %vm3559
        %vm3592 = vmand %vm3494, %vm3560
        %vm3593 = vmand %vm3495, %vm3561
        %vm3594 = vmand %vm3496, %vm3562
        %vm3595 = vmand %vm3497, %vm3563
        %vm3596 = vmand %vm3498, %vm3564
        %vm3597 = vmand %vm3499, %vm3565
        %vm3598 = vmand %vm3500, %vm3566
        %vm3599 = vmand %vm3501, %vm3567
        %vm3600 = vmand %vm3502, %vm3568
        %vm3601 = vmand %vm3503, %vm3569
        %vm3602 = vmand %vm3504, %vm3570
        %vm3603 = vmand %vm3505, %vm3571
        %vm3604 = vmand %vm3506, %vm3572
        %vm3605 = vmand %vm3507, %vm3573
        %v3606 = vsel %vm3574, %v3283, 0.0
        %v3607 = vsel %vm3575, %v3286, 0.0
        %v3608 = vsel %vm3576, %v3291, 0.0
        %v3609 = vsel %vm3577, %v3294, 0.0
        %v3610 = vsel %vm3578, %v3299, 0.0
        %v3611 = vsel %vm3579, %v3302, 0.0
        %v3612 = vsel %vm3580, %v3307, 0.0
        %v3613 = vsel %vm3581, %v3310, 0.0
        %v3614 = vsel %vm3582, %v3315, 0.0
        %v3615 = vsel %vm3583, %v3318, 0.0
        %v3616 = vsel %vm3584, %v3323, 0.0
        %v3617 = vsel %vm3585, %v3326, 0.0
        %v3618 = vsel %vm3586, %v3331, 0.0
        %v3619 = vsel %vm3587, %v3334, 0.0
        %v3620 = vsel %vm3588, %v3339, 0.0
        %v3621 = vsel %vm3589, %v3342, 0.0
        %v3622 = vsel %vm3590, %v3347, 0.0
        %v3623 = vsel %vm3591, %v3350, 0.0
        %v3624 = vsel %vm3592, %v3355, 0.0
        %v3625 = vsel %vm3593, %v3358, 0.0
        %v3626 = vsel %vm3594, %v3363, 0.0
        %v3627 = vsel %vm3595, %v3366, 0.0
        %v3628 = vsel %vm3596, %v3371, 0.0
        %v3629 = vsel %vm3597, %v3374, 0.0
        %v3630 = vsel %vm3598, %v3379, 0.0
        %v3631 = vsel %vm3599, %v3382, 0.0
        %v3632 = vsel %vm3600, %v3387, 0.0
        %v3633 = vsel %vm3601, %v3390, 0.0
        %v3634 = vsel %vm3602, %v3395, 0.0
        %v3635 = vsel %vm3603, %v3398, 0.0
        %v3636 = vsel %vm3604, %v3403, 0.0
        %v3637 = vsel %vm3605, %v3406, 0.0
        %v3638 = vadd.s32 %v3443, 128
        %v3639 = vmul.u32 %v3410, 128
        %vm3640 = vcmp.ge.s32.totalorder %v3443, %v3639
        %vm3641 = vcmp.ge.s32.totalorder %v3638, %v3639
        %v3642 = vadd.s32 %v3410, 1
        %v3643 = vmul.u32 %v3642, 128
        %vm3644 = vcmp.lt.s32.totalorder %v3443, %v3643
        %vm3645 = vcmp.lt.s32.totalorder %v3638, %v3643
        %vm3646 = vmand %vm3640, %vm3644
        %vm3647 = vmand %vm3641, %vm3645
        %v3648 = vsel %vm3646, 1, 0
        %v3649 = vsel %vm3647, 1, 0
        %v3650 = vcvt.s32.f32 %v3648
        %v3651 = vcvt.s32.f32 %v3649
        %v3652 = vld [vmem:[%s10] sm:$0x1]
        %v3654 = vlaneseq
        %v3655 = vshrl.u32 %v3654, 7
        %v3656 = vsub.s32 0, %v3655
        %v3657 = vrot.slane %v3652, %v3656
        %3659 = vmatprep.subr.mxu0 0.0
        %3660 = vmatpush1.msra.mxu0 %v3621
        %3661 = vmatprep.subr.mxu0 0.0
        %3662 = vmatpush1.msra.mxu0 %v3620
        %3663 = vmatprep.subr.mxu0 0.0
        %3664 = vmatpush1.msra.mxu0 %v3619
        %3665 = vmatprep.subr.mxu0 0.0
        %3666 = vmatpush1.msra.mxu0 %v3618
        %3667 = vmatprep.subr.mxu0 0.0
        %3668 = vmatpush1.msra.mxu0 %v3617
        %3669 = vmatprep.subr.mxu0 0.0
        %3670 = vmatpush1.msra.mxu0 %v3616
        %3671 = vmatprep.subr.mxu0 0.0
        %3672 = vmatpush1.msra.mxu0 %v3615
        %3673 = vmatprep.subr.mxu0 0.0
        %3674 = vmatpush1.msra.mxu0 %v3614
        %3675 = vmatprep.subr.mxu0 0.0
        %3676 = vmatpush1.msra.mxu0 %v3613
        %3677 = vmatprep.subr.mxu0 0.0
        %3678 = vmatpush1.msra.mxu0 %v3612
        %3679 = vmatprep.subr.mxu0 0.0
        %3680 = vmatpush1.msra.mxu0 %v3611
        %3681 = vmatprep.subr.mxu0 0.0
        %3682 = vmatpush1.msra.mxu0 %v3610
        %3683 = vmatprep.subr.mxu0 0.0
        %3684 = vmatpush1.msra.mxu0 %v3609
        %3685 = vmatprep.subr.mxu0 0.0
        %3686 = vmatpush1.msra.mxu0 %v3608
        %3687 = vmatprep.subr.mxu0 0.0
        %3688 = vmatpush1.msra.mxu0 %v3607
        %3689 = vmatprep.subr.mxu0 0.0
        %3690 = vmatpush1.msra.mxu0 %v3606
        %3691 = vmatprep.subr.mxu0 0.0
        %3692 = vmatpush2.msra.mxu0 %v3637
        %3693 = vmatprep.subr.mxu0 0.0
        %3694 = vmatpush2.msra.mxu0 %v3636
        %3695 = vmatprep.subr.mxu0 0.0
        %3696 = vmatpush2.msra.mxu0 %v3635
        %3697 = vmatprep.subr.mxu0 0.0
        %3698 = vmatpush2.msra.mxu0 %v3634
        %3699 = vmatprep.subr.mxu0 0.0
        %3700 = vmatpush2.msra.mxu0 %v3633
        %3701 = vmatprep.subr.mxu0 0.0
        %3702 = vmatpush2.msra.mxu0 %v3632
        %3703 = vmatprep.subr.mxu0 0.0
        %3704 = vmatpush2.msra.mxu0 %v3631
        %3705 = vmatprep.subr.mxu0 0.0
        %3706 = vmatpush2.msra.mxu0 %v3630
        %3707 = vmatprep.subr.mxu0 0.0
        %3708 = vmatpush2.msra.mxu0 %v3629
        %3709 = vmatprep.subr.mxu0 0.0
        %3710 = vmatpush2.msra.mxu0 %v3628
        %3711 = vmatprep.subr.mxu0 0.0
        %3712 = vmatpush2.msra.mxu0 %v3627
        %3713 = vmatprep.subr.mxu0 0.0
        %3714 = vmatpush2.msra.mxu0 %v3626
        %3715 = vmatprep.subr.mxu0 0.0
        %3716 = vmatpush2.msra.mxu0 %v3625
        %3717 = vmatprep.subr.mxu0 0.0
        %3718 = vmatpush2.msra.mxu0 %v3624
        %3719 = vmatprep.subr.mxu0 0.0
        %3720 = vmatpush2.msra.mxu0 %v3623
        %3721 = vmatprep.subr.mxu0 0.0
        %3722 = vmatpush2.msra.mxu0 %v3622
        %3723 = vmatprep.mubr.f32.mxu0 %v3651
        %3724 = vmatmul.mubr.f32.gmra.mxu0 %v3650
        %v3725 = vpop.f32.mrf.mxu0
        %v3726 = vadd.f32 %v3657, %v3725
        %v3727 = vpop.f32.mrf.mxu0
        %3728 = vdwg.mxu0
        %3729 = vst [vmem:[%s485] sm:$0x3] %v3726
        %s3730 = sand.u32 %s275, 1
        %s3731 = scalar_lea.sflag [#allocation4], %s3730
        %s3732 = sand.u32 %s275, 1
        %s3733 = smul.addr %s3732, 2
        %s3734 = scalar_lea.vmem [#allocation13], %s3733
        // Predicated region
        $region89: #{tpu_custom_call.1} parent=63 // pred_check
          %p3735 = pneg %p285
        $region90: #{tpu_custom_call.1} parent=63 // pred_check_branch
          %3737 = sbr.rel (%p3735) target = $region92
        $region91: #{tpu_custom_call.1} parent=63 // pred_region
          %s3739 = ssub.s32 32, 32
          %3740 = vsyncadd %s3731, %s3739
          %s3741 = smul.addr %s31, 32
          %s3742 = scalar_lea.hbm %s11, %s3741
          %s3744 = sshll.u32 %s3734, 4
          %s3745 = int_to_ptr.vmem [resolvable:$true] %s3744
          %3747 = dma.vmem_to_hbm [thread:$0]  %s3745, 32, %s3742, %s3731
        $region92: #{tpu_custom_call.1} parent=63 // pred_fallthru
          _
      $region64: #{tpu_custom_call.1} parent=5 // pred_fallthru
        _
      %p3748 = scmp.le.s32.totalorder 2, %s26
      // Predicated region
      $region93: #{tpu_custom_call.1} parent=5 // pred_check
        %p3749 = pneg %p3748
      $region94: #{tpu_custom_call.1} parent=5 // pred_check_branch
        %3751 = sbr.rel (%p3749) target = $region96
      $region95: #{tpu_custom_call.1} parent=5 // pred_region
        %s3752 = ssub.s32 %s26, 2
        // Predicated region
        $region97: #{tpu_custom_call.1} parent=95 // pred_check
          %p3753 = pneg %p291
        $region98: #{tpu_custom_call.1} parent=95 // pred_check_branch
          %3755 = sbr.rel (%p3753) target = $region100
        $region99: #{tpu_custom_call.1} parent=95 // pred_region
          %s3756 = sand.u32 %s276, 1
          %s3757 = scalar_lea.sflag [#allocation4], %s3756
          %s3758 = sand.u32 %s276, 1
          %s3759 = smul.addr %s3758, 2
          %s3760 = scalar_lea.vmem [#allocation13], %s3759
          %3761 = dma.done %s3757, 32
        $region100: #{tpu_custom_call.1} parent=95 // pred_fallthru
          _
      $region96: #{tpu_custom_call.1} parent=5 // pred_fallthru
        _
    $region6: #{tpu_custom_call.1} parent=1 // loop_footer
      %s30 = sadd.s32 1, %s26
    $region7: #{tpu_custom_call.1} parent=1 // loop_footer_branch
      %25 = sbr.rel target = $region3
    $region8: #{tpu_custom_call.1} parent=1 // loop_exit
      _
    %3762 = vsyncpa [#allocation3], 1
    %s3763 = scalar_lea.sflag [#allocation3], 1
    %3764 = vsyncpa %s3763, 1
    %3765 = vsyncpa [#allocation6], 1
    %3766 = vsyncpa [#allocation9], 1
    %3767 = vsyncpa [#allocation12], 1
    %3768 = vsyncpa [#allocation4], 1
    %s3769 = scalar_lea.sflag [#allocation4], 1
    %3770 = vsyncpa %s3769, 1

</llo_original>
